<compile_context>
chip_gen: v7x
topology: tpu7x:2x2x1
jax: 0.10.0
libtpu: 0.0.40
codegen_flags: <defaults>
</compile_context>

<pallas_src>
from functools import partial

import numpy as np
import jax
import jax.numpy as jnp
from jax.experimental import pallas as pl
from jax.experimental.pallas import tpu as pltpu

F32 = jnp.float32
BATCH_TILE = 8          # per-grid-step batch (8 keeps per-step VMEM ~6 MB: safe on v5e/v6e/v7x)


# --------------------------------- fused kernel ---------------------------------

def _lenet_kernel(xp_ref, w1_ref, b1_ref, w2_ref, b2_ref,
                  wf1_ref, bf1_ref, wf2_ref, bf2_ref, wf3_ref, bf3_ref,
                  out_ref, h_ref):
    Bt = out_ref.shape[0]

    def sigmoid(v):                       # tanh rides the EUP slot; exact to ~1 ulp
        return 0.5 * jnp.tanh(0.5 * v) + 0.5

    xp = xp_ref[...]                                              # [Bt, 36, 128] padded image

    # ---- conv1: single band matmul.  K = 5*128 (ki-shifted image rows), N = 256 ----
    # Output column layout: p*128 + c*16 + wp  with output width w = 2*wp + p.
    x1 = jnp.concatenate([xp[:, ki:ki + 32, :] for ki in range(5)], axis=-1)
    x1 = x1.reshape(Bt * 32, 5 * 128)                             # rows = (b, h)
    y1 = jnp.dot(x1, w1_ref[...], preferred_element_type=F32) + b1_ref[...]

    # ---- 2x2 max-pool + sigmoid (width = parity halves, height = row-pair fold) ----
    p1 = jnp.maximum(y1[:, :128], y1[:, 128:])                    # [Bt*32, 128] lanes = c*16+wp
    p1 = p1.reshape(Bt * 16, 256)                                 # fold row pairs into lanes
    a1 = sigmoid(jnp.maximum(p1[:, :128], p1[:, 128:]))           # [Bt*16, 128]  (b,hp) x (c,wp)

    # ---- conv2: single band matmul.  K = 5*128 (ki-shifted a1 rows), N = 256 -------
    # Output column layout: p*128 + co*8 + wq  with output width w2 = 2*wq + p.
    a1r = a1.reshape(Bt, 16, 128)
    x2 = jnp.concatenate([a1r[:, ki:ki + 12, :] for ki in range(5)], axis=-1)
    x2 = x2.reshape(Bt * 12, 5 * 128)                             # rows = (b, h2)
    y2 = jnp.dot(x2, w2_ref[...], preferred_element_type=F32) + b2_ref[...]

    p2 = jnp.maximum(y2[:, :128], y2[:, 128:])                    # [Bt*12, 128] lanes = co*8+wq
    p2 = p2.reshape(Bt * 6, 256)                                  # fold row pairs into lanes
    a2 = sigmoid(jnp.maximum(p2[:, :128], p2[:, 128:]))           # [Bt*6, 128]  (b,hq) x (co,wq)

    # ---- fc1 -> fc2 -> fc3 (single dots; fc1 weight rows pre-permuted to this layout) ----
    a2f = a2.reshape(Bt, 6 * 128)                                 # lanes = hq*128 + co*8 + wq
    h1 = jnp.dot(a2f, wf1_ref[...], preferred_element_type=F32) + bf1_ref[...]
    h2 = jnp.dot(h1, wf2_ref[...], preferred_element_type=F32) + bf2_ref[...]
    h_ref[...] = h2
    out_ref[...] = jnp.dot(h2, wf3_ref[...], preferred_element_type=F32) + bf3_ref[...]


# -------------------------------- parameter prep --------------------------------
# One-time host-side (numpy) construction of the band/permuted weight matrices.

def prepare_params(params):
    nc = params["fc3_w"].shape[0]
    c1w = np.asarray(params["conv1_w"], np.float32)     # [6, 1, 5, 5]
    c1b = np.asarray(params["conv1_b"], np.float32)
    c2w = np.asarray(params["conv2_w"], np.float32)     # [16, 6, 5, 5]
    c2b = np.asarray(params["conv2_b"], np.float32)
    f1w = np.asarray(params["fc1_w"], np.float32)       # [100, 576]
    f1b = np.asarray(params["fc1_b"], np.float32)
    f2w = np.asarray(params["fc2_w"], np.float32)       # [84, 100]
    f2b = np.asarray(params["fc2_b"], np.float32)
    f3w = np.asarray(params["fc3_w"], np.float32)       # [nc, 84]
    f3b = np.asarray(params["fc3_b"], np.float32)

    # conv1 band matrix: rows (ki, w'), cols (p, c, wp); value = conv1_w[c,0,ki,kj], kj = w'-(2wp+p)
    W1 = np.zeros((5, 128, 2, 8, 16), np.float32)
    for ki in range(5):
        for p in range(2):
            for c in range(6):
                for wp in range(16):
                    w = 2 * wp + p
                    for kj in range(5):
                        W1[ki, w + kj, p, c, wp] = c1w[c, 0, ki, kj]
    w1 = W1.reshape(640, 256)
    B1 = np.zeros((2, 8, 16), np.float32)
    B1[:, :6, :] = c1b[None, :, None]
    b1 = B1.reshape(1, 256)

    # conv2 band matrix: rows (ki, ci, wp), cols (p, co, wq); value = conv2_w[co,ci,ki,kj],
    # kj = wp-(2wq+p).  Rows with ci in {6,7} stay zero -> padded sigmoid(0) lanes cancel.
    W2 = np.zeros((5, 8, 16, 2, 16, 8), np.float32)
    for ki in range(5):
        for ci in range(6):
            for p in range(2):
                for co in range(16):
                    for wq in range(6):
                        w2o = 2 * wq + p
                        for kj in range(5):
                            W2[ki, ci, w2o + kj, p, co, wq] = c2w[co, ci, ki, kj]
    w2 = W2.reshape(640, 256)
    B2 = np.zeros((2, 16, 8), np.float32)
    B2[:, :, :6] = c2b[None, :, None]
    b2 = B2.reshape(1, 256)

    # fc1: rows (hq, co, wq) matching the kernel's a2 flatten; torch feature = co*36 + hq*6 + wq
    Wf1 = np.zeros((6, 16, 8, 128), np.float32)
    for hq in range(6):
        for co in range(16):
            for wq in range(6):
                Wf1[hq, co, wq, :100] = f1w[:, co * 36 + hq * 6 + wq]
    wf1 = Wf1.reshape(768, 128)
    bf1 = np.zeros((1, 128), np.float32); bf1[0, :100] = f1b

    wf2 = np.zeros((128, 128), np.float32); wf2[:100, :84] = f2w.T
    bf2 = np.zeros((1, 128), np.float32);   bf2[0, :84] = f2b
    wf3 = np.zeros((128, 128), np.float32); wf3[:84, :nc] = f3w.T
    bf3 = np.zeros((1, 128), np.float32);   bf3[0, :nc] = f3b

    to_dev = lambda a: jnp.asarray(a, F32)
    return {"w1": to_dev(w1), "b1": to_dev(b1), "w2": to_dev(w2), "b2": to_dev(b2),
            "wf1": to_dev(wf1), "bf1": to_dev(bf1), "wf2": to_dev(wf2), "bf2": to_dev(bf2),
            "wf3": to_dev(wf3), "bf3": to_dev(bf3)}


# ------------------------------------ forward ------------------------------------

def _pad_image(x_nchw):
    """[B,1,32,32] -> [B, 36, 128]: conv pad=2 on H/W, lane dim padded 36 -> 128."""
    x = x_nchw.astype(F32)[:, 0, :, :]
    return jnp.pad(x, ((0, 0), (2, 2), (2, 128 - 32 - 2)))


@partial(jax.jit, static_argnames=("num_classes", "batch_tile"))
def lenet_forward(x_nchw, prepped, num_classes, batch_tile=BATCH_TILE):
    B = x_nchw.shape[0]
    Bt = batch_tile
    xp = _pad_image(x_nchw)                                       # [B, 36, 128]
    Bp = ((B + Bt - 1) // Bt) * Bt
    if Bp != B:
        xp = jnp.pad(xp, ((0, Bp - B), (0, 0), (0, 0)))

    def wspec(shape):
        return pl.BlockSpec(shape, lambda i, _s=shape: (0,) * len(_s))

    out_pad, h_pad = pl.pallas_call(
        _lenet_kernel,
        out_shape=(jax.ShapeDtypeStruct((Bp, 128), F32),          # fc3 logits (padded lanes)
                   jax.ShapeDtypeStruct((Bp, 128), F32)),         # fc2 output  (padded lanes)
        grid=(Bp // Bt,),
        in_specs=[pl.BlockSpec((Bt, 36, 128), lambda i: (i, 0, 0)),   # image tile (pipelined)
                  wspec((640, 256)), wspec((1, 256)),                 # conv1 band + bias
                  wspec((640, 256)), wspec((1, 256)),                 # conv2 band + bias
                  wspec((768, 128)), wspec((1, 128)),                 # fc1
                  wspec((128, 128)), wspec((1, 128)),                 # fc2
                  wspec((128, 128)), wspec((1, 128))],                # fc3
        out_specs=(pl.BlockSpec((Bt, 128), lambda i: (i, 0)),
                   pl.BlockSpec((Bt, 128), lambda i: (i, 0))),
        compiler_params=pltpu.CompilerParams(
            dimension_semantics=("parallel",),
            vmem_limit_bytes=32 * 1024 * 1024),
    )(xp, prepped["w1"], prepped["b1"], prepped["w2"], prepped["b2"],
      prepped["wf1"], prepped["bf1"], prepped["wf2"], prepped["bf2"],
      prepped["wf3"], prepped["bf3"])

    return out_pad[:B, :num_classes], h_pad[:B, :84]


# ----------------------------- plain-JAX reference -------------------------------

def lenet_reference(x_nchw, params):
    x = jnp.transpose(x_nchw, (0, 2, 3, 1)).astype(F32)           # NHWC

    def conv(x, w, b, pad):
        if pad:
            x = jnp.pad(x, ((0, 0), (pad, pad), (pad, pad), (0, 0)))
        B, H, W, C = x.shape
        k = w.shape[2]
        Ho, Wo = H - k + 1, W - k + 1
        cols = [x[:, i:i + Ho, j:j + Wo, :] for i in range(k) for j in range(k)]
        p = jnp.stack(cols, axis=3).reshape(B * Ho * Wo, k * k * C)
        wm = jnp.transpose(w, (2, 3, 1, 0)).reshape(k * k * C, w.shape[0])
        return (p @ wm + b).reshape(B, Ho, Wo, w.shape[0])

    def pool_sig(x):
        m = jnp.maximum(jnp.maximum(x[:, 0::2, 0::2, :], x[:, 0::2, 1::2, :]),
                        jnp.maximum(x[:, 1::2, 0::2, :], x[:, 1::2, 1::2, :]))
        return 1.0 / (1.0 + jnp.exp(-m))

    x = pool_sig(conv(x, params["conv1_w"], params["conv1_b"], 2))
    x = pool_sig(conv(x, params["conv2_w"], params["conv2_b"], 0))
    B = x.shape[0]
    flat = jnp.transpose(x, (0, 3, 1, 2)).reshape(B, -1)          # torch (C,H,W) flatten
    h = (flat @ params["fc1_w"].T + params["fc1_b"]) @ params["fc2_w"].T + params["fc2_b"]
    out = h @ params["fc3_w"].T + params["fc3_b"]
    return out, h


def init_params(key, num_classes=10):
    ks = jax.random.split(key, 10)
    n = lambda k, s, scale=0.1: (scale * jax.random.normal(k, s)).astype(F32)
    return {
        "conv1_w": n(ks[0], (6, 1, 5, 5)),      "conv1_b": n(ks[1], (6,)),
        "conv2_w": n(ks[2], (16, 6, 5, 5)),     "conv2_b": n(ks[3], (16,)),
        "fc1_w":   n(ks[4], (100, 576)),        "fc1_b":   n(ks[5], (100,)),
        "fc2_w":   n(ks[6], (84, 100)),         "fc2_b":   n(ks[7], (84,)),
        "fc3_w":   n(ks[8], (num_classes, 84)), "fc3_b":   n(ks[9], (num_classes,)),
    }


if __name__ == "__main__":
    key = jax.random.PRNGKey(0)
    k_x, k_p = jax.random.split(key)
    # fc1 expects 16*6*6 = 576 features, which pins the input to 1x32x32.
    x = jax.random.normal(k_x, (2, 1, 32, 32), dtype=F32)
    params = init_params(k_p, num_classes=10)
    prepped = prepare_params(params)          # one-time weight band/permute/pad (not per-call)

    out, h = lenet_forward(x, prepped, num_classes=10, batch_tile=BATCH_TILE)
    out, h = jax.block_until_ready(out), jax.block_until_ready(h)
    ref_out, ref_h = lenet_reference(x, params)
    assert out.shape == (2, 10) and h.shape == (2, 84)
    assert jnp.allclose(out, ref_out, rtol=1e-4, atol=1e-4)
    assert jnp.allclose(h, ref_h, rtol=1e-4, atol=1e-4)

    # Also exercise a multi-step pipelined batch grid (16 images -> 2 grid steps of 8).
    x_big = jax.random.normal(jax.random.PRNGKey(1), (16, 1, 32, 32), dtype=F32)
    out_b, h_b = lenet_forward(x_big, prepped, num_classes=10, batch_tile=BATCH_TILE)
    out_b = jax.block_until_ready(out_b)
    ref_out_b, ref_h_b = lenet_reference(x_big, params)
    assert jnp.allclose(out_b, ref_out_b, rtol=1e-4, atol=1e-4)
    assert jnp.allclose(h_b, ref_h_b, rtol=1e-4, atol=1e-4)

    print("KERNEL_OK")
</pallas_src>

<mosaic_0001>
module attributes {stable_mosaic.version = 11 : i64} {
  func.func @_lenet_kernel(%arg0: i32, %arg1: memref<8x36x128xf32, #tpu.memory_space<vmem>>, %arg2: memref<640x256xf32, #tpu.memory_space<vmem>>, %arg3: memref<1x256xf32, #tpu.memory_space<vmem>>, %arg4: memref<640x256xf32, #tpu.memory_space<vmem>>, %arg5: memref<1x256xf32, #tpu.memory_space<vmem>>, %arg6: memref<768x128xf32, #tpu.memory_space<vmem>>, %arg7: memref<1x128xf32, #tpu.memory_space<vmem>>, %arg8: memref<128x128xf32, #tpu.memory_space<vmem>>, %arg9: memref<1x128xf32, #tpu.memory_space<vmem>>, %arg10: memref<128x128xf32, #tpu.memory_space<vmem>>, %arg11: memref<1x128xf32, #tpu.memory_space<vmem>>, %arg12: memref<8x128xf32, #tpu.memory_space<vmem>>, %arg13: memref<8x128xf32, #tpu.memory_space<vmem>>) attributes {dimension_semantics = [#tpu.dimension_semantics<parallel>], iteration_bounds = array<i64: 1>, scalar_prefetch = 0 : i64, scratch_operands = 0 : i64, tpu.core_type = #tpu.core_type<tc>, window_params = [{transform_indices = @transform_0, window_bounds = array<i64: 8, 36, 128>}, {pipeline_mode = #tpu.pipeline_mode<synchronous>, transform_indices = @transform_1, window_bounds = array<i64: 640, 256>}, {pipeline_mode = #tpu.pipeline_mode<synchronous>, transform_indices = @transform_2, window_bounds = array<i64: 1, 256>}, {pipeline_mode = #tpu.pipeline_mode<synchronous>, transform_indices = @transform_3, window_bounds = array<i64: 640, 256>}, {pipeline_mode = #tpu.pipeline_mode<synchronous>, transform_indices = @transform_4, window_bounds = array<i64: 1, 256>}, {pipeline_mode = #tpu.pipeline_mode<synchronous>, transform_indices = @transform_5, window_bounds = array<i64: 768, 128>}, {pipeline_mode = #tpu.pipeline_mode<synchronous>, transform_indices = @transform_6, window_bounds = array<i64: 1, 128>}, {pipeline_mode = #tpu.pipeline_mode<synchronous>, transform_indices = @transform_7, window_bounds = array<i64: 128, 128>}, {pipeline_mode = #tpu.pipeline_mode<synchronous>, transform_indices = @transform_8, window_bounds = array<i64: 1, 128>}, {pipeline_mode = #tpu.pipeline_mode<synchronous>, transform_indices = @transform_9, window_bounds = array<i64: 128, 128>}, {pipeline_mode = #tpu.pipeline_mode<synchronous>, transform_indices = @transform_10, window_bounds = array<i64: 1, 128>}, {transform_indices = @transform_11, window_bounds = array<i64: 8, 128>}, {transform_indices = @transform_12, window_bounds = array<i64: 8, 128>}]} {
    %c0 = arith.constant 0 : index
    %c0_0 = arith.constant 0 : index
    %c0_1 = arith.constant 0 : index
    %0 = vector.load %arg1[%c0, %c0_0, %c0_1] : memref<8x36x128xf32, #tpu.memory_space<vmem>>, vector<8x36x128xf32>
    %1 = vector.extract_strided_slice %0 {offsets = [0, 0, 0], sizes = [8, 32, 128], strides = [1, 1, 1]} : vector<8x36x128xf32> to vector<8x32x128xf32>
    %2 = vector.extract_strided_slice %0 {offsets = [0, 1, 0], sizes = [8, 32, 128], strides = [1, 1, 1]} : vector<8x36x128xf32> to vector<8x32x128xf32>
    %3 = vector.extract_strided_slice %0 {offsets = [0, 2, 0], sizes = [8, 32, 128], strides = [1, 1, 1]} : vector<8x36x128xf32> to vector<8x32x128xf32>
    %4 = vector.extract_strided_slice %0 {offsets = [0, 3, 0], sizes = [8, 32, 128], strides = [1, 1, 1]} : vector<8x36x128xf32> to vector<8x32x128xf32>
    %5 = vector.extract_strided_slice %0 {offsets = [0, 4, 0], sizes = [8, 32, 128], strides = [1, 1, 1]} : vector<8x36x128xf32> to vector<8x32x128xf32>
    %6 = tpu.concatenate %1, %2, %3, %4, %5 in 2 : vector<8x32x128xf32>, vector<8x32x128xf32>, vector<8x32x128xf32>, vector<8x32x128xf32>, vector<8x32x128xf32> -> vector<8x32x640xf32>
    %7 = vector.shape_cast %6 : vector<8x32x640xf32> to vector<256x640xf32>
    %c0_2 = arith.constant 0 : index
    %c0_3 = arith.constant 0 : index
    %8 = vector.load %arg2[%c0_2, %c0_3] : memref<640x256xf32, #tpu.memory_space<vmem>>, vector<640x256xf32>
    %cst = arith.constant dense<0.000000e+00> : vector<256x256xf32>
    %9 = tpu.matmul %7, %8, %cst {dimension_numbers = #tpu.dot_dimension_numbers<[1], [0], [0], [1], [0, 0, 1, 1], [], []>} : vector<256x640xf32>, vector<640x256xf32>, vector<256x256xf32> -> vector<256x256xf32>
    %c0_4 = arith.constant 0 : index
    %c0_5 = arith.constant 0 : index
    %10 = vector.load %arg3[%c0_4, %c0_5] : memref<1x256xf32, #tpu.memory_space<vmem>>, vector<1x256xf32>
    %11 = vector.broadcast %10 : vector<1x256xf32> to vector<256x256xf32>
    %12 = arith.addf %9, %11 : vector<256x256xf32>
    %13 = vector.extract_strided_slice %12 {offsets = [0, 0], sizes = [256, 128], strides = [1, 1]} : vector<256x256xf32> to vector<256x128xf32>
    %14 = vector.extract_strided_slice %12 {offsets = [0, 128], sizes = [256, 128], strides = [1, 1]} : vector<256x256xf32> to vector<256x128xf32>
    %15 = arith.maximumf %13, %14 : vector<256x128xf32>
    %16 = vector.shape_cast %15 : vector<256x128xf32> to vector<128x256xf32>
    %17 = vector.extract_strided_slice %16 {offsets = [0, 0], sizes = [128, 128], strides = [1, 1]} : vector<128x256xf32> to vector<128x128xf32>
    %18 = vector.extract_strided_slice %16 {offsets = [0, 128], sizes = [128, 128], strides = [1, 1]} : vector<128x256xf32> to vector<128x128xf32>
    %19 = arith.maximumf %17, %18 : vector<128x128xf32>
    %cst_6 = arith.constant 5.000000e-01 : f32
    %20 = vector.broadcast %cst_6 : f32 to vector<128x128xf32>
    %21 = arith.mulf %20, %19 : vector<128x128xf32>
    %22 = math.tanh %21 : vector<128x128xf32>
    %cst_7 = arith.constant 5.000000e-01 : f32
    %23 = vector.broadcast %cst_7 : f32 to vector<128x128xf32>
    %24 = arith.mulf %23, %22 : vector<128x128xf32>
    %cst_8 = arith.constant 5.000000e-01 : f32
    %25 = vector.broadcast %cst_8 : f32 to vector<128x128xf32>
    %26 = arith.addf %24, %25 : vector<128x128xf32>
    %27 = vector.shape_cast %26 : vector<128x128xf32> to vector<8x16x128xf32>
    %28 = vector.extract_strided_slice %27 {offsets = [0, 0, 0], sizes = [8, 12, 128], strides = [1, 1, 1]} : vector<8x16x128xf32> to vector<8x12x128xf32>
    %29 = vector.extract_strided_slice %27 {offsets = [0, 1, 0], sizes = [8, 12, 128], strides = [1, 1, 1]} : vector<8x16x128xf32> to vector<8x12x128xf32>
    %30 = vector.extract_strided_slice %27 {offsets = [0, 2, 0], sizes = [8, 12, 128], strides = [1, 1, 1]} : vector<8x16x128xf32> to vector<8x12x128xf32>
    %31 = vector.extract_strided_slice %27 {offsets = [0, 3, 0], sizes = [8, 12, 128], strides = [1, 1, 1]} : vector<8x16x128xf32> to vector<8x12x128xf32>
    %32 = vector.extract_strided_slice %27 {offsets = [0, 4, 0], sizes = [8, 12, 128], strides = [1, 1, 1]} : vector<8x16x128xf32> to vector<8x12x128xf32>
    %33 = tpu.concatenate %28, %29, %30, %31, %32 in 2 : vector<8x12x128xf32>, vector<8x12x128xf32>, vector<8x12x128xf32>, vector<8x12x128xf32>, vector<8x12x128xf32> -> vector<8x12x640xf32>
    %34 = vector.shape_cast %33 : vector<8x12x640xf32> to vector<96x640xf32>
    %c0_9 = arith.constant 0 : index
    %c0_10 = arith.constant 0 : index
    %35 = vector.load %arg4[%c0_9, %c0_10] : memref<640x256xf32, #tpu.memory_space<vmem>>, vector<640x256xf32>
    %cst_11 = arith.constant dense<0.000000e+00> : vector<96x256xf32>
    %36 = tpu.matmul %34, %35, %cst_11 {dimension_numbers = #tpu.dot_dimension_numbers<[1], [0], [0], [1], [0, 0, 1, 1], [], []>} : vector<96x640xf32>, vector<640x256xf32>, vector<96x256xf32> -> vector<96x256xf32>
    %c0_12 = arith.constant 0 : index
    %c0_13 = arith.constant 0 : index
    %37 = vector.load %arg5[%c0_12, %c0_13] : memref<1x256xf32, #tpu.memory_space<vmem>>, vector<1x256xf32>
    %38 = vector.broadcast %37 : vector<1x256xf32> to vector<96x256xf32>
    %39 = arith.addf %36, %38 : vector<96x256xf32>
    %40 = vector.extract_strided_slice %39 {offsets = [0, 0], sizes = [96, 128], strides = [1, 1]} : vector<96x256xf32> to vector<96x128xf32>
    %41 = vector.extract_strided_slice %39 {offsets = [0, 128], sizes = [96, 128], strides = [1, 1]} : vector<96x256xf32> to vector<96x128xf32>
    %42 = arith.maximumf %40, %41 : vector<96x128xf32>
    %43 = vector.shape_cast %42 : vector<96x128xf32> to vector<48x256xf32>
    %44 = vector.extract_strided_slice %43 {offsets = [0, 0], sizes = [48, 128], strides = [1, 1]} : vector<48x256xf32> to vector<48x128xf32>
    %45 = vector.extract_strided_slice %43 {offsets = [0, 128], sizes = [48, 128], strides = [1, 1]} : vector<48x256xf32> to vector<48x128xf32>
    %46 = arith.maximumf %44, %45 : vector<48x128xf32>
    %cst_14 = arith.constant 5.000000e-01 : f32
    %47 = vector.broadcast %cst_14 : f32 to vector<48x128xf32>
    %48 = arith.mulf %47, %46 : vector<48x128xf32>
    %49 = math.tanh %48 : vector<48x128xf32>
    %cst_15 = arith.constant 5.000000e-01 : f32
    %50 = vector.broadcast %cst_15 : f32 to vector<48x128xf32>
    %51 = arith.mulf %50, %49 : vector<48x128xf32>
    %cst_16 = arith.constant 5.000000e-01 : f32
    %52 = vector.broadcast %cst_16 : f32 to vector<48x128xf32>
    %53 = arith.addf %51, %52 : vector<48x128xf32>
    %54 = vector.shape_cast %53 : vector<48x128xf32> to vector<8x768xf32>
    %c0_17 = arith.constant 0 : index
    %c0_18 = arith.constant 0 : index
    %55 = vector.load %arg6[%c0_17, %c0_18] : memref<768x128xf32, #tpu.memory_space<vmem>>, vector<768x128xf32>
    %cst_19 = arith.constant dense<0.000000e+00> : vector<8x128xf32>
    %56 = tpu.matmul %54, %55, %cst_19 {dimension_numbers = #tpu.dot_dimension_numbers<[1], [0], [0], [1], [0, 0, 1, 1], [], []>} : vector<8x768xf32>, vector<768x128xf32>, vector<8x128xf32> -> vector<8x128xf32>
    %c0_20 = arith.constant 0 : index
    %c0_21 = arith.constant 0 : index
    %57 = vector.load %arg7[%c0_20, %c0_21] : memref<1x128xf32, #tpu.memory_space<vmem>>, vector<1x128xf32>
    %58 = vector.broadcast %57 : vector<1x128xf32> to vector<8x128xf32>
    %59 = arith.addf %56, %58 : vector<8x128xf32>
    %c0_22 = arith.constant 0 : index
    %c0_23 = arith.constant 0 : index
    %60 = vector.load %arg8[%c0_22, %c0_23] : memref<128x128xf32, #tpu.memory_space<vmem>>, vector<128x128xf32>
    %cst_24 = arith.constant dense<0.000000e+00> : vector<8x128xf32>
    %61 = tpu.matmul %59, %60, %cst_24 {dimension_numbers = #tpu.dot_dimension_numbers<[1], [0], [0], [1], [0, 0, 1, 1], [], []>} : vector<8x128xf32>, vector<128x128xf32>, vector<8x128xf32> -> vector<8x128xf32>
    %c0_25 = arith.constant 0 : index
    %c0_26 = arith.constant 0 : index
    %62 = vector.load %arg9[%c0_25, %c0_26] : memref<1x128xf32, #tpu.memory_space<vmem>>, vector<1x128xf32>
    %63 = vector.broadcast %62 : vector<1x128xf32> to vector<8x128xf32>
    %64 = arith.addf %61, %63 : vector<8x128xf32>
    %c0_27 = arith.constant 0 : index
    %c0_28 = arith.constant 0 : index
    %65 = vector.load %arg13[%c0_27, %c0_28] : memref<8x128xf32, #tpu.memory_space<vmem>>, vector<8x128xf32>
    tpu.vector_store %arg13[%c0_27, %c0_28], %64 {strides = array<i32>} : memref<8x128xf32, #tpu.memory_space<vmem>>, vector<8x128xf32>,
    %c0_29 = arith.constant 0 : index
    %c0_30 = arith.constant 0 : index
    %66 = vector.load %arg10[%c0_29, %c0_30] : memref<128x128xf32, #tpu.memory_space<vmem>>, vector<128x128xf32>
    %cst_31 = arith.constant dense<0.000000e+00> : vector<8x128xf32>
    %67 = tpu.matmul %64, %66, %cst_31 {dimension_numbers = #tpu.dot_dimension_numbers<[1], [0], [0], [1], [0, 0, 1, 1], [], []>} : vector<8x128xf32>, vector<128x128xf32>, vector<8x128xf32> -> vector<8x128xf32>
    %c0_32 = arith.constant 0 : index
    %c0_33 = arith.constant 0 : index
    %68 = vector.load %arg11[%c0_32, %c0_33] : memref<1x128xf32, #tpu.memory_space<vmem>>, vector<1x128xf32>
    %69 = vector.broadcast %68 : vector<1x128xf32> to vector<8x128xf32>
    %70 = arith.addf %67, %69 : vector<8x128xf32>
    %c0_34 = arith.constant 0 : index
    %c0_35 = arith.constant 0 : index
    %71 = vector.load %arg12[%c0_34, %c0_35] : memref<8x128xf32, #tpu.memory_space<vmem>>, vector<8x128xf32>
    tpu.vector_store %arg12[%c0_34, %c0_35], %70 {strides = array<i32>} : memref<8x128xf32, #tpu.memory_space<vmem>>, vector<8x128xf32>,
    return
  }
  func.func @transform_0(%arg0: i32) -> (i32, i32, i32) {
    %c0_i32 = arith.constant 0 : i32
    %c0_i32_0 = arith.constant 0 : i32
    %c0_i32_1 = arith.constant 0 : i32
    return %arg0, %c0_i32, %c0_i32_0 : i32, i32, i32
  }
  func.func @transform_1(%arg0: i32) -> (i32, i32) {
    %c0_i32 = arith.constant 0 : i32
    %c0_i32_0 = arith.constant 0 : i32
    %c0_i32_1 = arith.constant 0 : i32
    return %c0_i32, %c0_i32_0 : i32, i32
  }
  func.func @transform_2(%arg0: i32) -> (i32, i32) {
    %c0_i32 = arith.constant 0 : i32
    %c0_i32_0 = arith.constant 0 : i32
    %c0_i32_1 = arith.constant 0 : i32
    return %c0_i32, %c0_i32_0 : i32, i32
  }
  func.func @transform_3(%arg0: i32) -> (i32, i32) {
    %c0_i32 = arith.constant 0 : i32
    %c0_i32_0 = arith.constant 0 : i32
    %c0_i32_1 = arith.constant 0 : i32
    return %c0_i32, %c0_i32_0 : i32, i32
  }
  func.func @transform_4(%arg0: i32) -> (i32, i32) {
    %c0_i32 = arith.constant 0 : i32
    %c0_i32_0 = arith.constant 0 : i32
    %c0_i32_1 = arith.constant 0 : i32
    return %c0_i32, %c0_i32_0 : i32, i32
  }
  func.func @transform_5(%arg0: i32) -> (i32, i32) {
    %c0_i32 = arith.constant 0 : i32
    %c0_i32_0 = arith.constant 0 : i32
    %c0_i32_1 = arith.constant 0 : i32
    return %c0_i32, %c0_i32_0 : i32, i32
  }
  func.func @transform_6(%arg0: i32) -> (i32, i32) {
    %c0_i32 = arith.constant 0 : i32
    %c0_i32_0 = arith.constant 0 : i32
    %c0_i32_1 = arith.constant 0 : i32
    return %c0_i32, %c0_i32_0 : i32, i32
  }
  func.func @transform_7(%arg0: i32) -> (i32, i32) {
    %c0_i32 = arith.constant 0 : i32
    %c0_i32_0 = arith.constant 0 : i32
    %c0_i32_1 = arith.constant 0 : i32
    return %c0_i32, %c0_i32_0 : i32, i32
  }
  func.func @transform_8(%arg0: i32) -> (i32, i32) {
    %c0_i32 = arith.constant 0 : i32
    %c0_i32_0 = arith.constant 0 : i32
    %c0_i32_1 = arith.constant 0 : i32
    return %c0_i32, %c0_i32_0 : i32, i32
  }
  func.func @transform_9(%arg0: i32) -> (i32, i32) {
    %c0_i32 = arith.constant 0 : i32
    %c0_i32_0 = arith.constant 0 : i32
    %c0_i32_1 = arith.constant 0 : i32
    return %c0_i32, %c0_i32_0 : i32, i32
  }
  func.func @transform_10(%arg0: i32) -> (i32, i32) {
    %c0_i32 = arith.constant 0 : i32
    %c0_i32_0 = arith.constant 0 : i32
    %c0_i32_1 = arith.constant 0 : i32
    return %c0_i32, %c0_i32_0 : i32, i32
  }
  func.func @transform_11(%arg0: i32) -> (i32, i32) {
    %c0_i32 = arith.constant 0 : i32
    %c0_i32_0 = arith.constant 0 : i32
    return %arg0, %c0_i32 : i32, i32
  }
  func.func @transform_12(%arg0: i32) -> (i32, i32) {
    %c0_i32 = arith.constant 0 : i32
    %c0_i32_0 = arith.constant 0 : i32
    return %arg0, %c0_i32 : i32, i32
  }
}

</mosaic_0001>

<llo_original>
// kernel: lenet_forward.1
$region0: #{lenet_forward.1}
  #allocation0 [shape = 'u32[]', space=smem, size = 0x4, offset = 0x4, fixed_abs, tag = 'smem constant byte address 0x4 - core index']
  #allocation1 [shape = 'u32[144,128]{1,0:T(1,128)}', space=vmem, size = 0x12000, scoped, tag = 'internal scratch']
  %s0 = inlined_call_operand.vmem [shape: f32[8,36,128], index: 0, kind: input, shape index: {}]
  %s1 = inlined_call_operand.hbm [shape: f32[640,256], index: 1, kind: input, shape index: {}]
  %s2 = inlined_call_operand.vmem [shape: f32[1,256], index: 2, kind: input, shape index: {}]
  %s3 = inlined_call_operand.hbm [shape: f32[640,256], index: 3, kind: input, shape index: {}]
  %s4 = inlined_call_operand.vmem [shape: f32[1,256], index: 4, kind: input, shape index: {}]
  %s5 = inlined_call_operand.hbm [shape: f32[768,128], index: 5, kind: input, shape index: {}]
  %s6 = inlined_call_operand.vmem [shape: f32[1,128], index: 6, kind: input, shape index: {}]
  %s7 = inlined_call_operand.vmem [shape: f32[128,128], index: 7, kind: input, shape index: {}]
  %s8 = inlined_call_operand.vmem [shape: f32[1,128], index: 8, kind: input, shape index: {}]
  %s9 = inlined_call_operand.vmem [shape: f32[128,128], index: 9, kind: input, shape index: {}]
  %s10 = inlined_call_operand.vmem [shape: f32[1,128], index: 10, kind: input, shape index: {}]
  %s11 = inlined_call_operand.vmem [shape: f32[8,128], index: 11, kind: output, shape index: {0}]
  %s12 = inlined_call_operand.vmem [shape: f32[8,128], index: 12, kind: output, shape index: {1}]
  %13 = xla_tuple %s11, %s12
  %s14 = sld [smem:[#allocation0]]
  $region74: #{lenet_forward.1} parent=0
    _
  %s16 = ssub.s32 1, %s14
  %s17 = scalar_select 0, %s16, %s14
  $region1: #{lenet_forward.1} parent=0
    #allocation2 [shape = 'u8[655360]{0}', space=vmem, size = 0xa0000, scoped, tag = 'input window, operand 1, single buffered']
    #allocation3 [shape = 's32[1]{0}', space=sflag, size = 0x4, scoped, tag = 'scoped memory for lenet_forward.1']
    #allocation4 [shape = 'u8[655360]{0}', space=vmem, size = 0xa0000, scoped, tag = 'input window, operand 3, single buffered']
    #allocation5 [shape = 's32[1]{0}', space=sflag, size = 0x4, scoped, tag = 'scoped memory for lenet_forward.1']
    #allocation6 [shape = 'u8[393216]{0}', space=vmem, size = 0x60000, scoped, tag = 'input window, operand 5, single buffered']
    %18 = vsyncpa [#allocation3], 0
    %19 = vsyncpa [#allocation5], 0
    // Predicated region
    $region2: #{lenet_forward.1} parent=1 // pred_check
      _
    $region3: #{lenet_forward.1} parent=1 // pred_check_branch
      %21 = sbr.rel (0) target = $region5
    $region4: #{lenet_forward.1} parent=1 // pred_region
      _
    $region5: #{lenet_forward.1} parent=1 // pred_fallthru
      _
    // Predicated region
    $region6: #{lenet_forward.1} parent=1 // pred_check
      _
    $region7: #{lenet_forward.1} parent=1 // pred_check_branch
      %23 = sbr.rel (0) target = $region9
    $region8: #{lenet_forward.1} parent=1 // pred_region
      %s25 = ssub.s32 20480, 20480
      %26 = vsyncadd [#allocation3], %s25
      %s27 = sshll.u32 [#allocation2], 4
      %s28 = int_to_ptr.vmem [resolvable:$true] %s27
      %33 = dma.hbm_to_vmem [thread:$0]  %s1, 20480, %s28, [#allocation3], 256, 256, 16
    $region9: #{lenet_forward.1} parent=1 // pred_fallthru
      _
    // Predicated region
    $region10: #{lenet_forward.1} parent=1 // pred_check
      _
    $region11: #{lenet_forward.1} parent=1 // pred_check_branch
      %35 = sbr.rel (0) target = $region13
    $region12: #{lenet_forward.1} parent=1 // pred_region
      _
    $region13: #{lenet_forward.1} parent=1 // pred_fallthru
      _
    // Predicated region
    $region14: #{lenet_forward.1} parent=1 // pred_check
      _
    $region15: #{lenet_forward.1} parent=1 // pred_check_branch
      %37 = sbr.rel (0) target = $region17
    $region16: #{lenet_forward.1} parent=1 // pred_region
      %s39 = ssub.s32 20480, 20480
      %40 = vsyncadd [#allocation5], %s39
      %s41 = sshll.u32 [#allocation4], 4
      %s42 = int_to_ptr.vmem [resolvable:$true] %s41
      %47 = dma.hbm_to_vmem [thread:$0]  %s3, 20480, %s42, [#allocation5], 256, 256, 16
    $region17: #{lenet_forward.1} parent=1 // pred_fallthru
      _
    // Predicated region
    $region18: #{lenet_forward.1} parent=1 // pred_check
      _
    $region19: #{lenet_forward.1} parent=1 // pred_check_branch
      %49 = sbr.rel (0) target = $region21
    $region20: #{lenet_forward.1} parent=1 // pred_region
      _
    $region21: #{lenet_forward.1} parent=1 // pred_fallthru
      _
    // Predicated region
    $region22: #{lenet_forward.1} parent=1 // pred_check
      _
    $region23: #{lenet_forward.1} parent=1 // pred_check_branch
      %51 = sbr.rel (0) target = $region25
    $region24: #{lenet_forward.1} parent=1 // pred_region
      %s53 = ssub.s32 12288, 12288
      %54 = vsyncadd [#allocation5], %s53
      %s55 = sshll.u32 [#allocation6], 4
      %s56 = int_to_ptr.vmem [resolvable:$true] %s55
      %61 = dma.hbm_to_vmem [thread:$0]  %s5, 12288, %s56, [#allocation5], 128, 128, 8
    $region25: #{lenet_forward.1} parent=1 // pred_fallthru
      _
    // Predicated region
    $region26: #{lenet_forward.1} parent=1 // pred_check
      _
    $region27: #{lenet_forward.1} parent=1 // pred_check_branch
      %63 = sbr.rel (0) target = $region29
    $region28: #{lenet_forward.1} parent=1 // pred_region
      _
    $region29: #{lenet_forward.1} parent=1 // pred_fallthru
      _
    // Predicated region
    $region30: #{lenet_forward.1} parent=1 // pred_check
      _
    $region31: #{lenet_forward.1} parent=1 // pred_check_branch
      %65 = sbr.rel (0) target = $region33
    $region32: #{lenet_forward.1} parent=1 // pred_region
      _
    $region33: #{lenet_forward.1} parent=1 // pred_fallthru
      _
    // Predicated region
    $region34: #{lenet_forward.1} parent=1 // pred_check
      _
    $region35: #{lenet_forward.1} parent=1 // pred_check_branch
      %67 = sbr.rel (0) target = $region37
    $region36: #{lenet_forward.1} parent=1 // pred_region
      _
    $region37: #{lenet_forward.1} parent=1 // pred_fallthru
      _
    // Predicated region
    $region38: #{lenet_forward.1} parent=1 // pred_check
      _
    $region39: #{lenet_forward.1} parent=1 // pred_check_branch
      %69 = sbr.rel (0) target = $region41
    $region40: #{lenet_forward.1} parent=1 // pred_region
      _
    $region41: #{lenet_forward.1} parent=1 // pred_fallthru
      _
    // Predicated region
    $region42: #{lenet_forward.1} parent=1 // pred_check
      _
    $region43: #{lenet_forward.1} parent=1 // pred_check_branch
      %71 = sbr.rel (0) target = $region45
    $region44: #{lenet_forward.1} parent=1 // pred_region
      _
    $region45: #{lenet_forward.1} parent=1 // pred_fallthru
      _
    // Predicated region
    $region46: #{lenet_forward.1} parent=1 // pred_check
      _
    $region47: #{lenet_forward.1} parent=1 // pred_check_branch
      %73 = sbr.rel (0) target = $region49
    $region48: #{lenet_forward.1} parent=1 // pred_region
      %74 = dma.done [#allocation3], 20480
    $region49: #{lenet_forward.1} parent=1 // pred_fallthru
      _
    // Predicated region
    $region50: #{lenet_forward.1} parent=1 // pred_check
      _
    $region51: #{lenet_forward.1} parent=1 // pred_check_branch
      %76 = sbr.rel (0) target = $region53
    $region52: #{lenet_forward.1} parent=1 // pred_region
      %77 = dma.done [#allocation5], 20480
    $region53: #{lenet_forward.1} parent=1 // pred_fallthru
      _
    // Predicated region
    $region54: #{lenet_forward.1} parent=1 // pred_check
      _
    $region55: #{lenet_forward.1} parent=1 // pred_check_branch
      %79 = sbr.rel (0) target = $region57
    $region56: #{lenet_forward.1} parent=1 // pred_region
      %80 = dma.done [#allocation5], 12288
    $region57: #{lenet_forward.1} parent=1 // pred_fallthru
      _
    %v81 = vld [vmem:[%s0] sm:$0xff]
    %v82 = vld [vmem:[%s0 + $0x8] sm:$0xff]
    %v83 = vld [vmem:[%s0 + $0x10] sm:$0xff]
    %v84 = vld [vmem:[%s0 + $0x18] sm:$0xff]
    %v85 = vld [vmem:[%s0 + $0x20] sm:$0xf]
    %v86 = vld [vmem:[%s0 + $0x28] sm:$0xff]
    %v87 = vld [vmem:[%s0 + $0x30] sm:$0xff]
    %v88 = vld [vmem:[%s0 + $0x38] sm:$0xff]
    %v89 = vld [vmem:[%s0 + $0x40] sm:$0xff]
    %v90 = vld [vmem:[%s0 + $0x48] sm:$0xf]
    %v91 = vld [vmem:[%s0 + $0x50] sm:$0xff]
    %v92 = vld [vmem:[%s0 + $0x58] sm:$0xff]
    %v93 = vld [vmem:[%s0 + $0x60] sm:$0xff]
    %v94 = vld [vmem:[%s0 + $0x68] sm:$0xff]
    %v95 = vld [vmem:[%s0 + $0x70] sm:$0xf]
    %v96 = vld [vmem:[%s0 + $0x78] sm:$0xff]
    %v97 = vld [vmem:[%s0 + $0x80] sm:$0xff]
    %v98 = vld [vmem:[%s0 + $0x88] sm:$0xff]
    %v99 = vld [vmem:[%s0 + $0x90] sm:$0xff]
    %v100 = vld [vmem:[%s0 + $0x98] sm:$0xf]
    %v101 = vld [vmem:[%s0 + $0xa0] sm:$0xff]
    %v102 = vld [vmem:[%s0 + $0xa8] sm:$0xff]
    %v103 = vld [vmem:[%s0 + $0xb0] sm:$0xff]
    %v104 = vld [vmem:[%s0 + $0xb8] sm:$0xff]
    %v105 = vld [vmem:[%s0 + $0xc0] sm:$0xf]
    %v106 = vld [vmem:[%s0 + $0xc8] sm:$0xff]
    %v107 = vld [vmem:[%s0 + $0xd0] sm:$0xff]
    %v108 = vld [vmem:[%s0 + $0xd8] sm:$0xff]
    %v109 = vld [vmem:[%s0 + $0xe0] sm:$0xff]
    %v110 = vld [vmem:[%s0 + $0xe8] sm:$0xf]
    %v111 = vld [vmem:[%s0 + $0xf0] sm:$0xff]
    %v112 = vld [vmem:[%s0 + $0xf8] sm:$0xff]
    %v113 = vld [vmem:[%s0 + $0x100] sm:$0xff]
    %v114 = vld [vmem:[%s0 + $0x108] sm:$0xff]
    %v115 = vld [vmem:[%s0 + $0x110] sm:$0xf]
    %v116 = vld [vmem:[%s0 + $0x118] sm:$0xff]
    %v117 = vld [vmem:[%s0 + $0x120] sm:$0xff]
    %v118 = vld [vmem:[%s0 + $0x128] sm:$0xff]
    %v119 = vld [vmem:[%s0 + $0x130] sm:$0xff]
    %v120 = vld [vmem:[%s0 + $0x138] sm:$0xf]
    %vm161 = vcmask 1046528
    %v162 = vrot.slane %v81, 1
    %v163 = vrot.slane %v82, 1
    %v164 = vsel %vm161, %v162, %v163
    %v165 = vrot.slane %v83, 1
    %v166 = vsel %vm161, %v163, %v165
    %v167 = vrot.slane %v84, 1
    %v168 = vsel %vm161, %v165, %v167
    %v169 = vrot.slane %v85, 1
    %v170 = vsel %vm161, %v167, %v169
    %v171 = vrot.slane %v86, 1
    %v172 = vrot.slane %v87, 1
    %v173 = vsel %vm161, %v171, %v172
    %v174 = vrot.slane %v88, 1
    %v175 = vsel %vm161, %v172, %v174
    %v176 = vrot.slane %v89, 1
    %v177 = vsel %vm161, %v174, %v176
    %v178 = vrot.slane %v90, 1
    %v179 = vsel %vm161, %v176, %v178
    %v180 = vrot.slane %v91, 1
    %v181 = vrot.slane %v92, 1
    %v182 = vsel %vm161, %v180, %v181
    %v183 = vrot.slane %v93, 1
    %v184 = vsel %vm161, %v181, %v183
    %v185 = vrot.slane %v94, 1
    %v186 = vsel %vm161, %v183, %v185
    %v187 = vrot.slane %v95, 1
    %v188 = vsel %vm161, %v185, %v187
    %v189 = vrot.slane %v96, 1
    %v190 = vrot.slane %v97, 1
    %v191 = vsel %vm161, %v189, %v190
    %v192 = vrot.slane %v98, 1
    %v193 = vsel %vm161, %v190, %v192
    %v194 = vrot.slane %v99, 1
    %v195 = vsel %vm161, %v192, %v194
    %v196 = vrot.slane %v100, 1
    %v197 = vsel %vm161, %v194, %v196
    %v198 = vrot.slane %v101, 1
    %v199 = vrot.slane %v102, 1
    %v200 = vsel %vm161, %v198, %v199
    %v201 = vrot.slane %v103, 1
    %v202 = vsel %vm161, %v199, %v201
    %v203 = vrot.slane %v104, 1
    %v204 = vsel %vm161, %v201, %v203
    %v205 = vrot.slane %v105, 1
    %v206 = vsel %vm161, %v203, %v205
    %v207 = vrot.slane %v106, 1
    %v208 = vrot.slane %v107, 1
    %v209 = vsel %vm161, %v207, %v208
    %v210 = vrot.slane %v108, 1
    %v211 = vsel %vm161, %v208, %v210
    %v212 = vrot.slane %v109, 1
    %v213 = vsel %vm161, %v210, %v212
    %v214 = vrot.slane %v110, 1
    %v215 = vsel %vm161, %v212, %v214
    %v216 = vrot.slane %v111, 1
    %v217 = vrot.slane %v112, 1
    %v218 = vsel %vm161, %v216, %v217
    %v219 = vrot.slane %v113, 1
    %v220 = vsel %vm161, %v217, %v219
    %v221 = vrot.slane %v114, 1
    %v222 = vsel %vm161, %v219, %v221
    %v223 = vrot.slane %v115, 1
    %v224 = vsel %vm161, %v221, %v223
    %v225 = vrot.slane %v116, 1
    %v226 = vrot.slane %v117, 1
    %v227 = vsel %vm161, %v225, %v226
    %v228 = vrot.slane %v118, 1
    %v229 = vsel %vm161, %v226, %v228
    %v230 = vrot.slane %v119, 1
    %v231 = vsel %vm161, %v228, %v230
    %v232 = vrot.slane %v120, 1
    %v233 = vsel %vm161, %v230, %v232
    %vm266 = vcmask 1045504
    %v267 = vrot.slane %v81, 2
    %v268 = vrot.slane %v82, 2
    %v269 = vsel %vm266, %v267, %v268
    %v270 = vrot.slane %v83, 2
    %v271 = vsel %vm266, %v268, %v270
    %v272 = vrot.slane %v84, 2
    %v273 = vsel %vm266, %v270, %v272
    %v274 = vrot.slane %v85, 2
    %v275 = vsel %vm266, %v272, %v274
    %v276 = vrot.slane %v86, 2
    %v277 = vrot.slane %v87, 2
    %v278 = vsel %vm266, %v276, %v277
    %v279 = vrot.slane %v88, 2
    %v280 = vsel %vm266, %v277, %v279
    %v281 = vrot.slane %v89, 2
    %v282 = vsel %vm266, %v279, %v281
    %v283 = vrot.slane %v90, 2
    %v284 = vsel %vm266, %v281, %v283
    %v285 = vrot.slane %v91, 2
    %v286 = vrot.slane %v92, 2
    %v287 = vsel %vm266, %v285, %v286
    %v288 = vrot.slane %v93, 2
    %v289 = vsel %vm266, %v286, %v288
    %v290 = vrot.slane %v94, 2
    %v291 = vsel %vm266, %v288, %v290
    %v292 = vrot.slane %v95, 2
    %v293 = vsel %vm266, %v290, %v292
    %v294 = vrot.slane %v96, 2
    %v295 = vrot.slane %v97, 2
    %v296 = vsel %vm266, %v294, %v295
    %v297 = vrot.slane %v98, 2
    %v298 = vsel %vm266, %v295, %v297
    %v299 = vrot.slane %v99, 2
    %v300 = vsel %vm266, %v297, %v299
    %v301 = vrot.slane %v100, 2
    %v302 = vsel %vm266, %v299, %v301
    %v303 = vrot.slane %v101, 2
    %v304 = vrot.slane %v102, 2
    %v305 = vsel %vm266, %v303, %v304
    %v306 = vrot.slane %v103, 2
    %v307 = vsel %vm266, %v304, %v306
    %v308 = vrot.slane %v104, 2
    %v309 = vsel %vm266, %v306, %v308
    %v310 = vrot.slane %v105, 2
    %v311 = vsel %vm266, %v308, %v310
    %v312 = vrot.slane %v106, 2
    %v313 = vrot.slane %v107, 2
    %v314 = vsel %vm266, %v312, %v313
    %v315 = vrot.slane %v108, 2
    %v316 = vsel %vm266, %v313, %v315
    %v317 = vrot.slane %v109, 2
    %v318 = vsel %vm266, %v315, %v317
    %v319 = vrot.slane %v110, 2
    %v320 = vsel %vm266, %v317, %v319
    %v321 = vrot.slane %v111, 2
    %v322 = vrot.slane %v112, 2
    %v323 = vsel %vm266, %v321, %v322
    %v324 = vrot.slane %v113, 2
    %v325 = vsel %vm266, %v322, %v324
    %v326 = vrot.slane %v114, 2
    %v327 = vsel %vm266, %v324, %v326
    %v328 = vrot.slane %v115, 2
    %v329 = vsel %vm266, %v326, %v328
    %v330 = vrot.slane %v116, 2
    %v331 = vrot.slane %v117, 2
    %v332 = vsel %vm266, %v330, %v331
    %v333 = vrot.slane %v118, 2
    %v334 = vsel %vm266, %v331, %v333
    %v335 = vrot.slane %v119, 2
    %v336 = vsel %vm266, %v333, %v335
    %v337 = vrot.slane %v120, 2
    %v338 = vsel %vm266, %v335, %v337
    %vm371 = vcmask 1044480
    %v372 = vrot.slane %v81, 3
    %v373 = vrot.slane %v82, 3
    %v374 = vsel %vm371, %v372, %v373
    %v375 = vrot.slane %v83, 3
    %v376 = vsel %vm371, %v373, %v375
    %v377 = vrot.slane %v84, 3
    %v378 = vsel %vm371, %v375, %v377
    %v379 = vrot.slane %v85, 3
    %v380 = vsel %vm371, %v377, %v379
    %v381 = vrot.slane %v86, 3
    %v382 = vrot.slane %v87, 3
    %v383 = vsel %vm371, %v381, %v382
    %v384 = vrot.slane %v88, 3
    %v385 = vsel %vm371, %v382, %v384
    %v386 = vrot.slane %v89, 3
    %v387 = vsel %vm371, %v384, %v386
    %v388 = vrot.slane %v90, 3
    %v389 = vsel %vm371, %v386, %v388
    %v390 = vrot.slane %v91, 3
    %v391 = vrot.slane %v92, 3
    %v392 = vsel %vm371, %v390, %v391
    %v393 = vrot.slane %v93, 3
    %v394 = vsel %vm371, %v391, %v393
    %v395 = vrot.slane %v94, 3
    %v396 = vsel %vm371, %v393, %v395
    %v397 = vrot.slane %v95, 3
    %v398 = vsel %vm371, %v395, %v397
    %v399 = vrot.slane %v96, 3
    %v400 = vrot.slane %v97, 3
    %v401 = vsel %vm371, %v399, %v400
    %v402 = vrot.slane %v98, 3
    %v403 = vsel %vm371, %v400, %v402
    %v404 = vrot.slane %v99, 3
    %v405 = vsel %vm371, %v402, %v404
    %v406 = vrot.slane %v100, 3
    %v407 = vsel %vm371, %v404, %v406
    %v408 = vrot.slane %v101, 3
    %v409 = vrot.slane %v102, 3
    %v410 = vsel %vm371, %v408, %v409
    %v411 = vrot.slane %v103, 3
    %v412 = vsel %vm371, %v409, %v411
    %v413 = vrot.slane %v104, 3
    %v414 = vsel %vm371, %v411, %v413
    %v415 = vrot.slane %v105, 3
    %v416 = vsel %vm371, %v413, %v415
    %v417 = vrot.slane %v106, 3
    %v418 = vrot.slane %v107, 3
    %v419 = vsel %vm371, %v417, %v418
    %v420 = vrot.slane %v108, 3
    %v421 = vsel %vm371, %v418, %v420
    %v422 = vrot.slane %v109, 3
    %v423 = vsel %vm371, %v420, %v422
    %v424 = vrot.slane %v110, 3
    %v425 = vsel %vm371, %v422, %v424
    %v426 = vrot.slane %v111, 3
    %v427 = vrot.slane %v112, 3
    %v428 = vsel %vm371, %v426, %v427
    %v429 = vrot.slane %v113, 3
    %v430 = vsel %vm371, %v427, %v429
    %v431 = vrot.slane %v114, 3
    %v432 = vsel %vm371, %v429, %v431
    %v433 = vrot.slane %v115, 3
    %v434 = vsel %vm371, %v431, %v433
    %v435 = vrot.slane %v116, 3
    %v436 = vrot.slane %v117, 3
    %v437 = vsel %vm371, %v435, %v436
    %v438 = vrot.slane %v118, 3
    %v439 = vsel %vm371, %v436, %v438
    %v440 = vrot.slane %v119, 3
    %v441 = vsel %vm371, %v438, %v440
    %v442 = vrot.slane %v120, 3
    %v443 = vsel %vm371, %v440, %v442
    %vm476 = vcmask 1043456
    %v477 = vrot.slane %v81, 4
    %v478 = vrot.slane %v82, 4
    %v479 = vsel %vm476, %v477, %v478
    %v480 = vrot.slane %v83, 4
    %v481 = vsel %vm476, %v478, %v480
    %v482 = vrot.slane %v84, 4
    %v483 = vsel %vm476, %v480, %v482
    %v484 = vrot.slane %v85, 4
    %v485 = vsel %vm476, %v482, %v484
    %v486 = vrot.slane %v86, 4
    %v487 = vrot.slane %v87, 4
    %v488 = vsel %vm476, %v486, %v487
    %v489 = vrot.slane %v88, 4
    %v490 = vsel %vm476, %v487, %v489
    %v491 = vrot.slane %v89, 4
    %v492 = vsel %vm476, %v489, %v491
    %v493 = vrot.slane %v90, 4
    %v494 = vsel %vm476, %v491, %v493
    %v495 = vrot.slane %v91, 4
    %v496 = vrot.slane %v92, 4
    %v497 = vsel %vm476, %v495, %v496
    %v498 = vrot.slane %v93, 4
    %v499 = vsel %vm476, %v496, %v498
    %v500 = vrot.slane %v94, 4
    %v501 = vsel %vm476, %v498, %v500
    %v502 = vrot.slane %v95, 4
    %v503 = vsel %vm476, %v500, %v502
    %v504 = vrot.slane %v96, 4
    %v505 = vrot.slane %v97, 4
    %v506 = vsel %vm476, %v504, %v505
    %v507 = vrot.slane %v98, 4
    %v508 = vsel %vm476, %v505, %v507
    %v509 = vrot.slane %v99, 4
    %v510 = vsel %vm476, %v507, %v509
    %v511 = vrot.slane %v100, 4
    %v512 = vsel %vm476, %v509, %v511
    %v513 = vrot.slane %v101, 4
    %v514 = vrot.slane %v102, 4
    %v515 = vsel %vm476, %v513, %v514
    %v516 = vrot.slane %v103, 4
    %v517 = vsel %vm476, %v514, %v516
    %v518 = vrot.slane %v104, 4
    %v519 = vsel %vm476, %v516, %v518
    %v520 = vrot.slane %v105, 4
    %v521 = vsel %vm476, %v518, %v520
    %v522 = vrot.slane %v106, 4
    %v523 = vrot.slane %v107, 4
    %v524 = vsel %vm476, %v522, %v523
    %v525 = vrot.slane %v108, 4
    %v526 = vsel %vm476, %v523, %v525
    %v527 = vrot.slane %v109, 4
    %v528 = vsel %vm476, %v525, %v527
    %v529 = vrot.slane %v110, 4
    %v530 = vsel %vm476, %v527, %v529
    %v531 = vrot.slane %v111, 4
    %v532 = vrot.slane %v112, 4
    %v533 = vsel %vm476, %v531, %v532
    %v534 = vrot.slane %v113, 4
    %v535 = vsel %vm476, %v532, %v534
    %v536 = vrot.slane %v114, 4
    %v537 = vsel %vm476, %v534, %v536
    %v538 = vrot.slane %v115, 4
    %v539 = vsel %vm476, %v536, %v538
    %v540 = vrot.slane %v116, 4
    %v541 = vrot.slane %v117, 4
    %v542 = vsel %vm476, %v540, %v541
    %v543 = vrot.slane %v118, 4
    %v544 = vsel %vm476, %v541, %v543
    %v545 = vrot.slane %v119, 4
    %v546 = vsel %vm476, %v543, %v545
    %v547 = vrot.slane %v120, 4
    %v548 = vsel %vm476, %v545, %v547
    %v581 = vld [vmem:[#allocation2] sm:$0xff]
    %v582 = vld [vmem:[#allocation2 + $0x8] sm:$0xff]
    %v583 = vld [vmem:[#allocation2 + $0x10] sm:$0xff]
    %v584 = vld [vmem:[#allocation2 + $0x18] sm:$0xff]
    %v585 = vld [vmem:[#allocation2 + $0x20] sm:$0xff]
    %v586 = vld [vmem:[#allocation2 + $0x28] sm:$0xff]
    %v587 = vld [vmem:[#allocation2 + $0x30] sm:$0xff]
    %v588 = vld [vmem:[#allocation2 + $0x38] sm:$0xff]
    %v589 = vld [vmem:[#allocation2 + $0x40] sm:$0xff]
    %v590 = vld [vmem:[#allocation2 + $0x48] sm:$0xff]
    %v591 = vld [vmem:[#allocation2 + $0x50] sm:$0xff]
    %v592 = vld [vmem:[#allocation2 + $0x58] sm:$0xff]
    %v593 = vld [vmem:[#allocation2 + $0x60] sm:$0xff]
    %v594 = vld [vmem:[#allocation2 + $0x68] sm:$0xff]
    %v595 = vld [vmem:[#allocation2 + $0x70] sm:$0xff]
    %v596 = vld [vmem:[#allocation2 + $0x78] sm:$0xff]
    %v597 = vld [vmem:[#allocation2 + $0x80] sm:$0xff]
    %v598 = vld [vmem:[#allocation2 + $0x88] sm:$0xff]
    %v599 = vld [vmem:[#allocation2 + $0x90] sm:$0xff]
    %v600 = vld [vmem:[#allocation2 + $0x98] sm:$0xff]
    %v601 = vld [vmem:[#allocation2 + $0xa0] sm:$0xff]
    %v602 = vld [vmem:[#allocation2 + $0xa8] sm:$0xff]
    %v603 = vld [vmem:[#allocation2 + $0xb0] sm:$0xff]
    %v604 = vld [vmem:[#allocation2 + $0xb8] sm:$0xff]
    %v605 = vld [vmem:[#allocation2 + $0xc0] sm:$0xff]
    %v606 = vld [vmem:[#allocation2 + $0xc8] sm:$0xff]
    %v607 = vld [vmem:[#allocation2 + $0xd0] sm:$0xff]
    %v608 = vld [vmem:[#allocation2 + $0xd8] sm:$0xff]
    %v609 = vld [vmem:[#allocation2 + $0xe0] sm:$0xff]
    %v610 = vld [vmem:[#allocation2 + $0xe8] sm:$0xff]
    %v611 = vld [vmem:[#allocation2 + $0xf0] sm:$0xff]
    %v612 = vld [vmem:[#allocation2 + $0xf8] sm:$0xff]
    %v613 = vld [vmem:[#allocation2 + $0x100] sm:$0xff]
    %v614 = vld [vmem:[#allocation2 + $0x108] sm:$0xff]
    %v615 = vld [vmem:[#allocation2 + $0x110] sm:$0xff]
    %v616 = vld [vmem:[#allocation2 + $0x118] sm:$0xff]
    %v617 = vld [vmem:[#allocation2 + $0x120] sm:$0xff]
    %v618 = vld [vmem:[#allocation2 + $0x128] sm:$0xff]
    %v619 = vld [vmem:[#allocation2 + $0x130] sm:$0xff]
    %v620 = vld [vmem:[#allocation2 + $0x138] sm:$0xff]
    %v621 = vld [vmem:[#allocation2 + $0x140] sm:$0xff]
    %v622 = vld [vmem:[#allocation2 + $0x148] sm:$0xff]
    %v623 = vld [vmem:[#allocation2 + $0x150] sm:$0xff]
    %v624 = vld [vmem:[#allocation2 + $0x158] sm:$0xff]
    %v625 = vld [vmem:[#allocation2 + $0x160] sm:$0xff]
    %v626 = vld [vmem:[#allocation2 + $0x168] sm:$0xff]
    %v627 = vld [vmem:[#allocation2 + $0x170] sm:$0xff]
    %v628 = vld [vmem:[#allocation2 + $0x178] sm:$0xff]
    %v629 = vld [vmem:[#allocation2 + $0x180] sm:$0xff]
    %v630 = vld [vmem:[#allocation2 + $0x188] sm:$0xff]
    %v631 = vld [vmem:[#allocation2 + $0x190] sm:$0xff]
    %v632 = vld [vmem:[#allocation2 + $0x198] sm:$0xff]
    %v633 = vld [vmem:[#allocation2 + $0x1a0] sm:$0xff]
    %v634 = vld [vmem:[#allocation2 + $0x1a8] sm:$0xff]
    %v635 = vld [vmem:[#allocation2 + $0x1b0] sm:$0xff]
    %v636 = vld [vmem:[#allocation2 + $0x1b8] sm:$0xff]
    %v637 = vld [vmem:[#allocation2 + $0x1c0] sm:$0xff]
    %v638 = vld [vmem:[#allocation2 + $0x1c8] sm:$0xff]
    %v639 = vld [vmem:[#allocation2 + $0x1d0] sm:$0xff]
    %v640 = vld [vmem:[#allocation2 + $0x1d8] sm:$0xff]
    %v641 = vld [vmem:[#allocation2 + $0x1e0] sm:$0xff]
    %v642 = vld [vmem:[#allocation2 + $0x1e8] sm:$0xff]
    %v643 = vld [vmem:[#allocation2 + $0x1f0] sm:$0xff]
    %v644 = vld [vmem:[#allocation2 + $0x1f8] sm:$0xff]
    %v645 = vld [vmem:[#allocation2 + $0x200] sm:$0xff]
    %v646 = vld [vmem:[#allocation2 + $0x208] sm:$0xff]
    %v647 = vld [vmem:[#allocation2 + $0x210] sm:$0xff]
    %v648 = vld [vmem:[#allocation2 + $0x218] sm:$0xff]
    %v649 = vld [vmem:[#allocation2 + $0x220] sm:$0xff]
    %v650 = vld [vmem:[#allocation2 + $0x228] sm:$0xff]
    %v651 = vld [vmem:[#allocation2 + $0x230] sm:$0xff]
    %v652 = vld [vmem:[#allocation2 + $0x238] sm:$0xff]
    %v653 = vld [vmem:[#allocation2 + $0x240] sm:$0xff]
    %v654 = vld [vmem:[#allocation2 + $0x248] sm:$0xff]
    %v655 = vld [vmem:[#allocation2 + $0x250] sm:$0xff]
    %v656 = vld [vmem:[#allocation2 + $0x258] sm:$0xff]
    %v657 = vld [vmem:[#allocation2 + $0x260] sm:$0xff]
    %v658 = vld [vmem:[#allocation2 + $0x268] sm:$0xff]
    %v659 = vld [vmem:[#allocation2 + $0x270] sm:$0xff]
    %v660 = vld [vmem:[#allocation2 + $0x278] sm:$0xff]
    %v661 = vld [vmem:[#allocation2 + $0x280] sm:$0xff]
    %v662 = vld [vmem:[#allocation2 + $0x288] sm:$0xff]
    %v663 = vld [vmem:[#allocation2 + $0x290] sm:$0xff]
    %v664 = vld [vmem:[#allocation2 + $0x298] sm:$0xff]
    %v665 = vld [vmem:[#allocation2 + $0x2a0] sm:$0xff]
    %v666 = vld [vmem:[#allocation2 + $0x2a8] sm:$0xff]
    %v667 = vld [vmem:[#allocation2 + $0x2b0] sm:$0xff]
    %v668 = vld [vmem:[#allocation2 + $0x2b8] sm:$0xff]
    %v669 = vld [vmem:[#allocation2 + $0x2c0] sm:$0xff]
    %v670 = vld [vmem:[#allocation2 + $0x2c8] sm:$0xff]
    %v671 = vld [vmem:[#allocation2 + $0x2d0] sm:$0xff]
    %v672 = vld [vmem:[#allocation2 + $0x2d8] sm:$0xff]
    %v673 = vld [vmem:[#allocation2 + $0x2e0] sm:$0xff]
    %v674 = vld [vmem:[#allocation2 + $0x2e8] sm:$0xff]
    %v675 = vld [vmem:[#allocation2 + $0x2f0] sm:$0xff]
    %v676 = vld [vmem:[#allocation2 + $0x2f8] sm:$0xff]
    %v677 = vld [vmem:[#allocation2 + $0x300] sm:$0xff]
    %v678 = vld [vmem:[#allocation2 + $0x308] sm:$0xff]
    %v679 = vld [vmem:[#allocation2 + $0x310] sm:$0xff]
    %v680 = vld [vmem:[#allocation2 + $0x318] sm:$0xff]
    %v681 = vld [vmem:[#allocation2 + $0x320] sm:$0xff]
    %v682 = vld [vmem:[#allocation2 + $0x328] sm:$0xff]
    %v683 = vld [vmem:[#allocation2 + $0x330] sm:$0xff]
    %v684 = vld [vmem:[#allocation2 + $0x338] sm:$0xff]
    %v685 = vld [vmem:[#allocation2 + $0x340] sm:$0xff]
    %v686 = vld [vmem:[#allocation2 + $0x348] sm:$0xff]
    %v687 = vld [vmem:[#allocation2 + $0x350] sm:$0xff]
    %v688 = vld [vmem:[#allocation2 + $0x358] sm:$0xff]
    %v689 = vld [vmem:[#allocation2 + $0x360] sm:$0xff]
    %v690 = vld [vmem:[#allocation2 + $0x368] sm:$0xff]
    %v691 = vld [vmem:[#allocation2 + $0x370] sm:$0xff]
    %v692 = vld [vmem:[#allocation2 + $0x378] sm:$0xff]
    %v693 = vld [vmem:[#allocation2 + $0x380] sm:$0xff]
    %v694 = vld [vmem:[#allocation2 + $0x388] sm:$0xff]
    %v695 = vld [vmem:[#allocation2 + $0x390] sm:$0xff]
    %v696 = vld [vmem:[#allocation2 + $0x398] sm:$0xff]
    %v697 = vld [vmem:[#allocation2 + $0x3a0] sm:$0xff]
    %v698 = vld [vmem:[#allocation2 + $0x3a8] sm:$0xff]
    %v699 = vld [vmem:[#allocation2 + $0x3b0] sm:$0xff]
    %v700 = vld [vmem:[#allocation2 + $0x3b8] sm:$0xff]
    %v701 = vld [vmem:[#allocation2 + $0x3c0] sm:$0xff]
    %v702 = vld [vmem:[#allocation2 + $0x3c8] sm:$0xff]
    %v703 = vld [vmem:[#allocation2 + $0x3d0] sm:$0xff]
    %v704 = vld [vmem:[#allocation2 + $0x3d8] sm:$0xff]
    %v705 = vld [vmem:[#allocation2 + $0x3e0] sm:$0xff]
    %v706 = vld [vmem:[#allocation2 + $0x3e8] sm:$0xff]
    %v707 = vld [vmem:[#allocation2 + $0x3f0] sm:$0xff]
    %v708 = vld [vmem:[#allocation2 + $0x3f8] sm:$0xff]
    %v709 = vld [vmem:[#allocation2 + $0x400] sm:$0xff]
    %v710 = vld [vmem:[#allocation2 + $0x408] sm:$0xff]
    %v711 = vld [vmem:[#allocation2 + $0x410] sm:$0xff]
    %v712 = vld [vmem:[#allocation2 + $0x418] sm:$0xff]
    %v713 = vld [vmem:[#allocation2 + $0x420] sm:$0xff]
    %v714 = vld [vmem:[#allocation2 + $0x428] sm:$0xff]
    %v715 = vld [vmem:[#allocation2 + $0x430] sm:$0xff]
    %v716 = vld [vmem:[#allocation2 + $0x438] sm:$0xff]
    %v717 = vld [vmem:[#allocation2 + $0x440] sm:$0xff]
    %v718 = vld [vmem:[#allocation2 + $0x448] sm:$0xff]
    %v719 = vld [vmem:[#allocation2 + $0x450] sm:$0xff]
    %v720 = vld [vmem:[#allocation2 + $0x458] sm:$0xff]
    %v721 = vld [vmem:[#allocation2 + $0x460] sm:$0xff]
    %v722 = vld [vmem:[#allocation2 + $0x468] sm:$0xff]
    %v723 = vld [vmem:[#allocation2 + $0x470] sm:$0xff]
    %v724 = vld [vmem:[#allocation2 + $0x478] sm:$0xff]
    %v725 = vld [vmem:[#allocation2 + $0x480] sm:$0xff]
    %v726 = vld [vmem:[#allocation2 + $0x488] sm:$0xff]
    %v727 = vld [vmem:[#allocation2 + $0x490] sm:$0xff]
    %v728 = vld [vmem:[#allocation2 + $0x498] sm:$0xff]
    %v729 = vld [vmem:[#allocation2 + $0x4a0] sm:$0xff]
    %v730 = vld [vmem:[#allocation2 + $0x4a8] sm:$0xff]
    %v731 = vld [vmem:[#allocation2 + $0x4b0] sm:$0xff]
    %v732 = vld [vmem:[#allocation2 + $0x4b8] sm:$0xff]
    %v733 = vld [vmem:[#allocation2 + $0x4c0] sm:$0xff]
    %v734 = vld [vmem:[#allocation2 + $0x4c8] sm:$0xff]
    %v735 = vld [vmem:[#allocation2 + $0x4d0] sm:$0xff]
    %v736 = vld [vmem:[#allocation2 + $0x4d8] sm:$0xff]
    %v737 = vld [vmem:[#allocation2 + $0x4e0] sm:$0xff]
    %v738 = vld [vmem:[#allocation2 + $0x4e8] sm:$0xff]
    %v739 = vld [vmem:[#allocation2 + $0x4f0] sm:$0xff]
    %v740 = vld [vmem:[#allocation2 + $0x4f8] sm:$0xff]
    %v741 = vld [vmem:[%s2] sm:$0x3]
    %v743 = vlaneseq
    %v744 = vshrl.u32 %v743, 7
    %v745 = vsub.s32 0, %v744
    %v746 = vrot.slane %v741, %v745
    %v747 = vlaneseq
    %v748 = vshrl.u32 %v747, 7
    %v749 = vsub.s32 1, %v748
    %v750 = vrot.slane %v741, %v749
    %753 = vmatprep.subr.mxu0 %v582
    %754 = vmatpush1.msra.mxu0 %v581
    %755 = vmatprep.subr.mxu0 %v584
    %756 = vmatpush1.msra.mxu0 %v583
    %757 = vmatprep.subr.mxu0 %v586
    %758 = vmatpush1.msra.mxu0 %v585
    %759 = vmatprep.subr.mxu0 %v588
    %760 = vmatpush1.msra.mxu0 %v587
    %761 = vmatprep.subr.mxu0 %v590
    %762 = vmatpush1.msra.mxu0 %v589
    %763 = vmatprep.subr.mxu0 %v592
    %764 = vmatpush1.msra.mxu0 %v591
    %765 = vmatprep.subr.mxu0 %v594
    %766 = vmatpush1.msra.mxu0 %v593
    %767 = vmatprep.subr.mxu0 %v596
    %768 = vmatpush1.msra.mxu0 %v595
    %769 = vmatprep.subr.mxu0 %v598
    %770 = vmatpush1.msra.mxu0 %v597
    %771 = vmatprep.subr.mxu0 %v600
    %772 = vmatpush1.msra.mxu0 %v599
    %773 = vmatprep.subr.mxu0 %v602
    %774 = vmatpush1.msra.mxu0 %v601
    %775 = vmatprep.subr.mxu0 %v604
    %776 = vmatpush1.msra.mxu0 %v603
    %777 = vmatprep.subr.mxu0 %v606
    %778 = vmatpush1.msra.mxu0 %v605
    %779 = vmatprep.subr.mxu0 %v608
    %780 = vmatpush1.msra.mxu0 %v607
    %781 = vmatprep.subr.mxu0 %v610
    %782 = vmatpush1.msra.mxu0 %v609
    %783 = vmatprep.subr.mxu0 %v612
    %784 = vmatpush1.msra.mxu0 %v611
    %785 = vmatprep.subr.mxu0 %v614
    %786 = vmatpush1.msra.mxu0 %v613
    %787 = vmatprep.subr.mxu0 %v616
    %788 = vmatpush1.msra.mxu0 %v615
    %789 = vmatprep.subr.mxu0 %v618
    %790 = vmatpush1.msra.mxu0 %v617
    %791 = vmatprep.subr.mxu0 %v620
    %792 = vmatpush1.msra.mxu0 %v619
    %793 = vmatprep.subr.mxu0 %v622
    %794 = vmatpush1.msra.mxu0 %v621
    %795 = vmatprep.subr.mxu0 %v624
    %796 = vmatpush1.msra.mxu0 %v623
    %797 = vmatprep.subr.mxu0 %v626
    %798 = vmatpush1.msra.mxu0 %v625
    %799 = vmatprep.subr.mxu0 %v628
    %800 = vmatpush1.msra.mxu0 %v627
    %801 = vmatprep.subr.mxu0 %v630
    %802 = vmatpush1.msra.mxu0 %v629
    %803 = vmatprep.subr.mxu0 %v632
    %804 = vmatpush1.msra.mxu0 %v631
    %805 = vmatprep.subr.mxu0 %v634
    %806 = vmatpush1.msra.mxu0 %v633
    %807 = vmatprep.subr.mxu0 %v636
    %808 = vmatpush1.msra.mxu0 %v635
    %809 = vmatprep.subr.mxu0 %v638
    %810 = vmatpush1.msra.mxu0 %v637
    %811 = vmatprep.subr.mxu0 %v640
    %812 = vmatpush1.msra.mxu0 %v639
    %813 = vmatprep.subr.mxu0 %v642
    %814 = vmatpush1.msra.mxu0 %v641
    %815 = vmatprep.subr.mxu0 %v644
    %816 = vmatpush1.msra.mxu0 %v643
    %817 = vmatprep.mubr.f32.mxu0 %v164
    %818 = vmatmul.mubr.f32.gmra.mrb[0].mxu0 %v81
    %v819 = vpop.f32.mrb[0].mxu0
    %v820 = vadd.f32 %v746, %v819
    %v821 = vpop.f32.mrb[0].mxu0
    %v822 = vadd.f32 %v750, %v821
    %823 = vmatprep.mubr.f32.mxu0 %v166
    %824 = vmatmul.mubr.f32.gmra.mrb[0].mxu0 %v82
    %v825 = vpop.f32.mrb[0].mxu0
    %v826 = vadd.f32 %v746, %v825
    %v827 = vpop.f32.mrb[0].mxu0
    %v828 = vadd.f32 %v750, %v827
    %829 = vmatprep.mubr.f32.mxu0 %v168
    %830 = vmatmul.mubr.f32.gmra.mrb[0].mxu0 %v83
    %v831 = vpop.f32.mrb[0].mxu0
    %v832 = vadd.f32 %v746, %v831
    %v833 = vpop.f32.mrb[0].mxu0
    %v834 = vadd.f32 %v750, %v833
    %835 = vmatprep.mubr.f32.mxu0 %v170
    %836 = vmatmul.mubr.f32.gmra.mrb[0].mxu0 %v84
    %v837 = vpop.f32.mrb[0].mxu0
    %v838 = vadd.f32 %v746, %v837
    %v839 = vpop.f32.mrb[0].mxu0
    %v840 = vadd.f32 %v750, %v839
    %841 = vmatprep.mubr.f32.mxu0 %v173
    %842 = vmatmul.mubr.f32.gmra.mrb[0].mxu0 %v86
    %v843 = vpop.f32.mrb[0].mxu0
    %v844 = vadd.f32 %v746, %v843
    %v845 = vpop.f32.mrb[0].mxu0
    %v846 = vadd.f32 %v750, %v845
    %847 = vmatprep.mubr.f32.mxu0 %v175
    %848 = vmatmul.mubr.f32.gmra.mrb[0].mxu0 %v87
    %v849 = vpop.f32.mrb[0].mxu0
    %v850 = vadd.f32 %v746, %v849
    %v851 = vpop.f32.mrb[0].mxu0
    %v852 = vadd.f32 %v750, %v851
    %853 = vmatprep.mubr.f32.mxu0 %v177
    %854 = vmatmul.mubr.f32.gmra.mrb[0].mxu0 %v88
    %v855 = vpop.f32.mrb[0].mxu0
    %v856 = vadd.f32 %v746, %v855
    %v857 = vpop.f32.mrb[0].mxu0
    %v858 = vadd.f32 %v750, %v857
    %859 = vmatprep.mubr.f32.mxu0 %v179
    %860 = vmatmul.mubr.f32.gmra.mrb[0].mxu0 %v89
    %v861 = vpop.f32.mrb[0].mxu0
    %v862 = vadd.f32 %v746, %v861
    %v863 = vpop.f32.mrb[0].mxu0
    %v864 = vadd.f32 %v750, %v863
    %865 = vmatprep.mubr.f32.mxu0 %v182
    %866 = vmatmul.mubr.f32.gmra.mrb[0].mxu0 %v91
    %v867 = vpop.f32.mrb[0].mxu0
    %v868 = vadd.f32 %v746, %v867
    %v869 = vpop.f32.mrb[0].mxu0
    %v870 = vadd.f32 %v750, %v869
    %871 = vmatprep.mubr.f32.mxu0 %v184
    %872 = vmatmul.mubr.f32.gmra.mrb[0].mxu0 %v92
    %v873 = vpop.f32.mrb[0].mxu0
    %v874 = vadd.f32 %v746, %v873
    %v875 = vpop.f32.mrb[0].mxu0
    %v876 = vadd.f32 %v750, %v875
    %877 = vmatprep.mubr.f32.mxu0 %v186
    %878 = vmatmul.mubr.f32.gmra.mrb[0].mxu0 %v93
    %v879 = vpop.f32.mrb[0].mxu0
    %v880 = vadd.f32 %v746, %v879
    %v881 = vpop.f32.mrb[0].mxu0
    %v882 = vadd.f32 %v750, %v881
    %883 = vmatprep.mubr.f32.mxu0 %v188
    %884 = vmatmul.mubr.f32.gmra.mrb[0].mxu0 %v94
    %v885 = vpop.f32.mrb[0].mxu0
    %v886 = vadd.f32 %v746, %v885
    %v887 = vpop.f32.mrb[0].mxu0
    %v888 = vadd.f32 %v750, %v887
    %889 = vmatprep.mubr.f32.mxu0 %v191
    %890 = vmatmul.mubr.f32.gmra.mrb[0].mxu0 %v96
    %v891 = vpop.f32.mrb[0].mxu0
    %v892 = vadd.f32 %v746, %v891
    %v893 = vpop.f32.mrb[0].mxu0
    %v894 = vadd.f32 %v750, %v893
    %895 = vmatprep.mubr.f32.mxu0 %v193
    %896 = vmatmul.mubr.f32.gmra.mrb[0].mxu0 %v97
    %v897 = vpop.f32.mrb[0].mxu0
    %v898 = vadd.f32 %v746, %v897
    %v899 = vpop.f32.mrb[0].mxu0
    %v900 = vadd.f32 %v750, %v899
    %901 = vmatprep.mubr.f32.mxu0 %v195
    %902 = vmatmul.mubr.f32.gmra.mrb[0].mxu0 %v98
    %v903 = vpop.f32.mrb[0].mxu0
    %v904 = vadd.f32 %v746, %v903
    %v905 = vpop.f32.mrb[0].mxu0
    %v906 = vadd.f32 %v750, %v905
    %907 = vmatprep.mubr.f32.mxu0 %v197
    %908 = vmatmul.mubr.f32.gmra.mrb[0].mxu0 %v99
    %v909 = vpop.f32.mrb[0].mxu0
    %v910 = vadd.f32 %v746, %v909
    %v911 = vpop.f32.mrb[0].mxu0
    %v912 = vadd.f32 %v750, %v911
    %913 = vmatprep.mubr.f32.mxu0 %v200
    %914 = vmatmul.mubr.f32.gmra.mrb[0].mxu0 %v101
    %v915 = vpop.f32.mrb[0].mxu0
    %v916 = vadd.f32 %v746, %v915
    %v917 = vpop.f32.mrb[0].mxu0
    %v918 = vadd.f32 %v750, %v917
    %919 = vmatprep.mubr.f32.mxu0 %v202
    %920 = vmatmul.mubr.f32.gmra.mrb[0].mxu0 %v102
    %v921 = vpop.f32.mrb[0].mxu0
    %v922 = vadd.f32 %v746, %v921
    %v923 = vpop.f32.mrb[0].mxu0
    %v924 = vadd.f32 %v750, %v923
    %925 = vmatprep.mubr.f32.mxu0 %v204
    %926 = vmatmul.mubr.f32.gmra.mrb[0].mxu0 %v103
    %v927 = vpop.f32.mrb[0].mxu0
    %v928 = vadd.f32 %v746, %v927
    %v929 = vpop.f32.mrb[0].mxu0
    %v930 = vadd.f32 %v750, %v929
    %931 = vmatprep.mubr.f32.mxu0 %v206
    %932 = vmatmul.mubr.f32.gmra.mrb[0].mxu0 %v104
    %v933 = vpop.f32.mrb[0].mxu0
    %v934 = vadd.f32 %v746, %v933
    %v935 = vpop.f32.mrb[0].mxu0
    %v936 = vadd.f32 %v750, %v935
    %937 = vmatprep.mubr.f32.mxu0 %v209
    %938 = vmatmul.mubr.f32.gmra.mrb[0].mxu0 %v106
    %v939 = vpop.f32.mrb[0].mxu0
    %v940 = vadd.f32 %v746, %v939
    %v941 = vpop.f32.mrb[0].mxu0
    %v942 = vadd.f32 %v750, %v941
    %943 = vmatprep.mubr.f32.mxu0 %v211
    %944 = vmatmul.mubr.f32.gmra.mrb[0].mxu0 %v107
    %v945 = vpop.f32.mrb[0].mxu0
    %v946 = vadd.f32 %v746, %v945
    %v947 = vpop.f32.mrb[0].mxu0
    %v948 = vadd.f32 %v750, %v947
    %949 = vmatprep.mubr.f32.mxu0 %v213
    %950 = vmatmul.mubr.f32.gmra.mrb[0].mxu0 %v108
    %v951 = vpop.f32.mrb[0].mxu0
    %v952 = vadd.f32 %v746, %v951
    %v953 = vpop.f32.mrb[0].mxu0
    %v954 = vadd.f32 %v750, %v953
    %955 = vmatprep.mubr.f32.mxu0 %v215
    %956 = vmatmul.mubr.f32.gmra.mrb[0].mxu0 %v109
    %v957 = vpop.f32.mrb[0].mxu0
    %v958 = vadd.f32 %v746, %v957
    %v959 = vpop.f32.mrb[0].mxu0
    %v960 = vadd.f32 %v750, %v959
    %961 = vmatprep.mubr.f32.mxu0 %v218
    %962 = vmatmul.mubr.f32.gmra.mrb[0].mxu0 %v111
    %v963 = vpop.f32.mrb[0].mxu0
    %v964 = vadd.f32 %v746, %v963
    %v965 = vpop.f32.mrb[0].mxu0
    %v966 = vadd.f32 %v750, %v965
    %967 = vmatprep.mubr.f32.mxu0 %v220
    %968 = vmatmul.mubr.f32.gmra.mrb[0].mxu0 %v112
    %v969 = vpop.f32.mrb[0].mxu0
    %v970 = vadd.f32 %v746, %v969
    %v971 = vpop.f32.mrb[0].mxu0
    %v972 = vadd.f32 %v750, %v971
    %973 = vmatprep.mubr.f32.mxu0 %v222
    %974 = vmatmul.mubr.f32.gmra.mrb[0].mxu0 %v113
    %v975 = vpop.f32.mrb[0].mxu0
    %v976 = vadd.f32 %v746, %v975
    %v977 = vpop.f32.mrb[0].mxu0
    %v978 = vadd.f32 %v750, %v977
    %979 = vmatprep.mubr.f32.mxu0 %v224
    %980 = vmatmul.mubr.f32.gmra.mrb[0].mxu0 %v114
    %v981 = vpop.f32.mrb[0].mxu0
    %v982 = vadd.f32 %v746, %v981
    %v983 = vpop.f32.mrb[0].mxu0
    %v984 = vadd.f32 %v750, %v983
    %985 = vmatprep.mubr.f32.mxu0 %v227
    %986 = vmatmul.mubr.f32.gmra.mrb[0].mxu0 %v116
    %v987 = vpop.f32.mrb[0].mxu0
    %v988 = vadd.f32 %v746, %v987
    %v989 = vpop.f32.mrb[0].mxu0
    %v990 = vadd.f32 %v750, %v989
    %991 = vmatprep.mubr.f32.mxu0 %v229
    %992 = vmatmul.mubr.f32.gmra.mrb[0].mxu0 %v117
    %v993 = vpop.f32.mrb[0].mxu0
    %v994 = vadd.f32 %v746, %v993
    %v995 = vpop.f32.mrb[0].mxu0
    %v996 = vadd.f32 %v750, %v995
    %997 = vmatprep.mubr.f32.mxu0 %v231
    %998 = vmatmul.mubr.f32.gmra.mrb[0].mxu0 %v118
    %v999 = vpop.f32.mrb[0].mxu0
    %v1000 = vadd.f32 %v746, %v999
    %v1001 = vpop.f32.mrb[0].mxu0
    %v1002 = vadd.f32 %v750, %v1001
    %1003 = vmatprep.mubr.f32.mxu0 %v233
    %1004 = vmatmul.mubr.f32.gmra.mrb[0].mxu0 %v119
    %v1005 = vpop.f32.mrb[0].mxu0
    %v1006 = vadd.f32 %v746, %v1005
    %v1007 = vpop.f32.mrb[0].mxu0
    %v1008 = vadd.f32 %v750, %v1007
    %1009 = vdwg.mxu0
    %1010 = vmatprep.subr.mxu0 %v646
    %1011 = vmatpush1.msra.mxu0 %v645
    %1012 = vmatprep.subr.mxu0 %v648
    %1013 = vmatpush1.msra.mxu0 %v647
    %1014 = vmatprep.subr.mxu0 %v650
    %1015 = vmatpush1.msra.mxu0 %v649
    %1016 = vmatprep.subr.mxu0 %v652
    %1017 = vmatpush1.msra.mxu0 %v651
    %1018 = vmatprep.subr.mxu0 %v654
    %1019 = vmatpush1.msra.mxu0 %v653
    %1020 = vmatprep.subr.mxu0 %v656
    %1021 = vmatpush1.msra.mxu0 %v655
    %1022 = vmatprep.subr.mxu0 %v658
    %1023 = vmatpush1.msra.mxu0 %v657
    %1024 = vmatprep.subr.mxu0 %v660
    %1025 = vmatpush1.msra.mxu0 %v659
    %1026 = vmatprep.subr.mxu0 %v662
    %1027 = vmatpush1.msra.mxu0 %v661
    %1028 = vmatprep.subr.mxu0 %v664
    %1029 = vmatpush1.msra.mxu0 %v663
    %1030 = vmatprep.subr.mxu0 %v666
    %1031 = vmatpush1.msra.mxu0 %v665
    %1032 = vmatprep.subr.mxu0 %v668
    %1033 = vmatpush1.msra.mxu0 %v667
    %1034 = vmatprep.subr.mxu0 %v670
    %1035 = vmatpush1.msra.mxu0 %v669
    %1036 = vmatprep.subr.mxu0 %v672
    %1037 = vmatpush1.msra.mxu0 %v671
    %1038 = vmatprep.subr.mxu0 %v674
    %1039 = vmatpush1.msra.mxu0 %v673
    %1040 = vmatprep.subr.mxu0 %v676
    %1041 = vmatpush1.msra.mxu0 %v675
    %1042 = vmatprep.subr.mxu0 %v678
    %1043 = vmatpush1.msra.mxu0 %v677
    %1044 = vmatprep.subr.mxu0 %v680
    %1045 = vmatpush1.msra.mxu0 %v679
    %1046 = vmatprep.subr.mxu0 %v682
    %1047 = vmatpush1.msra.mxu0 %v681
    %1048 = vmatprep.subr.mxu0 %v684
    %1049 = vmatpush1.msra.mxu0 %v683
    %1050 = vmatprep.subr.mxu0 %v686
    %1051 = vmatpush1.msra.mxu0 %v685
    %1052 = vmatprep.subr.mxu0 %v688
    %1053 = vmatpush1.msra.mxu0 %v687
    %1054 = vmatprep.subr.mxu0 %v690
    %1055 = vmatpush1.msra.mxu0 %v689
    %1056 = vmatprep.subr.mxu0 %v692
    %1057 = vmatpush1.msra.mxu0 %v691
    %1058 = vmatprep.subr.mxu0 %v694
    %1059 = vmatpush1.msra.mxu0 %v693
    %1060 = vmatprep.subr.mxu0 %v696
    %1061 = vmatpush1.msra.mxu0 %v695
    %1062 = vmatprep.subr.mxu0 %v698
    %1063 = vmatpush1.msra.mxu0 %v697
    %1064 = vmatprep.subr.mxu0 %v700
    %1065 = vmatpush1.msra.mxu0 %v699
    %1066 = vmatprep.subr.mxu0 %v702
    %1067 = vmatpush1.msra.mxu0 %v701
    %1068 = vmatprep.subr.mxu0 %v704
    %1069 = vmatpush1.msra.mxu0 %v703
    %1070 = vmatprep.subr.mxu0 %v706
    %1071 = vmatpush1.msra.mxu0 %v705
    %1072 = vmatprep.subr.mxu0 %v708
    %1073 = vmatpush1.msra.mxu0 %v707
    %1074 = vmatprep.mubr.f32.mxu0 %v374
    %1075 = vmatmul.mubr.f32.gmra.mrb[0].mxu0 %v269
    %v1076 = vpop.f32.mrb[0].mxu0
    %v1077 = vadd.f32 %v820, %v1076
    %v1078 = vpop.f32.mrb[0].mxu0
    %v1079 = vadd.f32 %v822, %v1078
    %1080 = vmatprep.mubr.f32.mxu0 %v376
    %1081 = vmatmul.mubr.f32.gmra.mrb[0].mxu0 %v271
    %v1082 = vpop.f32.mrb[0].mxu0
    %v1083 = vadd.f32 %v826, %v1082
    %v1084 = vpop.f32.mrb[0].mxu0
    %v1085 = vadd.f32 %v828, %v1084
    %1086 = vmatprep.mubr.f32.mxu0 %v378
    %1087 = vmatmul.mubr.f32.gmra.mrb[0].mxu0 %v273
    %v1088 = vpop.f32.mrb[0].mxu0
    %v1089 = vadd.f32 %v832, %v1088
    %v1090 = vpop.f32.mrb[0].mxu0
    %v1091 = vadd.f32 %v834, %v1090
    %1092 = vmatprep.mubr.f32.mxu0 %v380
    %1093 = vmatmul.mubr.f32.gmra.mrb[0].mxu0 %v275
    %v1094 = vpop.f32.mrb[0].mxu0
    %v1095 = vadd.f32 %v838, %v1094
    %v1096 = vpop.f32.mrb[0].mxu0
    %v1097 = vadd.f32 %v840, %v1096
    %1098 = vmatprep.mubr.f32.mxu0 %v383
    %1099 = vmatmul.mubr.f32.gmra.mrb[0].mxu0 %v278
    %v1100 = vpop.f32.mrb[0].mxu0
    %v1101 = vadd.f32 %v844, %v1100
    %v1102 = vpop.f32.mrb[0].mxu0
    %v1103 = vadd.f32 %v846, %v1102
    %1104 = vmatprep.mubr.f32.mxu0 %v385
    %1105 = vmatmul.mubr.f32.gmra.mrb[0].mxu0 %v280
    %v1106 = vpop.f32.mrb[0].mxu0
    %v1107 = vadd.f32 %v850, %v1106
    %v1108 = vpop.f32.mrb[0].mxu0
    %v1109 = vadd.f32 %v852, %v1108
    %1110 = vmatprep.mubr.f32.mxu0 %v387
    %1111 = vmatmul.mubr.f32.gmra.mrb[0].mxu0 %v282
    %v1112 = vpop.f32.mrb[0].mxu0
    %v1113 = vadd.f32 %v856, %v1112
    %v1114 = vpop.f32.mrb[0].mxu0
    %v1115 = vadd.f32 %v858, %v1114
    %1116 = vmatprep.mubr.f32.mxu0 %v389
    %1117 = vmatmul.mubr.f32.gmra.mrb[0].mxu0 %v284
    %v1118 = vpop.f32.mrb[0].mxu0
    %v1119 = vadd.f32 %v862, %v1118
    %v1120 = vpop.f32.mrb[0].mxu0
    %v1121 = vadd.f32 %v864, %v1120
    %1122 = vmatprep.mubr.f32.mxu0 %v392
    %1123 = vmatmul.mubr.f32.gmra.mrb[0].mxu0 %v287
    %v1124 = vpop.f32.mrb[0].mxu0
    %v1125 = vadd.f32 %v868, %v1124
    %v1126 = vpop.f32.mrb[0].mxu0
    %v1127 = vadd.f32 %v870, %v1126
    %1128 = vmatprep.mubr.f32.mxu0 %v394
    %1129 = vmatmul.mubr.f32.gmra.mrb[0].mxu0 %v289
    %v1130 = vpop.f32.mrb[0].mxu0
    %v1131 = vadd.f32 %v874, %v1130
    %v1132 = vpop.f32.mrb[0].mxu0
    %v1133 = vadd.f32 %v876, %v1132
    %1134 = vmatprep.mubr.f32.mxu0 %v396
    %1135 = vmatmul.mubr.f32.gmra.mrb[0].mxu0 %v291
    %v1136 = vpop.f32.mrb[0].mxu0
    %v1137 = vadd.f32 %v880, %v1136
    %v1138 = vpop.f32.mrb[0].mxu0
    %v1139 = vadd.f32 %v882, %v1138
    %1140 = vmatprep.mubr.f32.mxu0 %v398
    %1141 = vmatmul.mubr.f32.gmra.mrb[0].mxu0 %v293
    %v1142 = vpop.f32.mrb[0].mxu0
    %v1143 = vadd.f32 %v886, %v1142
    %v1144 = vpop.f32.mrb[0].mxu0
    %v1145 = vadd.f32 %v888, %v1144
    %1146 = vmatprep.mubr.f32.mxu0 %v401
    %1147 = vmatmul.mubr.f32.gmra.mrb[0].mxu0 %v296
    %v1148 = vpop.f32.mrb[0].mxu0
    %v1149 = vadd.f32 %v892, %v1148
    %v1150 = vpop.f32.mrb[0].mxu0
    %v1151 = vadd.f32 %v894, %v1150
    %1152 = vmatprep.mubr.f32.mxu0 %v403
    %1153 = vmatmul.mubr.f32.gmra.mrb[0].mxu0 %v298
    %v1154 = vpop.f32.mrb[0].mxu0
    %v1155 = vadd.f32 %v898, %v1154
    %v1156 = vpop.f32.mrb[0].mxu0
    %v1157 = vadd.f32 %v900, %v1156
    %1158 = vmatprep.mubr.f32.mxu0 %v405
    %1159 = vmatmul.mubr.f32.gmra.mrb[0].mxu0 %v300
    %v1160 = vpop.f32.mrb[0].mxu0
    %v1161 = vadd.f32 %v904, %v1160
    %v1162 = vpop.f32.mrb[0].mxu0
    %v1163 = vadd.f32 %v906, %v1162
    %1164 = vmatprep.mubr.f32.mxu0 %v407
    %1165 = vmatmul.mubr.f32.gmra.mrb[0].mxu0 %v302
    %v1166 = vpop.f32.mrb[0].mxu0
    %v1167 = vadd.f32 %v910, %v1166
    %v1168 = vpop.f32.mrb[0].mxu0
    %v1169 = vadd.f32 %v912, %v1168
    %1170 = vmatprep.mubr.f32.mxu0 %v410
    %1171 = vmatmul.mubr.f32.gmra.mrb[0].mxu0 %v305
    %v1172 = vpop.f32.mrb[0].mxu0
    %v1173 = vadd.f32 %v916, %v1172
    %v1174 = vpop.f32.mrb[0].mxu0
    %v1175 = vadd.f32 %v918, %v1174
    %1176 = vmatprep.mubr.f32.mxu0 %v412
    %1177 = vmatmul.mubr.f32.gmra.mrb[0].mxu0 %v307
    %v1178 = vpop.f32.mrb[0].mxu0
    %v1179 = vadd.f32 %v922, %v1178
    %v1180 = vpop.f32.mrb[0].mxu0
    %v1181 = vadd.f32 %v924, %v1180
    %1182 = vmatprep.mubr.f32.mxu0 %v414
    %1183 = vmatmul.mubr.f32.gmra.mrb[0].mxu0 %v309
    %v1184 = vpop.f32.mrb[0].mxu0
    %v1185 = vadd.f32 %v928, %v1184
    %v1186 = vpop.f32.mrb[0].mxu0
    %v1187 = vadd.f32 %v930, %v1186
    %1188 = vmatprep.mubr.f32.mxu0 %v416
    %1189 = vmatmul.mubr.f32.gmra.mrb[0].mxu0 %v311
    %v1190 = vpop.f32.mrb[0].mxu0
    %v1191 = vadd.f32 %v934, %v1190
    %v1192 = vpop.f32.mrb[0].mxu0
    %v1193 = vadd.f32 %v936, %v1192
    %1194 = vmatprep.mubr.f32.mxu0 %v419
    %1195 = vmatmul.mubr.f32.gmra.mrb[0].mxu0 %v314
    %v1196 = vpop.f32.mrb[0].mxu0
    %v1197 = vadd.f32 %v940, %v1196
    %v1198 = vpop.f32.mrb[0].mxu0
    %v1199 = vadd.f32 %v942, %v1198
    %1200 = vmatprep.mubr.f32.mxu0 %v421
    %1201 = vmatmul.mubr.f32.gmra.mrb[0].mxu0 %v316
    %v1202 = vpop.f32.mrb[0].mxu0
    %v1203 = vadd.f32 %v946, %v1202
    %v1204 = vpop.f32.mrb[0].mxu0
    %v1205 = vadd.f32 %v948, %v1204
    %1206 = vmatprep.mubr.f32.mxu0 %v423
    %1207 = vmatmul.mubr.f32.gmra.mrb[0].mxu0 %v318
    %v1208 = vpop.f32.mrb[0].mxu0
    %v1209 = vadd.f32 %v952, %v1208
    %v1210 = vpop.f32.mrb[0].mxu0
    %v1211 = vadd.f32 %v954, %v1210
    %1212 = vmatprep.mubr.f32.mxu0 %v425
    %1213 = vmatmul.mubr.f32.gmra.mrb[0].mxu0 %v320
    %v1214 = vpop.f32.mrb[0].mxu0
    %v1215 = vadd.f32 %v958, %v1214
    %v1216 = vpop.f32.mrb[0].mxu0
    %v1217 = vadd.f32 %v960, %v1216
    %1218 = vmatprep.mubr.f32.mxu0 %v428
    %1219 = vmatmul.mubr.f32.gmra.mrb[0].mxu0 %v323
    %v1220 = vpop.f32.mrb[0].mxu0
    %v1221 = vadd.f32 %v964, %v1220
    %v1222 = vpop.f32.mrb[0].mxu0
    %v1223 = vadd.f32 %v966, %v1222
    %1224 = vmatprep.mubr.f32.mxu0 %v430
    %1225 = vmatmul.mubr.f32.gmra.mrb[0].mxu0 %v325
    %v1226 = vpop.f32.mrb[0].mxu0
    %v1227 = vadd.f32 %v970, %v1226
    %v1228 = vpop.f32.mrb[0].mxu0
    %v1229 = vadd.f32 %v972, %v1228
    %1230 = vmatprep.mubr.f32.mxu0 %v432
    %1231 = vmatmul.mubr.f32.gmra.mrb[0].mxu0 %v327
    %v1232 = vpop.f32.mrb[0].mxu0
    %v1233 = vadd.f32 %v976, %v1232
    %v1234 = vpop.f32.mrb[0].mxu0
    %v1235 = vadd.f32 %v978, %v1234
    %1236 = vmatprep.mubr.f32.mxu0 %v434
    %1237 = vmatmul.mubr.f32.gmra.mrb[0].mxu0 %v329
    %v1238 = vpop.f32.mrb[0].mxu0
    %v1239 = vadd.f32 %v982, %v1238
    %v1240 = vpop.f32.mrb[0].mxu0
    %v1241 = vadd.f32 %v984, %v1240
    %1242 = vmatprep.mubr.f32.mxu0 %v437
    %1243 = vmatmul.mubr.f32.gmra.mrb[0].mxu0 %v332
    %v1244 = vpop.f32.mrb[0].mxu0
    %v1245 = vadd.f32 %v988, %v1244
    %v1246 = vpop.f32.mrb[0].mxu0
    %v1247 = vadd.f32 %v990, %v1246
    %1248 = vmatprep.mubr.f32.mxu0 %v439
    %1249 = vmatmul.mubr.f32.gmra.mrb[0].mxu0 %v334
    %v1250 = vpop.f32.mrb[0].mxu0
    %v1251 = vadd.f32 %v994, %v1250
    %v1252 = vpop.f32.mrb[0].mxu0
    %v1253 = vadd.f32 %v996, %v1252
    %1254 = vmatprep.mubr.f32.mxu0 %v441
    %1255 = vmatmul.mubr.f32.gmra.mrb[0].mxu0 %v336
    %v1256 = vpop.f32.mrb[0].mxu0
    %v1257 = vadd.f32 %v1000, %v1256
    %v1258 = vpop.f32.mrb[0].mxu0
    %v1259 = vadd.f32 %v1002, %v1258
    %1260 = vmatprep.mubr.f32.mxu0 %v443
    %1261 = vmatmul.mubr.f32.gmra.mrb[0].mxu0 %v338
    %v1262 = vpop.f32.mrb[0].mxu0
    %v1263 = vadd.f32 %v1006, %v1262
    %v1264 = vpop.f32.mrb[0].mxu0
    %v1265 = vadd.f32 %v1008, %v1264
    %1266 = vdwg.mxu0
    %1267 = vmatprep.subr.mxu0 %v710
    %1268 = vmatpush1.msra.mxu0 %v709
    %1269 = vmatprep.subr.mxu0 %v712
    %1270 = vmatpush1.msra.mxu0 %v711
    %1271 = vmatprep.subr.mxu0 %v714
    %1272 = vmatpush1.msra.mxu0 %v713
    %1273 = vmatprep.subr.mxu0 %v716
    %1274 = vmatpush1.msra.mxu0 %v715
    %1275 = vmatprep.subr.mxu0 %v718
    %1276 = vmatpush1.msra.mxu0 %v717
    %1277 = vmatprep.subr.mxu0 %v720
    %1278 = vmatpush1.msra.mxu0 %v719
    %1279 = vmatprep.subr.mxu0 %v722
    %1280 = vmatpush1.msra.mxu0 %v721
    %1281 = vmatprep.subr.mxu0 %v724
    %1282 = vmatpush1.msra.mxu0 %v723
    %1283 = vmatprep.subr.mxu0 %v726
    %1284 = vmatpush1.msra.mxu0 %v725
    %1285 = vmatprep.subr.mxu0 %v728
    %1286 = vmatpush1.msra.mxu0 %v727
    %1287 = vmatprep.subr.mxu0 %v730
    %1288 = vmatpush1.msra.mxu0 %v729
    %1289 = vmatprep.subr.mxu0 %v732
    %1290 = vmatpush1.msra.mxu0 %v731
    %1291 = vmatprep.subr.mxu0 %v734
    %1292 = vmatpush1.msra.mxu0 %v733
    %1293 = vmatprep.subr.mxu0 %v736
    %1294 = vmatpush1.msra.mxu0 %v735
    %1295 = vmatprep.subr.mxu0 %v738
    %1296 = vmatpush1.msra.mxu0 %v737
    %1297 = vmatprep.subr.mxu0 %v740
    %1298 = vmatpush1.msra.mxu0 %v739
    %1299 = vmatprep.subr.mxu0 0.0
    %1300 = vmatpush1.msra.mxu0 0.0
    %1301 = vmatprep.subr.mxu0 0.0
    %1302 = vmatpush1.msra.mxu0 0.0
    %1303 = vmatprep.subr.mxu0 0.0
    %1304 = vmatpush1.msra.mxu0 0.0
    %1305 = vmatprep.subr.mxu0 0.0
    %1306 = vmatpush1.msra.mxu0 0.0
    %1307 = vmatprep.subr.mxu0 0.0
    %1308 = vmatpush1.msra.mxu0 0.0
    %1309 = vmatprep.subr.mxu0 0.0
    %1310 = vmatpush1.msra.mxu0 0.0
    %1311 = vmatprep.subr.mxu0 0.0
    %1312 = vmatpush1.msra.mxu0 0.0
    %1313 = vmatprep.subr.mxu0 0.0
    %1314 = vmatpush1.msra.mxu0 0.0
    %1315 = vmatprep.subr.mxu0 0.0
    %1316 = vmatpush1.msra.mxu0 0.0
    %1317 = vmatprep.subr.mxu0 0.0
    %1318 = vmatpush1.msra.mxu0 0.0
    %1319 = vmatprep.subr.mxu0 0.0
    %1320 = vmatpush1.msra.mxu0 0.0
    %1321 = vmatprep.subr.mxu0 0.0
    %1322 = vmatpush1.msra.mxu0 0.0
    %1323 = vmatprep.subr.mxu0 0.0
    %1324 = vmatpush1.msra.mxu0 0.0
    %1325 = vmatprep.subr.mxu0 0.0
    %1326 = vmatpush1.msra.mxu0 0.0
    %1327 = vmatprep.subr.mxu0 0.0
    %1328 = vmatpush1.msra.mxu0 0.0
    %1329 = vmatprep.subr.mxu0 0.0
    %1330 = vmatpush1.msra.mxu0 0.0
    %1331 = vmatprep.mubr.f32.mxu0 0.0
    %1332 = vmatmul.mubr.f32.gmra.mrb[0].mxu0 %v479
    %v1333 = vpop.f32.mrb[0].mxu0
    %v1334 = vadd.f32 %v1077, %v1333
    %v1335 = vpop.f32.mrb[0].mxu0
    %v1336 = vadd.f32 %v1079, %v1335
    %1337 = vmatprep.mubr.f32.mxu0 0.0
    %1338 = vmatmul.mubr.f32.gmra.mrb[0].mxu0 %v481
    %v1339 = vpop.f32.mrb[0].mxu0
    %v1340 = vadd.f32 %v1083, %v1339
    %v1341 = vpop.f32.mrb[0].mxu0
    %v1342 = vadd.f32 %v1085, %v1341
    %1343 = vmatprep.mubr.f32.mxu0 0.0
    %1344 = vmatmul.mubr.f32.gmra.mrb[0].mxu0 %v483
    %v1345 = vpop.f32.mrb[0].mxu0
    %v1346 = vadd.f32 %v1089, %v1345
    %v1347 = vpop.f32.mrb[0].mxu0
    %v1348 = vadd.f32 %v1091, %v1347
    %1349 = vmatprep.mubr.f32.mxu0 0.0
    %1350 = vmatmul.mubr.f32.gmra.mrb[0].mxu0 %v485
    %v1351 = vpop.f32.mrb[0].mxu0
    %v1352 = vadd.f32 %v1095, %v1351
    %v1353 = vpop.f32.mrb[0].mxu0
    %v1354 = vadd.f32 %v1097, %v1353
    %1355 = vmatprep.mubr.f32.mxu0 0.0
    %1356 = vmatmul.mubr.f32.gmra.mrb[0].mxu0 %v488
    %v1357 = vpop.f32.mrb[0].mxu0
    %v1358 = vadd.f32 %v1101, %v1357
    %v1359 = vpop.f32.mrb[0].mxu0
    %v1360 = vadd.f32 %v1103, %v1359
    %1361 = vmatprep.mubr.f32.mxu0 0.0
    %1362 = vmatmul.mubr.f32.gmra.mrb[0].mxu0 %v490
    %v1363 = vpop.f32.mrb[0].mxu0
    %v1364 = vadd.f32 %v1107, %v1363
    %v1365 = vpop.f32.mrb[0].mxu0
    %v1366 = vadd.f32 %v1109, %v1365
    %1367 = vmatprep.mubr.f32.mxu0 0.0
    %1368 = vmatmul.mubr.f32.gmra.mrb[0].mxu0 %v492
    %v1369 = vpop.f32.mrb[0].mxu0
    %v1370 = vadd.f32 %v1113, %v1369
    %v1371 = vpop.f32.mrb[0].mxu0
    %v1372 = vadd.f32 %v1115, %v1371
    %1373 = vmatprep.mubr.f32.mxu0 0.0
    %1374 = vmatmul.mubr.f32.gmra.mrb[0].mxu0 %v494
    %v1375 = vpop.f32.mrb[0].mxu0
    %v1376 = vadd.f32 %v1119, %v1375
    %v1377 = vpop.f32.mrb[0].mxu0
    %v1378 = vadd.f32 %v1121, %v1377
    %1379 = vmatprep.mubr.f32.mxu0 0.0
    %1380 = vmatmul.mubr.f32.gmra.mrb[0].mxu0 %v497
    %v1381 = vpop.f32.mrb[0].mxu0
    %v1382 = vadd.f32 %v1125, %v1381
    %v1383 = vpop.f32.mrb[0].mxu0
    %v1384 = vadd.f32 %v1127, %v1383
    %1385 = vmatprep.mubr.f32.mxu0 0.0
    %1386 = vmatmul.mubr.f32.gmra.mrb[0].mxu0 %v499
    %v1387 = vpop.f32.mrb[0].mxu0
    %v1388 = vadd.f32 %v1131, %v1387
    %v1389 = vpop.f32.mrb[0].mxu0
    %v1390 = vadd.f32 %v1133, %v1389
    %1391 = vmatprep.mubr.f32.mxu0 0.0
    %1392 = vmatmul.mubr.f32.gmra.mrb[0].mxu0 %v501
    %v1393 = vpop.f32.mrb[0].mxu0
    %v1394 = vadd.f32 %v1137, %v1393
    %v1395 = vpop.f32.mrb[0].mxu0
    %v1396 = vadd.f32 %v1139, %v1395
    %1397 = vmatprep.mubr.f32.mxu0 0.0
    %1398 = vmatmul.mubr.f32.gmra.mrb[0].mxu0 %v503
    %v1399 = vpop.f32.mrb[0].mxu0
    %v1400 = vadd.f32 %v1143, %v1399
    %v1401 = vpop.f32.mrb[0].mxu0
    %v1402 = vadd.f32 %v1145, %v1401
    %1403 = vmatprep.mubr.f32.mxu0 0.0
    %1404 = vmatmul.mubr.f32.gmra.mrb[0].mxu0 %v506
    %v1405 = vpop.f32.mrb[0].mxu0
    %v1406 = vadd.f32 %v1149, %v1405
    %v1407 = vpop.f32.mrb[0].mxu0
    %v1408 = vadd.f32 %v1151, %v1407
    %1409 = vmatprep.mubr.f32.mxu0 0.0
    %1410 = vmatmul.mubr.f32.gmra.mrb[0].mxu0 %v508
    %v1411 = vpop.f32.mrb[0].mxu0
    %v1412 = vadd.f32 %v1155, %v1411
    %v1413 = vpop.f32.mrb[0].mxu0
    %v1414 = vadd.f32 %v1157, %v1413
    %1415 = vmatprep.mubr.f32.mxu0 0.0
    %1416 = vmatmul.mubr.f32.gmra.mrb[0].mxu0 %v510
    %v1417 = vpop.f32.mrb[0].mxu0
    %v1418 = vadd.f32 %v1161, %v1417
    %v1419 = vpop.f32.mrb[0].mxu0
    %v1420 = vadd.f32 %v1163, %v1419
    %1421 = vmatprep.mubr.f32.mxu0 0.0
    %1422 = vmatmul.mubr.f32.gmra.mrb[0].mxu0 %v512
    %v1423 = vpop.f32.mrb[0].mxu0
    %v1424 = vadd.f32 %v1167, %v1423
    %v1425 = vpop.f32.mrb[0].mxu0
    %v1426 = vadd.f32 %v1169, %v1425
    %1427 = vmatprep.mubr.f32.mxu0 0.0
    %1428 = vmatmul.mubr.f32.gmra.mrb[0].mxu0 %v515
    %v1429 = vpop.f32.mrb[0].mxu0
    %v1430 = vadd.f32 %v1173, %v1429
    %v1431 = vpop.f32.mrb[0].mxu0
    %v1432 = vadd.f32 %v1175, %v1431
    %1433 = vmatprep.mubr.f32.mxu0 0.0
    %1434 = vmatmul.mubr.f32.gmra.mrb[0].mxu0 %v517
    %v1435 = vpop.f32.mrb[0].mxu0
    %v1436 = vadd.f32 %v1179, %v1435
    %v1437 = vpop.f32.mrb[0].mxu0
    %v1438 = vadd.f32 %v1181, %v1437
    %1439 = vmatprep.mubr.f32.mxu0 0.0
    %1440 = vmatmul.mubr.f32.gmra.mrb[0].mxu0 %v519
    %v1441 = vpop.f32.mrb[0].mxu0
    %v1442 = vadd.f32 %v1185, %v1441
    %v1443 = vpop.f32.mrb[0].mxu0
    %v1444 = vadd.f32 %v1187, %v1443
    %1445 = vmatprep.mubr.f32.mxu0 0.0
    %1446 = vmatmul.mubr.f32.gmra.mrb[0].mxu0 %v521
    %v1447 = vpop.f32.mrb[0].mxu0
    %v1448 = vadd.f32 %v1191, %v1447
    %v1449 = vpop.f32.mrb[0].mxu0
    %v1450 = vadd.f32 %v1193, %v1449
    %1451 = vmatprep.mubr.f32.mxu0 0.0
    %1452 = vmatmul.mubr.f32.gmra.mrb[0].mxu0 %v524
    %v1453 = vpop.f32.mrb[0].mxu0
    %v1454 = vadd.f32 %v1197, %v1453
    %v1455 = vpop.f32.mrb[0].mxu0
    %v1456 = vadd.f32 %v1199, %v1455
    %1457 = vmatprep.mubr.f32.mxu0 0.0
    %1458 = vmatmul.mubr.f32.gmra.mrb[0].mxu0 %v526
    %v1459 = vpop.f32.mrb[0].mxu0
    %v1460 = vadd.f32 %v1203, %v1459
    %v1461 = vpop.f32.mrb[0].mxu0
    %v1462 = vadd.f32 %v1205, %v1461
    %1463 = vmatprep.mubr.f32.mxu0 0.0
    %1464 = vmatmul.mubr.f32.gmra.mrb[0].mxu0 %v528
    %v1465 = vpop.f32.mrb[0].mxu0
    %v1466 = vadd.f32 %v1209, %v1465
    %v1467 = vpop.f32.mrb[0].mxu0
    %v1468 = vadd.f32 %v1211, %v1467
    %1469 = vmatprep.mubr.f32.mxu0 0.0
    %1470 = vmatmul.mubr.f32.gmra.mrb[0].mxu0 %v530
    %v1471 = vpop.f32.mrb[0].mxu0
    %v1472 = vadd.f32 %v1215, %v1471
    %v1473 = vpop.f32.mrb[0].mxu0
    %v1474 = vadd.f32 %v1217, %v1473
    %1475 = vmatprep.mubr.f32.mxu0 0.0
    %1476 = vmatmul.mubr.f32.gmra.mrb[0].mxu0 %v533
    %v1477 = vpop.f32.mrb[0].mxu0
    %v1478 = vadd.f32 %v1221, %v1477
    %v1479 = vpop.f32.mrb[0].mxu0
    %v1480 = vadd.f32 %v1223, %v1479
    %1481 = vmatprep.mubr.f32.mxu0 0.0
    %1482 = vmatmul.mubr.f32.gmra.mrb[0].mxu0 %v535
    %v1483 = vpop.f32.mrb[0].mxu0
    %v1484 = vadd.f32 %v1227, %v1483
    %v1485 = vpop.f32.mrb[0].mxu0
    %v1486 = vadd.f32 %v1229, %v1485
    %1487 = vmatprep.mubr.f32.mxu0 0.0
    %1488 = vmatmul.mubr.f32.gmra.mrb[0].mxu0 %v537
    %v1489 = vpop.f32.mrb[0].mxu0
    %v1490 = vadd.f32 %v1233, %v1489
    %v1491 = vpop.f32.mrb[0].mxu0
    %v1492 = vadd.f32 %v1235, %v1491
    %1493 = vmatprep.mubr.f32.mxu0 0.0
    %1494 = vmatmul.mubr.f32.gmra.mrb[0].mxu0 %v539
    %v1495 = vpop.f32.mrb[0].mxu0
    %v1496 = vadd.f32 %v1239, %v1495
    %v1497 = vpop.f32.mrb[0].mxu0
    %v1498 = vadd.f32 %v1241, %v1497
    %1499 = vmatprep.mubr.f32.mxu0 0.0
    %1500 = vmatmul.mubr.f32.gmra.mrb[0].mxu0 %v542
    %v1501 = vpop.f32.mrb[0].mxu0
    %v1502 = vadd.f32 %v1245, %v1501
    %v1503 = vpop.f32.mrb[0].mxu0
    %v1504 = vadd.f32 %v1247, %v1503
    %1505 = vmatprep.mubr.f32.mxu0 0.0
    %1506 = vmatmul.mubr.f32.gmra.mrb[0].mxu0 %v544
    %v1507 = vpop.f32.mrb[0].mxu0
    %v1508 = vadd.f32 %v1251, %v1507
    %v1509 = vpop.f32.mrb[0].mxu0
    %v1510 = vadd.f32 %v1253, %v1509
    %1511 = vmatprep.mubr.f32.mxu0 0.0
    %1512 = vmatmul.mubr.f32.gmra.mrb[0].mxu0 %v546
    %v1513 = vpop.f32.mrb[0].mxu0
    %v1514 = vadd.f32 %v1257, %v1513
    %v1515 = vpop.f32.mrb[0].mxu0
    %v1516 = vadd.f32 %v1259, %v1515
    %1517 = vmatprep.mubr.f32.mxu0 0.0
    %1518 = vmatmul.mubr.f32.gmra.mrb[0].mxu0 %v548
    %v1519 = vpop.f32.mrb[0].mxu0
    %v1520 = vadd.f32 %v1263, %v1519
    %v1521 = vpop.f32.mrb[0].mxu0
    %v1522 = vadd.f32 %v1265, %v1521
    %1523 = vdwg.mxu0
    %v1524 = vmax.f32 %v1334, %v1336
    %v1525 = vmax.f32 %v1340, %v1342
    %v1526 = vmax.f32 %v1346, %v1348
    %v1527 = vmax.f32 %v1352, %v1354
    %v1528 = vmax.f32 %v1358, %v1360
    %v1529 = vmax.f32 %v1364, %v1366
    %v1530 = vmax.f32 %v1370, %v1372
    %v1531 = vmax.f32 %v1376, %v1378
    %v1532 = vmax.f32 %v1382, %v1384
    %v1533 = vmax.f32 %v1388, %v1390
    %v1534 = vmax.f32 %v1394, %v1396
    %v1535 = vmax.f32 %v1400, %v1402
    %v1536 = vmax.f32 %v1406, %v1408
    %v1537 = vmax.f32 %v1412, %v1414
    %v1538 = vmax.f32 %v1418, %v1420
    %v1539 = vmax.f32 %v1424, %v1426
    %v1540 = vmax.f32 %v1430, %v1432
    %v1541 = vmax.f32 %v1436, %v1438
    %v1542 = vmax.f32 %v1442, %v1444
    %v1543 = vmax.f32 %v1448, %v1450
    %v1544 = vmax.f32 %v1454, %v1456
    %v1545 = vmax.f32 %v1460, %v1462
    %v1546 = vmax.f32 %v1466, %v1468
    %v1547 = vmax.f32 %v1472, %v1474
    %v1548 = vmax.f32 %v1478, %v1480
    %v1549 = vmax.f32 %v1484, %v1486
    %v1550 = vmax.f32 %v1490, %v1492
    %v1551 = vmax.f32 %v1496, %v1498
    %v1552 = vmax.f32 %v1502, %v1504
    %v1553 = vmax.f32 %v1508, %v1510
    %v1554 = vmax.f32 %v1514, %v1516
    %v1555 = vmax.f32 %v1520, %v1522
    %v1557 = vunpack.c.l.s4 1966171168
    %v1558 = vunpack.c.0.s8 %v1557
    %v1559 = vlaneseq
    %v1560 = vshrl.u32 %v1559, 7
    %v1561 = vsub.s32 %v1558, %v1560
    %v1562 = vrot.slane %v1524, %v1561
    %v1564 = vunpack.c.l.s4 1966171168
    %v1565 = vunpack.c.0.s8 %v1564
    %v1566 = vlaneseq
    %v1567 = vshrl.u32 %v1566, 7
    %v1568 = vsub.s32 %v1565, %v1567
    %v1569 = vrot.slane %v1525, %v1568
    %v1571 = vunpack.c.l.s4 1966171168
    %v1572 = vunpack.c.0.s8 %v1571
    %v1573 = vlaneseq
    %v1574 = vshrl.u32 %v1573, 7
    %v1575 = vsub.s32 %v1572, %v1574
    %v1576 = vrot.slane %v1526, %v1575
    %v1578 = vunpack.c.l.s4 1966171168
    %v1579 = vunpack.c.0.s8 %v1578
    %v1580 = vlaneseq
    %v1581 = vshrl.u32 %v1580, 7
    %v1582 = vsub.s32 %v1579, %v1581
    %v1583 = vrot.slane %v1527, %v1582
    %v1585 = vunpack.c.l.s4 1966171168
    %v1586 = vunpack.c.0.s8 %v1585
    %v1587 = vlaneseq
    %v1588 = vshrl.u32 %v1587, 7
    %v1589 = vsub.s32 %v1586, %v1588
    %v1590 = vrot.slane %v1528, %v1589
    %v1592 = vunpack.c.l.s4 1966171168
    %v1593 = vunpack.c.0.s8 %v1592
    %v1594 = vlaneseq
    %v1595 = vshrl.u32 %v1594, 7
    %v1596 = vsub.s32 %v1593, %v1595
    %v1597 = vrot.slane %v1529, %v1596
    %v1599 = vunpack.c.l.s4 1966171168
    %v1600 = vunpack.c.0.s8 %v1599
    %v1601 = vlaneseq
    %v1602 = vshrl.u32 %v1601, 7
    %v1603 = vsub.s32 %v1600, %v1602
    %v1604 = vrot.slane %v1530, %v1603
    %v1606 = vunpack.c.l.s4 1966171168
    %v1607 = vunpack.c.0.s8 %v1606
    %v1608 = vlaneseq
    %v1609 = vshrl.u32 %v1608, 7
    %v1610 = vsub.s32 %v1607, %v1609
    %v1611 = vrot.slane %v1531, %v1610
    %v1613 = vunpack.c.l.s4 1966171168
    %v1614 = vunpack.c.0.s8 %v1613
    %v1615 = vlaneseq
    %v1616 = vshrl.u32 %v1615, 7
    %v1617 = vsub.s32 %v1614, %v1616
    %v1618 = vrot.slane %v1532, %v1617
    %v1620 = vunpack.c.l.s4 1966171168
    %v1621 = vunpack.c.0.s8 %v1620
    %v1622 = vlaneseq
    %v1623 = vshrl.u32 %v1622, 7
    %v1624 = vsub.s32 %v1621, %v1623
    %v1625 = vrot.slane %v1533, %v1624
    %v1627 = vunpack.c.l.s4 1966171168
    %v1628 = vunpack.c.0.s8 %v1627
    %v1629 = vlaneseq
    %v1630 = vshrl.u32 %v1629, 7
    %v1631 = vsub.s32 %v1628, %v1630
    %v1632 = vrot.slane %v1534, %v1631
    %v1634 = vunpack.c.l.s4 1966171168
    %v1635 = vunpack.c.0.s8 %v1634
    %v1636 = vlaneseq
    %v1637 = vshrl.u32 %v1636, 7
    %v1638 = vsub.s32 %v1635, %v1637
    %v1639 = vrot.slane %v1535, %v1638
    %v1641 = vunpack.c.l.s4 1966171168
    %v1642 = vunpack.c.0.s8 %v1641
    %v1643 = vlaneseq
    %v1644 = vshrl.u32 %v1643, 7
    %v1645 = vsub.s32 %v1642, %v1644
    %v1646 = vrot.slane %v1536, %v1645
    %v1648 = vunpack.c.l.s4 1966171168
    %v1649 = vunpack.c.0.s8 %v1648
    %v1650 = vlaneseq
    %v1651 = vshrl.u32 %v1650, 7
    %v1652 = vsub.s32 %v1649, %v1651
    %v1653 = vrot.slane %v1537, %v1652
    %v1655 = vunpack.c.l.s4 1966171168
    %v1656 = vunpack.c.0.s8 %v1655
    %v1657 = vlaneseq
    %v1658 = vshrl.u32 %v1657, 7
    %v1659 = vsub.s32 %v1656, %v1658
    %v1660 = vrot.slane %v1538, %v1659
    %v1662 = vunpack.c.l.s4 1966171168
    %v1663 = vunpack.c.0.s8 %v1662
    %v1664 = vlaneseq
    %v1665 = vshrl.u32 %v1664, 7
    %v1666 = vsub.s32 %v1663, %v1665
    %v1667 = vrot.slane %v1539, %v1666
    %v1669 = vunpack.c.l.s4 1966171168
    %v1670 = vunpack.c.0.s8 %v1669
    %v1671 = vlaneseq
    %v1672 = vshrl.u32 %v1671, 7
    %v1673 = vsub.s32 %v1670, %v1672
    %v1674 = vrot.slane %v1540, %v1673
    %v1676 = vunpack.c.l.s4 1966171168
    %v1677 = vunpack.c.0.s8 %v1676
    %v1678 = vlaneseq
    %v1679 = vshrl.u32 %v1678, 7
    %v1680 = vsub.s32 %v1677, %v1679
    %v1681 = vrot.slane %v1541, %v1680
    %v1683 = vunpack.c.l.s4 1966171168
    %v1684 = vunpack.c.0.s8 %v1683
    %v1685 = vlaneseq
    %v1686 = vshrl.u32 %v1685, 7
    %v1687 = vsub.s32 %v1684, %v1686
    %v1688 = vrot.slane %v1542, %v1687
    %v1690 = vunpack.c.l.s4 1966171168
    %v1691 = vunpack.c.0.s8 %v1690
    %v1692 = vlaneseq
    %v1693 = vshrl.u32 %v1692, 7
    %v1694 = vsub.s32 %v1691, %v1693
    %v1695 = vrot.slane %v1543, %v1694
    %v1697 = vunpack.c.l.s4 1966171168
    %v1698 = vunpack.c.0.s8 %v1697
    %v1699 = vlaneseq
    %v1700 = vshrl.u32 %v1699, 7
    %v1701 = vsub.s32 %v1698, %v1700
    %v1702 = vrot.slane %v1544, %v1701
    %v1704 = vunpack.c.l.s4 1966171168
    %v1705 = vunpack.c.0.s8 %v1704
    %v1706 = vlaneseq
    %v1707 = vshrl.u32 %v1706, 7
    %v1708 = vsub.s32 %v1705, %v1707
    %v1709 = vrot.slane %v1545, %v1708
    %v1711 = vunpack.c.l.s4 1966171168
    %v1712 = vunpack.c.0.s8 %v1711
    %v1713 = vlaneseq
    %v1714 = vshrl.u32 %v1713, 7
    %v1715 = vsub.s32 %v1712, %v1714
    %v1716 = vrot.slane %v1546, %v1715
    %v1718 = vunpack.c.l.s4 1966171168
    %v1719 = vunpack.c.0.s8 %v1718
    %v1720 = vlaneseq
    %v1721 = vshrl.u32 %v1720, 7
    %v1722 = vsub.s32 %v1719, %v1721
    %v1723 = vrot.slane %v1547, %v1722
    %v1725 = vunpack.c.l.s4 1966171168
    %v1726 = vunpack.c.0.s8 %v1725
    %v1727 = vlaneseq
    %v1728 = vshrl.u32 %v1727, 7
    %v1729 = vsub.s32 %v1726, %v1728
    %v1730 = vrot.slane %v1548, %v1729
    %v1732 = vunpack.c.l.s4 1966171168
    %v1733 = vunpack.c.0.s8 %v1732
    %v1734 = vlaneseq
    %v1735 = vshrl.u32 %v1734, 7
    %v1736 = vsub.s32 %v1733, %v1735
    %v1737 = vrot.slane %v1549, %v1736
    %v1739 = vunpack.c.l.s4 1966171168
    %v1740 = vunpack.c.0.s8 %v1739
    %v1741 = vlaneseq
    %v1742 = vshrl.u32 %v1741, 7
    %v1743 = vsub.s32 %v1740, %v1742
    %v1744 = vrot.slane %v1550, %v1743
    %v1746 = vunpack.c.l.s4 1966171168
    %v1747 = vunpack.c.0.s8 %v1746
    %v1748 = vlaneseq
    %v1749 = vshrl.u32 %v1748, 7
    %v1750 = vsub.s32 %v1747, %v1749
    %v1751 = vrot.slane %v1551, %v1750
    %v1753 = vunpack.c.l.s4 1966171168
    %v1754 = vunpack.c.0.s8 %v1753
    %v1755 = vlaneseq
    %v1756 = vshrl.u32 %v1755, 7
    %v1757 = vsub.s32 %v1754, %v1756
    %v1758 = vrot.slane %v1552, %v1757
    %v1760 = vunpack.c.l.s4 1966171168
    %v1761 = vunpack.c.0.s8 %v1760
    %v1762 = vlaneseq
    %v1763 = vshrl.u32 %v1762, 7
    %v1764 = vsub.s32 %v1761, %v1763
    %v1765 = vrot.slane %v1553, %v1764
    %v1767 = vunpack.c.l.s4 1966171168
    %v1768 = vunpack.c.0.s8 %v1767
    %v1769 = vlaneseq
    %v1770 = vshrl.u32 %v1769, 7
    %v1771 = vsub.s32 %v1768, %v1770
    %v1772 = vrot.slane %v1554, %v1771
    %v1774 = vunpack.c.l.s4 1966171168
    %v1775 = vunpack.c.0.s8 %v1774
    %v1776 = vlaneseq
    %v1777 = vshrl.u32 %v1776, 7
    %v1778 = vsub.s32 %v1775, %v1777
    %v1779 = vrot.slane %v1555, %v1778
    %v1812 = vrot.slane %v1562, 4
    %v1813 = vrot.slane %v1569, 4
    %v1814 = vrot.slane %v1576, 4
    %v1815 = vrot.slane %v1583, 4
    %v1816 = vrot.slane %v1590, 4
    %v1817 = vrot.slane %v1597, 4
    %v1818 = vrot.slane %v1604, 4
    %v1819 = vrot.slane %v1611, 4
    %v1820 = vrot.slane %v1618, 4
    %v1821 = vrot.slane %v1625, 4
    %v1822 = vrot.slane %v1632, 4
    %v1823 = vrot.slane %v1639, 4
    %v1824 = vrot.slane %v1646, 4
    %v1825 = vrot.slane %v1653, 4
    %v1826 = vrot.slane %v1660, 4
    %v1827 = vrot.slane %v1667, 4
    %v1828 = vrot.slane %v1674, 4
    %v1829 = vrot.slane %v1681, 4
    %v1830 = vrot.slane %v1688, 4
    %v1831 = vrot.slane %v1695, 4
    %v1832 = vrot.slane %v1702, 4
    %v1833 = vrot.slane %v1709, 4
    %v1834 = vrot.slane %v1716, 4
    %v1835 = vrot.slane %v1723, 4
    %v1836 = vrot.slane %v1730, 4
    %v1837 = vrot.slane %v1737, 4
    %v1838 = vrot.slane %v1744, 4
    %v1839 = vrot.slane %v1751, 4
    %v1840 = vrot.slane %v1758, 4
    %v1841 = vrot.slane %v1765, 4
    %v1842 = vrot.slane %v1772, 4
    %v1843 = vrot.slane %v1779, 4
    %v1876 = vmax.f32 %v1562, %v1812
    %v1877 = vmax.f32 %v1569, %v1813
    %v1878 = vmax.f32 %v1576, %v1814
    %v1879 = vmax.f32 %v1583, %v1815
    %v1880 = vmax.f32 %v1590, %v1816
    %v1881 = vmax.f32 %v1597, %v1817
    %v1882 = vmax.f32 %v1604, %v1818
    %v1883 = vmax.f32 %v1611, %v1819
    %v1884 = vmax.f32 %v1618, %v1820
    %v1885 = vmax.f32 %v1625, %v1821
    %v1886 = vmax.f32 %v1632, %v1822
    %v1887 = vmax.f32 %v1639, %v1823
    %v1888 = vmax.f32 %v1646, %v1824
    %v1889 = vmax.f32 %v1653, %v1825
    %v1890 = vmax.f32 %v1660, %v1826
    %v1891 = vmax.f32 %v1667, %v1827
    %v1892 = vmax.f32 %v1674, %v1828
    %v1893 = vmax.f32 %v1681, %v1829
    %v1894 = vmax.f32 %v1688, %v1830
    %v1895 = vmax.f32 %v1695, %v1831
    %v1896 = vmax.f32 %v1702, %v1832
    %v1897 = vmax.f32 %v1709, %v1833
    %v1898 = vmax.f32 %v1716, %v1834
    %v1899 = vmax.f32 %v1723, %v1835
    %v1900 = vmax.f32 %v1730, %v1836
    %v1901 = vmax.f32 %v1737, %v1837
    %v1902 = vmax.f32 %v1744, %v1838
    %v1903 = vmax.f32 %v1751, %v1839
    %v1904 = vmax.f32 %v1758, %v1840
    %v1905 = vmax.f32 %v1765, %v1841
    %v1906 = vmax.f32 %v1772, %v1842
    %v1907 = vmax.f32 %v1779, %v1843
    %v1908 = vmul.f32 %v1876, 0.5
    %v1909 = vmul.f32 %v1877, 0.5
    %v1910 = vmul.f32 %v1878, 0.5
    %v1911 = vmul.f32 %v1879, 0.5
    %v1912 = vmul.f32 %v1880, 0.5
    %v1913 = vmul.f32 %v1881, 0.5
    %v1914 = vmul.f32 %v1882, 0.5
    %v1915 = vmul.f32 %v1883, 0.5
    %v1916 = vmul.f32 %v1884, 0.5
    %v1917 = vmul.f32 %v1885, 0.5
    %v1918 = vmul.f32 %v1886, 0.5
    %v1919 = vmul.f32 %v1887, 0.5
    %v1920 = vmul.f32 %v1888, 0.5
    %v1921 = vmul.f32 %v1889, 0.5
    %v1922 = vmul.f32 %v1890, 0.5
    %v1923 = vmul.f32 %v1891, 0.5
    %v1924 = vmul.f32 %v1892, 0.5
    %v1925 = vmul.f32 %v1893, 0.5
    %v1926 = vmul.f32 %v1894, 0.5
    %v1927 = vmul.f32 %v1895, 0.5
    %v1928 = vmul.f32 %v1896, 0.5
    %v1929 = vmul.f32 %v1897, 0.5
    %v1930 = vmul.f32 %v1898, 0.5
    %v1931 = vmul.f32 %v1899, 0.5
    %v1932 = vmul.f32 %v1900, 0.5
    %v1933 = vmul.f32 %v1901, 0.5
    %v1934 = vmul.f32 %v1902, 0.5
    %v1935 = vmul.f32 %v1903, 0.5
    %v1936 = vmul.f32 %v1904, 0.5
    %v1937 = vmul.f32 %v1905, 0.5
    %v1938 = vmul.f32 %v1906, 0.5
    %v1939 = vmul.f32 %v1907, 0.5
    %v1940 = vtanh.pop %v1908
    %v1941 = vtanh.pop %v1909
    %v1942 = vtanh.pop %v1910
    %v1943 = vtanh.pop %v1911
    %v1944 = vtanh.pop %v1912
    %v1945 = vtanh.pop %v1913
    %v1946 = vtanh.pop %v1914
    %v1947 = vtanh.pop %v1915
    %v1948 = vtanh.pop %v1916
    %v1949 = vtanh.pop %v1917
    %v1950 = vtanh.pop %v1918
    %v1951 = vtanh.pop %v1919
    %v1952 = vtanh.pop %v1920
    %v1953 = vtanh.pop %v1921
    %v1954 = vtanh.pop %v1922
    %v1955 = vtanh.pop %v1923
    %v1956 = vtanh.pop %v1924
    %v1957 = vtanh.pop %v1925
    %v1958 = vtanh.pop %v1926
    %v1959 = vtanh.pop %v1927
    %v1960 = vtanh.pop %v1928
    %v1961 = vtanh.pop %v1929
    %v1962 = vtanh.pop %v1930
    %v1963 = vtanh.pop %v1931
    %v1964 = vtanh.pop %v1932
    %v1965 = vtanh.pop %v1933
    %v1966 = vtanh.pop %v1934
    %v1967 = vtanh.pop %v1935
    %v1968 = vtanh.pop %v1936
    %v1969 = vtanh.pop %v1937
    %v1970 = vtanh.pop %v1938
    %v1971 = vtanh.pop %v1939
    %v1972 = vmul.f32 %v1940, 0.5
    %v1973 = vmul.f32 %v1941, 0.5
    %v1974 = vmul.f32 %v1942, 0.5
    %v1975 = vmul.f32 %v1943, 0.5
    %v1976 = vmul.f32 %v1944, 0.5
    %v1977 = vmul.f32 %v1945, 0.5
    %v1978 = vmul.f32 %v1946, 0.5
    %v1979 = vmul.f32 %v1947, 0.5
    %v1980 = vmul.f32 %v1948, 0.5
    %v1981 = vmul.f32 %v1949, 0.5
    %v1982 = vmul.f32 %v1950, 0.5
    %v1983 = vmul.f32 %v1951, 0.5
    %v1984 = vmul.f32 %v1952, 0.5
    %v1985 = vmul.f32 %v1953, 0.5
    %v1986 = vmul.f32 %v1954, 0.5
    %v1987 = vmul.f32 %v1955, 0.5
    %v1988 = vmul.f32 %v1956, 0.5
    %v1989 = vmul.f32 %v1957, 0.5
    %v1990 = vmul.f32 %v1958, 0.5
    %v1991 = vmul.f32 %v1959, 0.5
    %v1992 = vmul.f32 %v1960, 0.5
    %v1993 = vmul.f32 %v1961, 0.5
    %v1994 = vmul.f32 %v1962, 0.5
    %v1995 = vmul.f32 %v1963, 0.5
    %v1996 = vmul.f32 %v1964, 0.5
    %v1997 = vmul.f32 %v1965, 0.5
    %v1998 = vmul.f32 %v1966, 0.5
    %v1999 = vmul.f32 %v1967, 0.5
    %v2000 = vmul.f32 %v1968, 0.5
    %v2001 = vmul.f32 %v1969, 0.5
    %v2002 = vmul.f32 %v1970, 0.5
    %v2003 = vmul.f32 %v1971, 0.5
    %v2004 = vadd.f32 %v1972, 0.5
    %v2005 = vadd.f32 %v1973, 0.5
    %v2006 = vadd.f32 %v1974, 0.5
    %v2007 = vadd.f32 %v1975, 0.5
    %v2008 = vadd.f32 %v1976, 0.5
    %v2009 = vadd.f32 %v1977, 0.5
    %v2010 = vadd.f32 %v1978, 0.5
    %v2011 = vadd.f32 %v1979, 0.5
    %v2012 = vadd.f32 %v1980, 0.5
    %v2013 = vadd.f32 %v1981, 0.5
    %v2014 = vadd.f32 %v1982, 0.5
    %v2015 = vadd.f32 %v1983, 0.5
    %v2016 = vadd.f32 %v1984, 0.5
    %v2017 = vadd.f32 %v1985, 0.5
    %v2018 = vadd.f32 %v1986, 0.5
    %v2019 = vadd.f32 %v1987, 0.5
    %v2020 = vadd.f32 %v1988, 0.5
    %v2021 = vadd.f32 %v1989, 0.5
    %v2022 = vadd.f32 %v1990, 0.5
    %v2023 = vadd.f32 %v1991, 0.5
    %v2024 = vadd.f32 %v1992, 0.5
    %v2025 = vadd.f32 %v1993, 0.5
    %v2026 = vadd.f32 %v1994, 0.5
    %v2027 = vadd.f32 %v1995, 0.5
    %v2028 = vadd.f32 %v1996, 0.5
    %v2029 = vadd.f32 %v1997, 0.5
    %v2030 = vadd.f32 %v1998, 0.5
    %v2031 = vadd.f32 %v1999, 0.5
    %v2032 = vadd.f32 %v2000, 0.5
    %v2033 = vadd.f32 %v2001, 0.5
    %v2034 = vadd.f32 %v2002, 0.5
    %v2035 = vadd.f32 %v2003, 0.5
    %v2060 = vcombine.low %v2004, %v2005
    %v2061 = vcombine.low %v2008, %v2009
    %v2062 = vcombine.low %v2012, %v2013
    %v2063 = vcombine.low %v2016, %v2017
    %v2064 = vcombine.low %v2020, %v2021
    %v2065 = vcombine.low %v2024, %v2025
    %v2066 = vcombine.low %v2028, %v2029
    %v2067 = vcombine.low %v2032, %v2033
    %v2076 = vcombine.low %v2006, %v2007
    %v2077 = vcombine.low %v2010, %v2011
    %v2078 = vcombine.low %v2014, %v2015
    %v2079 = vcombine.low %v2018, %v2019
    %v2080 = vcombine.low %v2022, %v2023
    %v2081 = vcombine.low %v2026, %v2027
    %v2082 = vcombine.low %v2030, %v2031
    %v2083 = vcombine.low %v2034, %v2035
    %v2084 = vrot.slane %v2060, 1
    %v2085 = vrot.slane %v2076, 1
    %v2086 = vsel %vm161, %v2084, %v2085
    %v2087 = vrot.slane %v2061, 1
    %v2088 = vrot.slane %v2077, 1
    %v2089 = vsel %vm161, %v2087, %v2088
    %v2090 = vrot.slane %v2062, 1
    %v2091 = vrot.slane %v2078, 1
    %v2092 = vsel %vm161, %v2090, %v2091
    %v2093 = vrot.slane %v2063, 1
    %v2094 = vrot.slane %v2079, 1
    %v2095 = vsel %vm161, %v2093, %v2094
    %v2096 = vrot.slane %v2064, 1
    %v2097 = vrot.slane %v2080, 1
    %v2098 = vsel %vm161, %v2096, %v2097
    %v2099 = vrot.slane %v2065, 1
    %v2100 = vrot.slane %v2081, 1
    %v2101 = vsel %vm161, %v2099, %v2100
    %v2102 = vrot.slane %v2066, 1
    %v2103 = vrot.slane %v2082, 1
    %v2104 = vsel %vm161, %v2102, %v2103
    %v2105 = vrot.slane %v2067, 1
    %v2106 = vrot.slane %v2083, 1
    %v2107 = vsel %vm161, %v2105, %v2106
    %v2108 = vrot.slane %v2060, 2
    %v2109 = vrot.slane %v2076, 2
    %v2110 = vsel %vm266, %v2108, %v2109
    %v2111 = vrot.slane %v2061, 2
    %v2112 = vrot.slane %v2077, 2
    %v2113 = vsel %vm266, %v2111, %v2112
    %v2114 = vrot.slane %v2062, 2
    %v2115 = vrot.slane %v2078, 2
    %v2116 = vsel %vm266, %v2114, %v2115
    %v2117 = vrot.slane %v2063, 2
    %v2118 = vrot.slane %v2079, 2
    %v2119 = vsel %vm266, %v2117, %v2118
    %v2120 = vrot.slane %v2064, 2
    %v2121 = vrot.slane %v2080, 2
    %v2122 = vsel %vm266, %v2120, %v2121
    %v2123 = vrot.slane %v2065, 2
    %v2124 = vrot.slane %v2081, 2
    %v2125 = vsel %vm266, %v2123, %v2124
    %v2126 = vrot.slane %v2066, 2
    %v2127 = vrot.slane %v2082, 2
    %v2128 = vsel %vm266, %v2126, %v2127
    %v2129 = vrot.slane %v2067, 2
    %v2130 = vrot.slane %v2083, 2
    %v2131 = vsel %vm266, %v2129, %v2130
    %v2132 = vrot.slane %v2060, 3
    %v2133 = vrot.slane %v2076, 3
    %v2134 = vsel %vm371, %v2132, %v2133
    %v2135 = vrot.slane %v2061, 3
    %v2136 = vrot.slane %v2077, 3
    %v2137 = vsel %vm371, %v2135, %v2136
    %v2138 = vrot.slane %v2062, 3
    %v2139 = vrot.slane %v2078, 3
    %v2140 = vsel %vm371, %v2138, %v2139
    %v2141 = vrot.slane %v2063, 3
    %v2142 = vrot.slane %v2079, 3
    %v2143 = vsel %vm371, %v2141, %v2142
    %v2144 = vrot.slane %v2064, 3
    %v2145 = vrot.slane %v2080, 3
    %v2146 = vsel %vm371, %v2144, %v2145
    %v2147 = vrot.slane %v2065, 3
    %v2148 = vrot.slane %v2081, 3
    %v2149 = vsel %vm371, %v2147, %v2148
    %v2150 = vrot.slane %v2066, 3
    %v2151 = vrot.slane %v2082, 3
    %v2152 = vsel %vm371, %v2150, %v2151
    %v2153 = vrot.slane %v2067, 3
    %v2154 = vrot.slane %v2083, 3
    %v2155 = vsel %vm371, %v2153, %v2154
    %v2156 = vcombine.low %v2005, %v2006
    %v2157 = vcombine.low %v2009, %v2010
    %v2158 = vcombine.low %v2013, %v2014
    %v2159 = vcombine.low %v2017, %v2018
    %v2160 = vcombine.low %v2021, %v2022
    %v2161 = vcombine.low %v2025, %v2026
    %v2162 = vcombine.low %v2029, %v2030
    %v2163 = vcombine.low %v2033, %v2034
    %v2164 = vcombine.low %v2060, %v2086
    %v2165 = vcombine.high %v2060, %v2086
    %v2166 = vcombine.low %v2110, %v2134
    %v2167 = vcombine.high %v2110, %v2134
    %v2168 = vcombine.high %v2156, %v2156
    %v2169 = vcombine.low %v2006, %v2085
    %v2170 = vcombine.low %v2109, %v2133
    %v2171 = vcombine.low %v2061, %v2089
    %v2172 = vcombine.high %v2061, %v2089
    %v2173 = vcombine.low %v2113, %v2137
    %v2174 = vcombine.high %v2113, %v2137
    %v2175 = vcombine.high %v2157, %v2157
    %v2176 = vcombine.low %v2010, %v2088
    %v2177 = vcombine.low %v2112, %v2136
    %v2178 = vcombine.low %v2062, %v2092
    %v2179 = vcombine.high %v2062, %v2092
    %v2180 = vcombine.low %v2116, %v2140
    %v2181 = vcombine.high %v2116, %v2140
    %v2182 = vcombine.high %v2158, %v2158
    %v2183 = vcombine.low %v2014, %v2091
    %v2184 = vcombine.low %v2115, %v2139
    %v2185 = vcombine.low %v2063, %v2095
    %v2186 = vcombine.high %v2063, %v2095
    %v2187 = vcombine.low %v2119, %v2143
    %v2188 = vcombine.high %v2119, %v2143
    %v2189 = vcombine.high %v2159, %v2159
    %v2190 = vcombine.low %v2018, %v2094
    %v2191 = vcombine.low %v2118, %v2142
    %v2192 = vcombine.low %v2064, %v2098
    %v2193 = vcombine.high %v2064, %v2098
    %v2194 = vcombine.low %v2122, %v2146
    %v2195 = vcombine.high %v2122, %v2146
    %v2196 = vcombine.high %v2160, %v2160
    %v2197 = vcombine.low %v2022, %v2097
    %v2198 = vcombine.low %v2121, %v2145
    %v2199 = vcombine.low %v2065, %v2101
    %v2200 = vcombine.high %v2065, %v2101
    %v2201 = vcombine.low %v2125, %v2149
    %v2202 = vcombine.high %v2125, %v2149
    %v2203 = vcombine.high %v2161, %v2161
    %v2204 = vcombine.low %v2026, %v2100
    %v2205 = vcombine.low %v2124, %v2148
    %v2206 = vcombine.low %v2066, %v2104
    %v2207 = vcombine.high %v2066, %v2104
    %v2208 = vcombine.low %v2128, %v2152
    %v2209 = vcombine.high %v2128, %v2152
    %v2210 = vcombine.high %v2162, %v2162
    %v2211 = vcombine.low %v2030, %v2103
    %v2212 = vcombine.low %v2127, %v2151
    %v2213 = vcombine.low %v2067, %v2107
    %v2214 = vcombine.high %v2067, %v2107
    %v2215 = vcombine.low %v2131, %v2155
    %v2216 = vcombine.high %v2131, %v2155
    %v2217 = vcombine.high %v2163, %v2163
    %v2218 = vcombine.low %v2034, %v2106
    %v2219 = vcombine.low %v2130, %v2154
    %v2220 = vld [vmem:[#allocation4] sm:$0xff]
    %v2221 = vld [vmem:[#allocation4 + $0x8] sm:$0xff]
    %v2222 = vld [vmem:[#allocation4 + $0x10] sm:$0xff]
    %v2223 = vld [vmem:[#allocation4 + $0x18] sm:$0xff]
    %v2224 = vld [vmem:[#allocation4 + $0x20] sm:$0xff]
    %v2225 = vld [vmem:[#allocation4 + $0x28] sm:$0xff]
    %v2226 = vld [vmem:[#allocation4 + $0x30] sm:$0xff]
    %v2227 = vld [vmem:[#allocation4 + $0x38] sm:$0xff]
    %v2228 = vld [vmem:[#allocation4 + $0x40] sm:$0xff]
    %v2229 = vld [vmem:[#allocation4 + $0x48] sm:$0xff]
    %v2230 = vld [vmem:[#allocation4 + $0x50] sm:$0xff]
    %v2231 = vld [vmem:[#allocation4 + $0x58] sm:$0xff]
    %v2232 = vld [vmem:[#allocation4 + $0x60] sm:$0xff]
    %v2233 = vld [vmem:[#allocation4 + $0x68] sm:$0xff]
    %v2234 = vld [vmem:[#allocation4 + $0x70] sm:$0xff]
    %v2235 = vld [vmem:[#allocation4 + $0x78] sm:$0xff]
    %v2236 = vld [vmem:[#allocation4 + $0x80] sm:$0xff]
    %v2237 = vld [vmem:[#allocation4 + $0x88] sm:$0xff]
    %v2238 = vld [vmem:[#allocation4 + $0x90] sm:$0xff]
    %v2239 = vld [vmem:[#allocation4 + $0x98] sm:$0xff]
    %v2240 = vld [vmem:[#allocation4 + $0xa0] sm:$0xff]
    %v2241 = vld [vmem:[#allocation4 + $0xa8] sm:$0xff]
    %v2242 = vld [vmem:[#allocation4 + $0xb0] sm:$0xff]
    %v2243 = vld [vmem:[#allocation4 + $0xb8] sm:$0xff]
    %v2244 = vld [vmem:[#allocation4 + $0xc0] sm:$0xff]
    %v2245 = vld [vmem:[#allocation4 + $0xc8] sm:$0xff]
    %v2246 = vld [vmem:[#allocation4 + $0xd0] sm:$0xff]
    %v2247 = vld [vmem:[#allocation4 + $0xd8] sm:$0xff]
    %v2248 = vld [vmem:[#allocation4 + $0xe0] sm:$0xff]
    %v2249 = vld [vmem:[#allocation4 + $0xe8] sm:$0xff]
    %v2250 = vld [vmem:[#allocation4 + $0xf0] sm:$0xff]
    %v2251 = vld [vmem:[#allocation4 + $0xf8] sm:$0xff]
    %v2252 = vld [vmem:[#allocation4 + $0x100] sm:$0xff]
    %v2253 = vld [vmem:[#allocation4 + $0x108] sm:$0xff]
    %v2254 = vld [vmem:[#allocation4 + $0x110] sm:$0xff]
    %v2255 = vld [vmem:[#allocation4 + $0x118] sm:$0xff]
    %v2256 = vld [vmem:[#allocation4 + $0x120] sm:$0xff]
    %v2257 = vld [vmem:[#allocation4 + $0x128] sm:$0xff]
    %v2258 = vld [vmem:[#allocation4 + $0x130] sm:$0xff]
    %v2259 = vld [vmem:[#allocation4 + $0x138] sm:$0xff]
    %v2260 = vld [vmem:[#allocation4 + $0x140] sm:$0xff]
    %v2261 = vld [vmem:[#allocation4 + $0x148] sm:$0xff]
    %v2262 = vld [vmem:[#allocation4 + $0x150] sm:$0xff]
    %v2263 = vld [vmem:[#allocation4 + $0x158] sm:$0xff]
    %v2264 = vld [vmem:[#allocation4 + $0x160] sm:$0xff]
    %v2265 = vld [vmem:[#allocation4 + $0x168] sm:$0xff]
    %v2266 = vld [vmem:[#allocation4 + $0x170] sm:$0xff]
    %v2267 = vld [vmem:[#allocation4 + $0x178] sm:$0xff]
    %v2268 = vld [vmem:[#allocation4 + $0x180] sm:$0xff]
    %v2269 = vld [vmem:[#allocation4 + $0x188] sm:$0xff]
    %v2270 = vld [vmem:[#allocation4 + $0x190] sm:$0xff]
    %v2271 = vld [vmem:[#allocation4 + $0x198] sm:$0xff]
    %v2272 = vld [vmem:[#allocation4 + $0x1a0] sm:$0xff]
    %v2273 = vld [vmem:[#allocation4 + $0x1a8] sm:$0xff]
    %v2274 = vld [vmem:[#allocation4 + $0x1b0] sm:$0xff]
    %v2275 = vld [vmem:[#allocation4 + $0x1b8] sm:$0xff]
    %v2276 = vld [vmem:[#allocation4 + $0x1c0] sm:$0xff]
    %v2277 = vld [vmem:[#allocation4 + $0x1c8] sm:$0xff]
    %v2278 = vld [vmem:[#allocation4 + $0x1d0] sm:$0xff]
    %v2279 = vld [vmem:[#allocation4 + $0x1d8] sm:$0xff]
    %v2280 = vld [vmem:[#allocation4 + $0x1e0] sm:$0xff]
    %v2281 = vld [vmem:[#allocation4 + $0x1e8] sm:$0xff]
    %v2282 = vld [vmem:[#allocation4 + $0x1f0] sm:$0xff]
    %v2283 = vld [vmem:[#allocation4 + $0x1f8] sm:$0xff]
    %v2284 = vld [vmem:[#allocation4 + $0x200] sm:$0xff]
    %v2285 = vld [vmem:[#allocation4 + $0x208] sm:$0xff]
    %v2286 = vld [vmem:[#allocation4 + $0x210] sm:$0xff]
    %v2287 = vld [vmem:[#allocation4 + $0x218] sm:$0xff]
    %v2288 = vld [vmem:[#allocation4 + $0x220] sm:$0xff]
    %v2289 = vld [vmem:[#allocation4 + $0x228] sm:$0xff]
    %v2290 = vld [vmem:[#allocation4 + $0x230] sm:$0xff]
    %v2291 = vld [vmem:[#allocation4 + $0x238] sm:$0xff]
    %v2292 = vld [vmem:[#allocation4 + $0x240] sm:$0xff]
    %v2293 = vld [vmem:[#allocation4 + $0x248] sm:$0xff]
    %v2294 = vld [vmem:[#allocation4 + $0x250] sm:$0xff]
    %v2295 = vld [vmem:[#allocation4 + $0x258] sm:$0xff]
    %v2296 = vld [vmem:[#allocation4 + $0x260] sm:$0xff]
    %v2297 = vld [vmem:[#allocation4 + $0x268] sm:$0xff]
    %v2298 = vld [vmem:[#allocation4 + $0x270] sm:$0xff]
    %v2299 = vld [vmem:[#allocation4 + $0x278] sm:$0xff]
    %v2300 = vld [vmem:[#allocation4 + $0x280] sm:$0xff]
    %v2301 = vld [vmem:[#allocation4 + $0x288] sm:$0xff]
    %v2302 = vld [vmem:[#allocation4 + $0x290] sm:$0xff]
    %v2303 = vld [vmem:[#allocation4 + $0x298] sm:$0xff]
    %v2304 = vld [vmem:[#allocation4 + $0x2a0] sm:$0xff]
    %v2305 = vld [vmem:[#allocation4 + $0x2a8] sm:$0xff]
    %v2306 = vld [vmem:[#allocation4 + $0x2b0] sm:$0xff]
    %v2307 = vld [vmem:[#allocation4 + $0x2b8] sm:$0xff]
    %v2308 = vld [vmem:[#allocation4 + $0x2c0] sm:$0xff]
    %v2309 = vld [vmem:[#allocation4 + $0x2c8] sm:$0xff]
    %v2310 = vld [vmem:[#allocation4 + $0x2d0] sm:$0xff]
    %v2311 = vld [vmem:[#allocation4 + $0x2d8] sm:$0xff]
    %v2312 = vld [vmem:[#allocation4 + $0x2e0] sm:$0xff]
    %v2313 = vld [vmem:[#allocation4 + $0x2e8] sm:$0xff]
    %v2314 = vld [vmem:[#allocation4 + $0x2f0] sm:$0xff]
    %v2315 = vld [vmem:[#allocation4 + $0x2f8] sm:$0xff]
    %v2316 = vld [vmem:[#allocation4 + $0x300] sm:$0xff]
    %v2317 = vld [vmem:[#allocation4 + $0x308] sm:$0xff]
    %v2318 = vld [vmem:[#allocation4 + $0x310] sm:$0xff]
    %v2319 = vld [vmem:[#allocation4 + $0x318] sm:$0xff]
    %v2320 = vld [vmem:[#allocation4 + $0x320] sm:$0xff]
    %v2321 = vld [vmem:[#allocation4 + $0x328] sm:$0xff]
    %v2322 = vld [vmem:[#allocation4 + $0x330] sm:$0xff]
    %v2323 = vld [vmem:[#allocation4 + $0x338] sm:$0xff]
    %v2324 = vld [vmem:[#allocation4 + $0x340] sm:$0xff]
    %v2325 = vld [vmem:[#allocation4 + $0x348] sm:$0xff]
    %v2326 = vld [vmem:[#allocation4 + $0x350] sm:$0xff]
    %v2327 = vld [vmem:[#allocation4 + $0x358] sm:$0xff]
    %v2328 = vld [vmem:[#allocation4 + $0x360] sm:$0xff]
    %v2329 = vld [vmem:[#allocation4 + $0x368] sm:$0xff]
    %v2330 = vld [vmem:[#allocation4 + $0x370] sm:$0xff]
    %v2331 = vld [vmem:[#allocation4 + $0x378] sm:$0xff]
    %v2332 = vld [vmem:[#allocation4 + $0x380] sm:$0xff]
    %v2333 = vld [vmem:[#allocation4 + $0x388] sm:$0xff]
    %v2334 = vld [vmem:[#allocation4 + $0x390] sm:$0xff]
    %v2335 = vld [vmem:[#allocation4 + $0x398] sm:$0xff]
    %v2336 = vld [vmem:[#allocation4 + $0x3a0] sm:$0xff]
    %v2337 = vld [vmem:[#allocation4 + $0x3a8] sm:$0xff]
    %v2338 = vld [vmem:[#allocation4 + $0x3b0] sm:$0xff]
    %v2339 = vld [vmem:[#allocation4 + $0x3b8] sm:$0xff]
    %v2340 = vld [vmem:[#allocation4 + $0x3c0] sm:$0xff]
    %v2341 = vld [vmem:[#allocation4 + $0x3c8] sm:$0xff]
    %v2342 = vld [vmem:[#allocation4 + $0x3d0] sm:$0xff]
    %v2343 = vld [vmem:[#allocation4 + $0x3d8] sm:$0xff]
    %v2344 = vld [vmem:[#allocation4 + $0x3e0] sm:$0xff]
    %v2345 = vld [vmem:[#allocation4 + $0x3e8] sm:$0xff]
    %v2346 = vld [vmem:[#allocation4 + $0x3f0] sm:$0xff]
    %v2347 = vld [vmem:[#allocation4 + $0x3f8] sm:$0xff]
    %v2348 = vld [vmem:[#allocation4 + $0x400] sm:$0xff]
    %v2349 = vld [vmem:[#allocation4 + $0x408] sm:$0xff]
    %v2350 = vld [vmem:[#allocation4 + $0x410] sm:$0xff]
    %v2351 = vld [vmem:[#allocation4 + $0x418] sm:$0xff]
    %v2352 = vld [vmem:[#allocation4 + $0x420] sm:$0xff]
    %v2353 = vld [vmem:[#allocation4 + $0x428] sm:$0xff]
    %v2354 = vld [vmem:[#allocation4 + $0x430] sm:$0xff]
    %v2355 = vld [vmem:[#allocation4 + $0x438] sm:$0xff]
    %v2356 = vld [vmem:[#allocation4 + $0x440] sm:$0xff]
    %v2357 = vld [vmem:[#allocation4 + $0x448] sm:$0xff]
    %v2358 = vld [vmem:[#allocation4 + $0x450] sm:$0xff]
    %v2359 = vld [vmem:[#allocation4 + $0x458] sm:$0xff]
    %v2360 = vld [vmem:[#allocation4 + $0x460] sm:$0xff]
    %v2361 = vld [vmem:[#allocation4 + $0x468] sm:$0xff]
    %v2362 = vld [vmem:[#allocation4 + $0x470] sm:$0xff]
    %v2363 = vld [vmem:[#allocation4 + $0x478] sm:$0xff]
    %v2364 = vld [vmem:[#allocation4 + $0x480] sm:$0xff]
    %v2365 = vld [vmem:[#allocation4 + $0x488] sm:$0xff]
    %v2366 = vld [vmem:[#allocation4 + $0x490] sm:$0xff]
    %v2367 = vld [vmem:[#allocation4 + $0x498] sm:$0xff]
    %v2368 = vld [vmem:[#allocation4 + $0x4a0] sm:$0xff]
    %v2369 = vld [vmem:[#allocation4 + $0x4a8] sm:$0xff]
    %v2370 = vld [vmem:[#allocation4 + $0x4b0] sm:$0xff]
    %v2371 = vld [vmem:[#allocation4 + $0x4b8] sm:$0xff]
    %v2372 = vld [vmem:[#allocation4 + $0x4c0] sm:$0xff]
    %v2373 = vld [vmem:[#allocation4 + $0x4c8] sm:$0xff]
    %v2374 = vld [vmem:[#allocation4 + $0x4d0] sm:$0xff]
    %v2375 = vld [vmem:[#allocation4 + $0x4d8] sm:$0xff]
    %v2376 = vld [vmem:[#allocation4 + $0x4e0] sm:$0xff]
    %v2377 = vld [vmem:[#allocation4 + $0x4e8] sm:$0xff]
    %v2378 = vld [vmem:[#allocation4 + $0x4f0] sm:$0xff]
    %v2379 = vld [vmem:[#allocation4 + $0x4f8] sm:$0xff]
    %v2380 = vld [vmem:[%s4] sm:$0x3]
    %v2382 = vlaneseq
    %v2383 = vshrl.u32 %v2382, 7
    %v2384 = vsub.s32 0, %v2383
    %v2385 = vrot.slane %v2380, %v2384
    %v2386 = vlaneseq
    %v2387 = vshrl.u32 %v2386, 7
    %v2388 = vsub.s32 1, %v2387
    %v2389 = vrot.slane %v2380, %v2388
    %v2392 = vcombine.low %v2164, %v2165
    %v2393 = vcombine.high %v2164, %v2165
    %v2394 = vcombine.low %v2166, %v2167
    %v2395 = vcombine.high %v2166, %v2167
    %v2396 = vcombine.low %v2156, %v2168
    %v2397 = vcombine.low %v2169, %v2171
    %v2398 = vcombine.high %v2169, %v2171
    %v2399 = vcombine.low %v2170, %v2173
    %v2400 = vcombine.high %v2170, %v2173
    %v2401 = vcombine.low %v2007, %v2157
    %v2402 = vcombine.low %v2172, %v2176
    %v2403 = vcombine.high %v2172, %v2176
    %v2404 = vcombine.low %v2174, %v2177
    %v2405 = vcombine.high %v2174, %v2177
    %v2406 = vcombine.low %v2175, %v2011
    %v2407 = vcombine.low %v2178, %v2179
    %v2408 = vcombine.high %v2178, %v2179
    %v2409 = vcombine.low %v2180, %v2181
    %v2410 = vcombine.high %v2180, %v2181
    %v2411 = vcombine.low %v2158, %v2182
    %v2412 = vcombine.low %v2183, %v2185
    %v2413 = vcombine.high %v2183, %v2185
    %v2414 = vcombine.low %v2184, %v2187
    %v2415 = vcombine.high %v2184, %v2187
    %v2416 = vcombine.low %v2015, %v2159
    %v2417 = vcombine.low %v2186, %v2190
    %v2418 = vcombine.high %v2186, %v2190
    %v2419 = vcombine.low %v2188, %v2191
    %v2420 = vcombine.high %v2188, %v2191
    %v2421 = vcombine.low %v2189, %v2019
    %v2422 = vcombine.low %v2192, %v2193
    %v2423 = vcombine.high %v2192, %v2193
    %v2424 = vcombine.low %v2194, %v2195
    %v2425 = vcombine.high %v2194, %v2195
    %v2426 = vcombine.low %v2160, %v2196
    %v2427 = vcombine.low %v2197, %v2199
    %v2428 = vcombine.high %v2197, %v2199
    %v2429 = vcombine.low %v2198, %v2201
    %v2430 = vcombine.high %v2198, %v2201
    %v2431 = vcombine.low %v2023, %v2161
    %v2432 = vcombine.low %v2200, %v2204
    %v2433 = vcombine.high %v2200, %v2204
    %v2434 = vcombine.low %v2202, %v2205
    %v2435 = vcombine.high %v2202, %v2205
    %v2436 = vcombine.low %v2203, %v2027
    %v2437 = vcombine.low %v2206, %v2207
    %v2438 = vcombine.high %v2206, %v2207
    %v2439 = vcombine.low %v2208, %v2209
    %v2440 = vcombine.high %v2208, %v2209
    %v2441 = vcombine.low %v2162, %v2210
    %v2442 = vcombine.low %v2211, %v2213
    %v2443 = vcombine.high %v2211, %v2213
    %v2444 = vcombine.low %v2212, %v2215
    %v2445 = vcombine.high %v2212, %v2215
    %v2446 = vcombine.low %v2031, %v2163
    %v2447 = vcombine.low %v2214, %v2218
    %v2448 = vcombine.high %v2214, %v2218
    %v2449 = vcombine.low %v2216, %v2219
    %v2450 = vcombine.high %v2216, %v2219
    %v2451 = vcombine.low %v2217, %v2035
    %2512 = vmatprep.subr.mxu0 %v2221
    %2513 = vmatpush1.msra.mxu0 %v2220
    %2514 = vmatprep.subr.mxu0 %v2223
    %2515 = vmatpush1.msra.mxu0 %v2222
    %2516 = vmatprep.subr.mxu0 %v2225
    %2517 = vmatpush1.msra.mxu0 %v2224
    %2518 = vmatprep.subr.mxu0 %v2227
    %2519 = vmatpush1.msra.mxu0 %v2226
    %2520 = vmatprep.subr.mxu0 %v2229
    %2521 = vmatpush1.msra.mxu0 %v2228
    %2522 = vmatprep.subr.mxu0 %v2231
    %2523 = vmatpush1.msra.mxu0 %v2230
    %2524 = vmatprep.subr.mxu0 %v2233
    %2525 = vmatpush1.msra.mxu0 %v2232
    %2526 = vmatprep.subr.mxu0 %v2235
    %2527 = vmatpush1.msra.mxu0 %v2234
    %2528 = vmatprep.subr.mxu0 %v2237
    %2529 = vmatpush1.msra.mxu0 %v2236
    %2530 = vmatprep.subr.mxu0 %v2239
    %2531 = vmatpush1.msra.mxu0 %v2238
    %2532 = vmatprep.subr.mxu0 %v2241
    %2533 = vmatpush1.msra.mxu0 %v2240
    %2534 = vmatprep.subr.mxu0 %v2243
    %2535 = vmatpush1.msra.mxu0 %v2242
    %2536 = vmatprep.subr.mxu0 %v2245
    %2537 = vmatpush1.msra.mxu0 %v2244
    %2538 = vmatprep.subr.mxu0 %v2247
    %2539 = vmatpush1.msra.mxu0 %v2246
    %2540 = vmatprep.subr.mxu0 %v2249
    %2541 = vmatpush1.msra.mxu0 %v2248
    %2542 = vmatprep.subr.mxu0 %v2251
    %2543 = vmatpush1.msra.mxu0 %v2250
    %2544 = vmatprep.subr.mxu0 %v2253
    %2545 = vmatpush1.msra.mxu0 %v2252
    %2546 = vmatprep.subr.mxu0 %v2255
    %2547 = vmatpush1.msra.mxu0 %v2254
    %2548 = vmatprep.subr.mxu0 %v2257
    %2549 = vmatpush1.msra.mxu0 %v2256
    %2550 = vmatprep.subr.mxu0 %v2259
    %2551 = vmatpush1.msra.mxu0 %v2258
    %2552 = vmatprep.subr.mxu0 %v2261
    %2553 = vmatpush1.msra.mxu0 %v2260
    %2554 = vmatprep.subr.mxu0 %v2263
    %2555 = vmatpush1.msra.mxu0 %v2262
    %2556 = vmatprep.subr.mxu0 %v2265
    %2557 = vmatpush1.msra.mxu0 %v2264
    %2558 = vmatprep.subr.mxu0 %v2267
    %2559 = vmatpush1.msra.mxu0 %v2266
    %2560 = vmatprep.subr.mxu0 %v2269
    %2561 = vmatpush1.msra.mxu0 %v2268
    %2562 = vmatprep.subr.mxu0 %v2271
    %2563 = vmatpush1.msra.mxu0 %v2270
    %2564 = vmatprep.subr.mxu0 %v2273
    %2565 = vmatpush1.msra.mxu0 %v2272
    %2566 = vmatprep.subr.mxu0 %v2275
    %2567 = vmatpush1.msra.mxu0 %v2274
    %2568 = vmatprep.subr.mxu0 %v2277
    %2569 = vmatpush1.msra.mxu0 %v2276
    %2570 = vmatprep.subr.mxu0 %v2279
    %2571 = vmatpush1.msra.mxu0 %v2278
    %2572 = vmatprep.subr.mxu0 %v2281
    %2573 = vmatpush1.msra.mxu0 %v2280
    %2574 = vmatprep.subr.mxu0 %v2283
    %2575 = vmatpush1.msra.mxu0 %v2282
    %2576 = vmatprep.mubr.f32.mxu0 %v2393
    %2577 = vmatmul.mubr.f32.gmra.mrb[0].mxu0 %v2392
    %v2578 = vpop.f32.mrb[0].mxu0
    %v2579 = vadd.f32 %v2385, %v2578
    %v2580 = vpop.f32.mrb[0].mxu0
    %v2581 = vadd.f32 %v2389, %v2580
    %2582 = vmatprep.mubr.f32.mxu0 %v2398
    %2583 = vmatmul.mubr.f32.gmra.mrb[0].mxu0 %v2397
    %v2584 = vpop.f32.mrb[0].mxu0
    %v2585 = vadd.f32 %v2385, %v2584
    %v2586 = vpop.f32.mrb[0].mxu0
    %v2587 = vadd.f32 %v2389, %v2586
    %2588 = vmatprep.mubr.f32.mxu0 %v2403
    %2589 = vmatmul.mubr.f32.gmra.mrb[0].mxu0 %v2402
    %v2590 = vpop.f32.mrb[0].mxu0
    %v2591 = vadd.f32 %v2385, %v2590
    %v2592 = vpop.f32.mrb[0].mxu0
    %v2593 = vadd.f32 %v2389, %v2592
    %2594 = vmatprep.mubr.f32.mxu0 %v2408
    %2595 = vmatmul.mubr.f32.gmra.mrb[0].mxu0 %v2407
    %v2596 = vpop.f32.mrb[0].mxu0
    %v2597 = vadd.f32 %v2385, %v2596
    %v2598 = vpop.f32.mrb[0].mxu0
    %v2599 = vadd.f32 %v2389, %v2598
    %2600 = vmatprep.mubr.f32.mxu0 %v2413
    %2601 = vmatmul.mubr.f32.gmra.mrb[0].mxu0 %v2412
    %v2602 = vpop.f32.mrb[0].mxu0
    %v2603 = vadd.f32 %v2385, %v2602
    %v2604 = vpop.f32.mrb[0].mxu0
    %v2605 = vadd.f32 %v2389, %v2604
    %2606 = vmatprep.mubr.f32.mxu0 %v2418
    %2607 = vmatmul.mubr.f32.gmra.mrb[0].mxu0 %v2417
    %v2608 = vpop.f32.mrb[0].mxu0
    %v2609 = vadd.f32 %v2385, %v2608
    %v2610 = vpop.f32.mrb[0].mxu0
    %v2611 = vadd.f32 %v2389, %v2610
    %2612 = vmatprep.mubr.f32.mxu0 %v2423
    %2613 = vmatmul.mubr.f32.gmra.mrb[0].mxu0 %v2422
    %v2614 = vpop.f32.mrb[0].mxu0
    %v2615 = vadd.f32 %v2385, %v2614
    %v2616 = vpop.f32.mrb[0].mxu0
    %v2617 = vadd.f32 %v2389, %v2616
    %2618 = vmatprep.mubr.f32.mxu0 %v2428
    %2619 = vmatmul.mubr.f32.gmra.mrb[0].mxu0 %v2427
    %v2620 = vpop.f32.mrb[0].mxu0
    %v2621 = vadd.f32 %v2385, %v2620
    %v2622 = vpop.f32.mrb[0].mxu0
    %v2623 = vadd.f32 %v2389, %v2622
    %2624 = vmatprep.mubr.f32.mxu0 %v2433
    %2625 = vmatmul.mubr.f32.gmra.mrb[0].mxu0 %v2432
    %v2626 = vpop.f32.mrb[0].mxu0
    %v2627 = vadd.f32 %v2385, %v2626
    %v2628 = vpop.f32.mrb[0].mxu0
    %v2629 = vadd.f32 %v2389, %v2628
    %2630 = vmatprep.mubr.f32.mxu0 %v2438
    %2631 = vmatmul.mubr.f32.gmra.mrb[0].mxu0 %v2437
    %v2632 = vpop.f32.mrb[0].mxu0
    %v2633 = vadd.f32 %v2385, %v2632
    %v2634 = vpop.f32.mrb[0].mxu0
    %v2635 = vadd.f32 %v2389, %v2634
    %2636 = vmatprep.mubr.f32.mxu0 %v2443
    %2637 = vmatmul.mubr.f32.gmra.mrb[0].mxu0 %v2442
    %v2638 = vpop.f32.mrb[0].mxu0
    %v2639 = vadd.f32 %v2385, %v2638
    %v2640 = vpop.f32.mrb[0].mxu0
    %v2641 = vadd.f32 %v2389, %v2640
    %2642 = vmatprep.mubr.f32.mxu0 %v2448
    %2643 = vmatmul.mubr.f32.gmra.mrb[0].mxu0 %v2447
    %v2644 = vpop.f32.mrb[0].mxu0
    %v2645 = vadd.f32 %v2385, %v2644
    %v2646 = vpop.f32.mrb[0].mxu0
    %v2647 = vadd.f32 %v2389, %v2646
    %2648 = vdwg.mxu0
    %2649 = vmatprep.subr.mxu0 %v2285
    %2650 = vmatpush1.msra.mxu0 %v2284
    %2651 = vmatprep.subr.mxu0 %v2287
    %2652 = vmatpush1.msra.mxu0 %v2286
    %2653 = vmatprep.subr.mxu0 %v2289
    %2654 = vmatpush1.msra.mxu0 %v2288
    %2655 = vmatprep.subr.mxu0 %v2291
    %2656 = vmatpush1.msra.mxu0 %v2290
    %2657 = vmatprep.subr.mxu0 %v2293
    %2658 = vmatpush1.msra.mxu0 %v2292
    %2659 = vmatprep.subr.mxu0 %v2295
    %2660 = vmatpush1.msra.mxu0 %v2294
    %2661 = vmatprep.subr.mxu0 %v2297
    %2662 = vmatpush1.msra.mxu0 %v2296
    %2663 = vmatprep.subr.mxu0 %v2299
    %2664 = vmatpush1.msra.mxu0 %v2298
    %2665 = vmatprep.subr.mxu0 %v2301
    %2666 = vmatpush1.msra.mxu0 %v2300
    %2667 = vmatprep.subr.mxu0 %v2303
    %2668 = vmatpush1.msra.mxu0 %v2302
    %2669 = vmatprep.subr.mxu0 %v2305
    %2670 = vmatpush1.msra.mxu0 %v2304
    %2671 = vmatprep.subr.mxu0 %v2307
    %2672 = vmatpush1.msra.mxu0 %v2306
    %2673 = vmatprep.subr.mxu0 %v2309
    %2674 = vmatpush1.msra.mxu0 %v2308
    %2675 = vmatprep.subr.mxu0 %v2311
    %2676 = vmatpush1.msra.mxu0 %v2310
    %2677 = vmatprep.subr.mxu0 %v2313
    %2678 = vmatpush1.msra.mxu0 %v2312
    %2679 = vmatprep.subr.mxu0 %v2315
    %2680 = vmatpush1.msra.mxu0 %v2314
    %2681 = vmatprep.subr.mxu0 %v2317
    %2682 = vmatpush1.msra.mxu0 %v2316
    %2683 = vmatprep.subr.mxu0 %v2319
    %2684 = vmatpush1.msra.mxu0 %v2318
    %2685 = vmatprep.subr.mxu0 %v2321
    %2686 = vmatpush1.msra.mxu0 %v2320
    %2687 = vmatprep.subr.mxu0 %v2323
    %2688 = vmatpush1.msra.mxu0 %v2322
    %2689 = vmatprep.subr.mxu0 %v2325
    %2690 = vmatpush1.msra.mxu0 %v2324
    %2691 = vmatprep.subr.mxu0 %v2327
    %2692 = vmatpush1.msra.mxu0 %v2326
    %2693 = vmatprep.subr.mxu0 %v2329
    %2694 = vmatpush1.msra.mxu0 %v2328
    %2695 = vmatprep.subr.mxu0 %v2331
    %2696 = vmatpush1.msra.mxu0 %v2330
    %2697 = vmatprep.subr.mxu0 %v2333
    %2698 = vmatpush1.msra.mxu0 %v2332
    %2699 = vmatprep.subr.mxu0 %v2335
    %2700 = vmatpush1.msra.mxu0 %v2334
    %2701 = vmatprep.subr.mxu0 %v2337
    %2702 = vmatpush1.msra.mxu0 %v2336
    %2703 = vmatprep.subr.mxu0 %v2339
    %2704 = vmatpush1.msra.mxu0 %v2338
    %2705 = vmatprep.subr.mxu0 %v2341
    %2706 = vmatpush1.msra.mxu0 %v2340
    %2707 = vmatprep.subr.mxu0 %v2343
    %2708 = vmatpush1.msra.mxu0 %v2342
    %2709 = vmatprep.subr.mxu0 %v2345
    %2710 = vmatpush1.msra.mxu0 %v2344
    %2711 = vmatprep.subr.mxu0 %v2347
    %2712 = vmatpush1.msra.mxu0 %v2346
    %2713 = vmatprep.mubr.f32.mxu0 %v2395
    %2714 = vmatmul.mubr.f32.gmra.mrb[0].mxu0 %v2394
    %v2715 = vpop.f32.mrb[0].mxu0
    %v2716 = vadd.f32 %v2579, %v2715
    %v2717 = vpop.f32.mrb[0].mxu0
    %v2718 = vadd.f32 %v2581, %v2717
    %2719 = vmatprep.mubr.f32.mxu0 %v2400
    %2720 = vmatmul.mubr.f32.gmra.mrb[0].mxu0 %v2399
    %v2721 = vpop.f32.mrb[0].mxu0
    %v2722 = vadd.f32 %v2585, %v2721
    %v2723 = vpop.f32.mrb[0].mxu0
    %v2724 = vadd.f32 %v2587, %v2723
    %2725 = vmatprep.mubr.f32.mxu0 %v2405
    %2726 = vmatmul.mubr.f32.gmra.mrb[0].mxu0 %v2404
    %v2727 = vpop.f32.mrb[0].mxu0
    %v2728 = vadd.f32 %v2591, %v2727
    %v2729 = vpop.f32.mrb[0].mxu0
    %v2730 = vadd.f32 %v2593, %v2729
    %2731 = vmatprep.mubr.f32.mxu0 %v2410
    %2732 = vmatmul.mubr.f32.gmra.mrb[0].mxu0 %v2409
    %v2733 = vpop.f32.mrb[0].mxu0
    %v2734 = vadd.f32 %v2597, %v2733
    %v2735 = vpop.f32.mrb[0].mxu0
    %v2736 = vadd.f32 %v2599, %v2735
    %2737 = vmatprep.mubr.f32.mxu0 %v2415
    %2738 = vmatmul.mubr.f32.gmra.mrb[0].mxu0 %v2414
    %v2739 = vpop.f32.mrb[0].mxu0
    %v2740 = vadd.f32 %v2603, %v2739
    %v2741 = vpop.f32.mrb[0].mxu0
    %v2742 = vadd.f32 %v2605, %v2741
    %2743 = vmatprep.mubr.f32.mxu0 %v2420
    %2744 = vmatmul.mubr.f32.gmra.mrb[0].mxu0 %v2419
    %v2745 = vpop.f32.mrb[0].mxu0
    %v2746 = vadd.f32 %v2609, %v2745
    %v2747 = vpop.f32.mrb[0].mxu0
    %v2748 = vadd.f32 %v2611, %v2747
    %2749 = vmatprep.mubr.f32.mxu0 %v2425
    %2750 = vmatmul.mubr.f32.gmra.mrb[0].mxu0 %v2424
    %v2751 = vpop.f32.mrb[0].mxu0
    %v2752 = vadd.f32 %v2615, %v2751
    %v2753 = vpop.f32.mrb[0].mxu0
    %v2754 = vadd.f32 %v2617, %v2753
    %2755 = vmatprep.mubr.f32.mxu0 %v2430
    %2756 = vmatmul.mubr.f32.gmra.mrb[0].mxu0 %v2429
    %v2757 = vpop.f32.mrb[0].mxu0
    %v2758 = vadd.f32 %v2621, %v2757
    %v2759 = vpop.f32.mrb[0].mxu0
    %v2760 = vadd.f32 %v2623, %v2759
    %2761 = vmatprep.mubr.f32.mxu0 %v2435
    %2762 = vmatmul.mubr.f32.gmra.mrb[0].mxu0 %v2434
    %v2763 = vpop.f32.mrb[0].mxu0
    %v2764 = vadd.f32 %v2627, %v2763
    %v2765 = vpop.f32.mrb[0].mxu0
    %v2766 = vadd.f32 %v2629, %v2765
    %2767 = vmatprep.mubr.f32.mxu0 %v2440
    %2768 = vmatmul.mubr.f32.gmra.mrb[0].mxu0 %v2439
    %v2769 = vpop.f32.mrb[0].mxu0
    %v2770 = vadd.f32 %v2633, %v2769
    %v2771 = vpop.f32.mrb[0].mxu0
    %v2772 = vadd.f32 %v2635, %v2771
    %2773 = vmatprep.mubr.f32.mxu0 %v2445
    %2774 = vmatmul.mubr.f32.gmra.mrb[0].mxu0 %v2444
    %v2775 = vpop.f32.mrb[0].mxu0
    %v2776 = vadd.f32 %v2639, %v2775
    %v2777 = vpop.f32.mrb[0].mxu0
    %v2778 = vadd.f32 %v2641, %v2777
    %2779 = vmatprep.mubr.f32.mxu0 %v2450
    %2780 = vmatmul.mubr.f32.gmra.mrb[0].mxu0 %v2449
    %v2781 = vpop.f32.mrb[0].mxu0
    %v2782 = vadd.f32 %v2645, %v2781
    %v2783 = vpop.f32.mrb[0].mxu0
    %v2784 = vadd.f32 %v2647, %v2783
    %2785 = vdwg.mxu0
    %2786 = vmatprep.subr.mxu0 %v2349
    %2787 = vmatpush1.msra.mxu0 %v2348
    %2788 = vmatprep.subr.mxu0 %v2351
    %2789 = vmatpush1.msra.mxu0 %v2350
    %2790 = vmatprep.subr.mxu0 %v2353
    %2791 = vmatpush1.msra.mxu0 %v2352
    %2792 = vmatprep.subr.mxu0 %v2355
    %2793 = vmatpush1.msra.mxu0 %v2354
    %2794 = vmatprep.subr.mxu0 %v2357
    %2795 = vmatpush1.msra.mxu0 %v2356
    %2796 = vmatprep.subr.mxu0 %v2359
    %2797 = vmatpush1.msra.mxu0 %v2358
    %2798 = vmatprep.subr.mxu0 %v2361
    %2799 = vmatpush1.msra.mxu0 %v2360
    %2800 = vmatprep.subr.mxu0 %v2363
    %2801 = vmatpush1.msra.mxu0 %v2362
    %2802 = vmatprep.subr.mxu0 %v2365
    %2803 = vmatpush1.msra.mxu0 %v2364
    %2804 = vmatprep.subr.mxu0 %v2367
    %2805 = vmatpush1.msra.mxu0 %v2366
    %2806 = vmatprep.subr.mxu0 %v2369
    %2807 = vmatpush1.msra.mxu0 %v2368
    %2808 = vmatprep.subr.mxu0 %v2371
    %2809 = vmatpush1.msra.mxu0 %v2370
    %2810 = vmatprep.subr.mxu0 %v2373
    %2811 = vmatpush1.msra.mxu0 %v2372
    %2812 = vmatprep.subr.mxu0 %v2375
    %2813 = vmatpush1.msra.mxu0 %v2374
    %2814 = vmatprep.subr.mxu0 %v2377
    %2815 = vmatpush1.msra.mxu0 %v2376
    %2816 = vmatprep.subr.mxu0 %v2379
    %2817 = vmatpush1.msra.mxu0 %v2378
    %2818 = vmatprep.subr.mxu0 0.0
    %2819 = vmatpush1.msra.mxu0 0.0
    %2820 = vmatprep.subr.mxu0 0.0
    %2821 = vmatpush1.msra.mxu0 0.0
    %2822 = vmatprep.subr.mxu0 0.0
    %2823 = vmatpush1.msra.mxu0 0.0
    %2824 = vmatprep.subr.mxu0 0.0
    %2825 = vmatpush1.msra.mxu0 0.0
    %2826 = vmatprep.subr.mxu0 0.0
    %2827 = vmatpush1.msra.mxu0 0.0
    %2828 = vmatprep.subr.mxu0 0.0
    %2829 = vmatpush1.msra.mxu0 0.0
    %2830 = vmatprep.subr.mxu0 0.0
    %2831 = vmatpush1.msra.mxu0 0.0
    %2832 = vmatprep.subr.mxu0 0.0
    %2833 = vmatpush1.msra.mxu0 0.0
    %2834 = vmatprep.subr.mxu0 0.0
    %2835 = vmatpush1.msra.mxu0 0.0
    %2836 = vmatprep.subr.mxu0 0.0
    %2837 = vmatpush1.msra.mxu0 0.0
    %2838 = vmatprep.subr.mxu0 0.0
    %2839 = vmatpush1.msra.mxu0 0.0
    %2840 = vmatprep.subr.mxu0 0.0
    %2841 = vmatpush1.msra.mxu0 0.0
    %2842 = vmatprep.subr.mxu0 0.0
    %2843 = vmatpush1.msra.mxu0 0.0
    %2844 = vmatprep.subr.mxu0 0.0
    %2845 = vmatpush1.msra.mxu0 0.0
    %2846 = vmatprep.subr.mxu0 0.0
    %2847 = vmatpush1.msra.mxu0 0.0
    %2848 = vmatprep.subr.mxu0 0.0
    %2849 = vmatpush1.msra.mxu0 0.0
    %2850 = vmatprep.mubr.f32.mxu0 0.0
    %2851 = vmatmul.mubr.f32.gmra.mrb[0].mxu0 %v2396
    %v2852 = vpop.f32.mrb[0].mxu0
    %v2853 = vadd.f32 %v2716, %v2852
    %v2854 = vpop.f32.mrb[0].mxu0
    %v2855 = vadd.f32 %v2718, %v2854
    %2856 = vmatprep.mubr.f32.mxu0 0.0
    %2857 = vmatmul.mubr.f32.gmra.mrb[0].mxu0 %v2401
    %v2858 = vpop.f32.mrb[0].mxu0
    %v2859 = vadd.f32 %v2722, %v2858
    %v2860 = vpop.f32.mrb[0].mxu0
    %v2861 = vadd.f32 %v2724, %v2860
    %2862 = vmatprep.mubr.f32.mxu0 0.0
    %2863 = vmatmul.mubr.f32.gmra.mrb[0].mxu0 %v2406
    %v2864 = vpop.f32.mrb[0].mxu0
    %v2865 = vadd.f32 %v2728, %v2864
    %v2866 = vpop.f32.mrb[0].mxu0
    %v2867 = vadd.f32 %v2730, %v2866
    %2868 = vmatprep.mubr.f32.mxu0 0.0
    %2869 = vmatmul.mubr.f32.gmra.mrb[0].mxu0 %v2411
    %v2870 = vpop.f32.mrb[0].mxu0
    %v2871 = vadd.f32 %v2734, %v2870
    %v2872 = vpop.f32.mrb[0].mxu0
    %v2873 = vadd.f32 %v2736, %v2872
    %2874 = vmatprep.mubr.f32.mxu0 0.0
    %2875 = vmatmul.mubr.f32.gmra.mrb[0].mxu0 %v2416
    %v2876 = vpop.f32.mrb[0].mxu0
    %v2877 = vadd.f32 %v2740, %v2876
    %v2878 = vpop.f32.mrb[0].mxu0
    %v2879 = vadd.f32 %v2742, %v2878
    %2880 = vmatprep.mubr.f32.mxu0 0.0
    %2881 = vmatmul.mubr.f32.gmra.mrb[0].mxu0 %v2421
    %v2882 = vpop.f32.mrb[0].mxu0
    %v2883 = vadd.f32 %v2746, %v2882
    %v2884 = vpop.f32.mrb[0].mxu0
    %v2885 = vadd.f32 %v2748, %v2884
    %2886 = vmatprep.mubr.f32.mxu0 0.0
    %2887 = vmatmul.mubr.f32.gmra.mrb[0].mxu0 %v2426
    %v2888 = vpop.f32.mrb[0].mxu0
    %v2889 = vadd.f32 %v2752, %v2888
    %v2890 = vpop.f32.mrb[0].mxu0
    %v2891 = vadd.f32 %v2754, %v2890
    %2892 = vmatprep.mubr.f32.mxu0 0.0
    %2893 = vmatmul.mubr.f32.gmra.mrb[0].mxu0 %v2431
    %v2894 = vpop.f32.mrb[0].mxu0
    %v2895 = vadd.f32 %v2758, %v2894
    %v2896 = vpop.f32.mrb[0].mxu0
    %v2897 = vadd.f32 %v2760, %v2896
    %2898 = vmatprep.mubr.f32.mxu0 0.0
    %2899 = vmatmul.mubr.f32.gmra.mrb[0].mxu0 %v2436
    %v2900 = vpop.f32.mrb[0].mxu0
    %v2901 = vadd.f32 %v2764, %v2900
    %v2902 = vpop.f32.mrb[0].mxu0
    %v2903 = vadd.f32 %v2766, %v2902
    %2904 = vmatprep.mubr.f32.mxu0 0.0
    %2905 = vmatmul.mubr.f32.gmra.mrb[0].mxu0 %v2441
    %v2906 = vpop.f32.mrb[0].mxu0
    %v2907 = vadd.f32 %v2770, %v2906
    %v2908 = vpop.f32.mrb[0].mxu0
    %v2909 = vadd.f32 %v2772, %v2908
    %2910 = vmatprep.mubr.f32.mxu0 0.0
    %2911 = vmatmul.mubr.f32.gmra.mrb[0].mxu0 %v2446
    %v2912 = vpop.f32.mrb[0].mxu0
    %v2913 = vadd.f32 %v2776, %v2912
    %v2914 = vpop.f32.mrb[0].mxu0
    %v2915 = vadd.f32 %v2778, %v2914
    %2916 = vmatprep.mubr.f32.mxu0 0.0
    %2917 = vmatmul.mubr.f32.gmra.mrb[0].mxu0 %v2451
    %v2918 = vpop.f32.mrb[0].mxu0
    %v2919 = vadd.f32 %v2782, %v2918
    %v2920 = vpop.f32.mrb[0].mxu0
    %v2921 = vadd.f32 %v2784, %v2920
    %2922 = vdwg.mxu0
    %v2923 = vmax.f32 %v2853, %v2855
    %v2924 = vmax.f32 %v2859, %v2861
    %v2925 = vmax.f32 %v2865, %v2867
    %v2926 = vmax.f32 %v2871, %v2873
    %v2927 = vmax.f32 %v2877, %v2879
    %v2928 = vmax.f32 %v2883, %v2885
    %v2929 = vmax.f32 %v2889, %v2891
    %v2930 = vmax.f32 %v2895, %v2897
    %v2931 = vmax.f32 %v2901, %v2903
    %v2932 = vmax.f32 %v2907, %v2909
    %v2933 = vmax.f32 %v2913, %v2915
    %v2934 = vmax.f32 %v2919, %v2921
    %v2936 = vunpack.c.l.s4 1966171168
    %v2937 = vunpack.c.0.s8 %v2936
    %v2938 = vlaneseq
    %v2939 = vshrl.u32 %v2938, 7
    %v2940 = vsub.s32 %v2937, %v2939
    %v2941 = vrot.slane %v2923, %v2940
    %v2943 = vunpack.c.l.s4 1966171168
    %v2944 = vunpack.c.0.s8 %v2943
    %v2945 = vlaneseq
    %v2946 = vshrl.u32 %v2945, 7
    %v2947 = vsub.s32 %v2944, %v2946
    %v2948 = vrot.slane %v2924, %v2947
    %v2950 = vunpack.c.l.s4 1966171168
    %v2951 = vunpack.c.0.s8 %v2950
    %v2952 = vlaneseq
    %v2953 = vshrl.u32 %v2952, 7
    %v2954 = vsub.s32 %v2951, %v2953
    %v2955 = vrot.slane %v2925, %v2954
    %v2957 = vunpack.c.l.s4 1966171168
    %v2958 = vunpack.c.0.s8 %v2957
    %v2959 = vlaneseq
    %v2960 = vshrl.u32 %v2959, 7
    %v2961 = vsub.s32 %v2958, %v2960
    %v2962 = vrot.slane %v2926, %v2961
    %v2964 = vunpack.c.l.s4 1966171168
    %v2965 = vunpack.c.0.s8 %v2964
    %v2966 = vlaneseq
    %v2967 = vshrl.u32 %v2966, 7
    %v2968 = vsub.s32 %v2965, %v2967
    %v2969 = vrot.slane %v2927, %v2968
    %v2971 = vunpack.c.l.s4 1966171168
    %v2972 = vunpack.c.0.s8 %v2971
    %v2973 = vlaneseq
    %v2974 = vshrl.u32 %v2973, 7
    %v2975 = vsub.s32 %v2972, %v2974
    %v2976 = vrot.slane %v2928, %v2975
    %v2978 = vunpack.c.l.s4 1966171168
    %v2979 = vunpack.c.0.s8 %v2978
    %v2980 = vlaneseq
    %v2981 = vshrl.u32 %v2980, 7
    %v2982 = vsub.s32 %v2979, %v2981
    %v2983 = vrot.slane %v2929, %v2982
    %v2985 = vunpack.c.l.s4 1966171168
    %v2986 = vunpack.c.0.s8 %v2985
    %v2987 = vlaneseq
    %v2988 = vshrl.u32 %v2987, 7
    %v2989 = vsub.s32 %v2986, %v2988
    %v2990 = vrot.slane %v2930, %v2989
    %v2992 = vunpack.c.l.s4 1966171168
    %v2993 = vunpack.c.0.s8 %v2992
    %v2994 = vlaneseq
    %v2995 = vshrl.u32 %v2994, 7
    %v2996 = vsub.s32 %v2993, %v2995
    %v2997 = vrot.slane %v2931, %v2996
    %v2999 = vunpack.c.l.s4 1966171168
    %v3000 = vunpack.c.0.s8 %v2999
    %v3001 = vlaneseq
    %v3002 = vshrl.u32 %v3001, 7
    %v3003 = vsub.s32 %v3000, %v3002
    %v3004 = vrot.slane %v2932, %v3003
    %v3006 = vunpack.c.l.s4 1966171168
    %v3007 = vunpack.c.0.s8 %v3006
    %v3008 = vlaneseq
    %v3009 = vshrl.u32 %v3008, 7
    %v3010 = vsub.s32 %v3007, %v3009
    %v3011 = vrot.slane %v2933, %v3010
    %v3013 = vunpack.c.l.s4 1966171168
    %v3014 = vunpack.c.0.s8 %v3013
    %v3015 = vlaneseq
    %v3016 = vshrl.u32 %v3015, 7
    %v3017 = vsub.s32 %v3014, %v3016
    %v3018 = vrot.slane %v2934, %v3017
    %v3031 = vrot.slane %v2941, 4
    %v3032 = vrot.slane %v2948, 4
    %v3033 = vrot.slane %v2955, 4
    %v3034 = vrot.slane %v2962, 4
    %v3035 = vrot.slane %v2969, 4
    %v3036 = vrot.slane %v2976, 4
    %v3037 = vrot.slane %v2983, 4
    %v3038 = vrot.slane %v2990, 4
    %v3039 = vrot.slane %v2997, 4
    %v3040 = vrot.slane %v3004, 4
    %v3041 = vrot.slane %v3011, 4
    %v3042 = vrot.slane %v3018, 4
    %v3055 = vmax.f32 %v2941, %v3031
    %v3056 = vmax.f32 %v2948, %v3032
    %v3057 = vmax.f32 %v2955, %v3033
    %v3058 = vmax.f32 %v2962, %v3034
    %v3059 = vmax.f32 %v2969, %v3035
    %v3060 = vmax.f32 %v2976, %v3036
    %v3061 = vmax.f32 %v2983, %v3037
    %v3062 = vmax.f32 %v2990, %v3038
    %v3063 = vmax.f32 %v2997, %v3039
    %v3064 = vmax.f32 %v3004, %v3040
    %v3065 = vmax.f32 %v3011, %v3041
    %v3066 = vmax.f32 %v3018, %v3042
    %v3067 = vmul.f32 %v3055, 0.5
    %v3068 = vmul.f32 %v3056, 0.5
    %v3069 = vmul.f32 %v3057, 0.5
    %v3070 = vmul.f32 %v3058, 0.5
    %v3071 = vmul.f32 %v3059, 0.5
    %v3072 = vmul.f32 %v3060, 0.5
    %v3073 = vmul.f32 %v3061, 0.5
    %v3074 = vmul.f32 %v3062, 0.5
    %v3075 = vmul.f32 %v3063, 0.5
    %v3076 = vmul.f32 %v3064, 0.5
    %v3077 = vmul.f32 %v3065, 0.5
    %v3078 = vmul.f32 %v3066, 0.5
    %v3079 = vtanh.pop %v3067
    %v3080 = vtanh.pop %v3068
    %v3081 = vtanh.pop %v3069
    %v3082 = vtanh.pop %v3070
    %v3083 = vtanh.pop %v3071
    %v3084 = vtanh.pop %v3072
    %v3085 = vtanh.pop %v3073
    %v3086 = vtanh.pop %v3074
    %v3087 = vtanh.pop %v3075
    %v3088 = vtanh.pop %v3076
    %v3089 = vtanh.pop %v3077
    %v3090 = vtanh.pop %v3078
    %v3091 = vmul.f32 %v3079, 0.5
    %v3092 = vmul.f32 %v3080, 0.5
    %v3093 = vmul.f32 %v3081, 0.5
    %v3094 = vmul.f32 %v3082, 0.5
    %v3095 = vmul.f32 %v3083, 0.5
    %v3096 = vmul.f32 %v3084, 0.5
    %v3097 = vmul.f32 %v3085, 0.5
    %v3098 = vmul.f32 %v3086, 0.5
    %v3099 = vmul.f32 %v3087, 0.5
    %v3100 = vmul.f32 %v3088, 0.5
    %v3101 = vmul.f32 %v3089, 0.5
    %v3102 = vmul.f32 %v3090, 0.5
    %v3103 = vadd.f32 %v3091, 0.5
    %v3104 = vadd.f32 %v3092, 0.5
    %v3105 = vadd.f32 %v3093, 0.5
    %v3106 = vadd.f32 %v3094, 0.5
    %v3107 = vadd.f32 %v3095, 0.5
    %v3108 = vadd.f32 %v3096, 0.5
    %v3109 = vadd.f32 %v3097, 0.5
    %v3110 = vadd.f32 %v3098, 0.5
    %v3111 = vadd.f32 %v3099, 0.5
    %v3112 = vadd.f32 %v3100, 0.5
    %v3113 = vadd.f32 %v3101, 0.5
    %v3114 = vadd.f32 %v3102, 0.5
    %v3127 = vcombine.low %v3103, %v3104
    %v3128 = vcombine.low %v3105, %v3106
    %v3129 = vcombine.low %v3107, %v3108
    %v3130 = vcombine.low %v3109, %v3110
    %v3131 = vcombine.low %v3111, %v3112
    %v3132 = vcombine.low %v3113, %v3114
    %vm3139 = vcmask 1040384
    %v3140 = vsel %vm3139, %v3127, 0.0
    %v3141 = vrot.slane %v3127, 5
    %vm3142 = vcmask 1041409
    %v3143 = vsel %vm3142, %v3141, %v3140
    %v3144 = vrot.slane %v3128, 2
    %vm3145 = vcmask 1042434
    %v3146 = vsel %vm3145, %v3144, %v3143
    %v3147 = vrot.slane %v3129, 7
    %vm3148 = vcmask 1043459
    %v3149 = vsel %vm3148, %v3147, %v3146
    %v3150 = vrot.slane %v3130, 4
    %vm3151 = vcmask 1044484
    %v3152 = vsel %vm3151, %v3150, %v3149
    %v3153 = vrot.slane %v3130, 1
    %vm3154 = vcmask 1045509
    %v3155 = vsel %vm3154, %v3153, %v3152
    %v3156 = vrot.slane %v3131, 6
    %vm3157 = vcmask 1046534
    %v3158 = vsel %vm3157, %v3156, %v3155
    %v3159 = vrot.slane %v3132, 3
    %vm3160 = vcmask 1047559
    %v3161 = vsel %vm3160, %v3159, %v3158
    %v3162 = vrot.slane %v3127, 1
    %v3163 = vsel %vm3139, %v3162, 0.0
    %v3164 = vrot.slane %v3127, 6
    %v3165 = vsel %vm3142, %v3164, %v3163
    %v3166 = vrot.slane %v3128, 3
    %v3167 = vsel %vm3145, %v3166, %v3165
    %v3168 = vsel %vm3148, %v3129, %v3167
    %v3169 = vrot.slane %v3130, 5
    %v3170 = vsel %vm3151, %v3169, %v3168
    %v3171 = vrot.slane %v3130, 2
    %v3172 = vsel %vm3154, %v3171, %v3170
    %v3173 = vrot.slane %v3131, 7
    %v3174 = vsel %vm3157, %v3173, %v3172
    %v3175 = vrot.slane %v3132, 4
    %v3176 = vsel %vm3160, %v3175, %v3174
    %v3177 = vrot.slane %v3127, 2
    %v3178 = vsel %vm3139, %v3177, 0.0
    %v3179 = vrot.slane %v3128, 7
    %v3180 = vsel %vm3142, %v3179, %v3178
    %v3181 = vrot.slane %v3128, 4
    %v3182 = vsel %vm3145, %v3181, %v3180
    %v3183 = vrot.slane %v3129, 1
    %v3184 = vsel %vm3148, %v3183, %v3182
    %v3185 = vrot.slane %v3130, 6
    %v3186 = vsel %vm3151, %v3185, %v3184
    %v3187 = vrot.slane %v3131, 3
    %v3188 = vsel %vm3154, %v3187, %v3186
    %v3189 = vsel %vm3157, %v3131, %v3188
    %v3190 = vrot.slane %v3132, 5
    %v3191 = vsel %vm3160, %v3190, %v3189
    %v3192 = vrot.slane %v3127, 3
    %v3193 = vsel %vm3139, %v3192, 0.0
    %v3194 = vsel %vm3142, %v3128, %v3193
    %v3195 = vrot.slane %v3128, 5
    %v3196 = vsel %vm3145, %v3195, %v3194
    %v3197 = vrot.slane %v3129, 2
    %v3198 = vsel %vm3148, %v3197, %v3196
    %v3199 = vrot.slane %v3130, 7
    %v3200 = vsel %vm3151, %v3199, %v3198
    %v3201 = vrot.slane %v3131, 4
    %v3202 = vsel %vm3154, %v3201, %v3200
    %v3203 = vrot.slane %v3131, 1
    %v3204 = vsel %vm3157, %v3203, %v3202
    %v3205 = vrot.slane %v3132, 6
    %v3206 = vsel %vm3160, %v3205, %v3204
    %v3207 = vrot.slane %v3127, 4
    %v3208 = vsel %vm3139, %v3207, 0.0
    %v3209 = vrot.slane %v3128, 1
    %v3210 = vsel %vm3142, %v3209, %v3208
    %v3211 = vrot.slane %v3129, 6
    %v3212 = vsel %vm3145, %v3211, %v3210
    %v3213 = vrot.slane %v3129, 3
    %v3214 = vsel %vm3148, %v3213, %v3212
    %v3215 = vsel %vm3151, %v3130, %v3214
    %v3216 = vrot.slane %v3131, 5
    %v3217 = vsel %vm3154, %v3216, %v3215
    %v3218 = vrot.slane %v3132, 2
    %v3219 = vsel %vm3157, %v3218, %v3217
    %v3220 = vrot.slane %v3132, 7
    %v3221 = vsel %vm3160, %v3220, %v3219
    %v3222 = vsel %vm3139, %v3141, 0.0
    %v3223 = vsel %vm3142, %v3144, %v3222
    %v3224 = vsel %vm3145, %v3147, %v3223
    %v3225 = vrot.slane %v3129, 4
    %v3226 = vsel %vm3148, %v3225, %v3224
    %v3227 = vsel %vm3151, %v3153, %v3226
    %v3228 = vsel %vm3154, %v3156, %v3227
    %v3229 = vsel %vm3157, %v3159, %v3228
    %v3230 = vsel %vm3160, %v3132, %v3229
    %v3231 = vld [vmem:[#allocation6] sm:$0xff]
    %v3232 = vld [vmem:[#allocation6 + $0x8] sm:$0xff]
    %v3233 = vld [vmem:[#allocation6 + $0x10] sm:$0xff]
    %v3234 = vld [vmem:[#allocation6 + $0x18] sm:$0xff]
    %v3235 = vld [vmem:[#allocation6 + $0x20] sm:$0xff]
    %v3236 = vld [vmem:[#allocation6 + $0x28] sm:$0xff]
    %v3237 = vld [vmem:[#allocation6 + $0x30] sm:$0xff]
    %v3238 = vld [vmem:[#allocation6 + $0x38] sm:$0xff]
    %v3239 = vld [vmem:[#allocation6 + $0x40] sm:$0xff]
    %v3240 = vld [vmem:[#allocation6 + $0x48] sm:$0xff]
    %v3241 = vld [vmem:[#allocation6 + $0x50] sm:$0xff]
    %v3242 = vld [vmem:[#allocation6 + $0x58] sm:$0xff]
    %v3243 = vld [vmem:[#allocation6 + $0x60] sm:$0xff]
    %v3244 = vld [vmem:[#allocation6 + $0x68] sm:$0xff]
    %v3245 = vld [vmem:[#allocation6 + $0x70] sm:$0xff]
    %v3246 = vld [vmem:[#allocation6 + $0x78] sm:$0xff]
    %v3247 = vld [vmem:[#allocation6 + $0x80] sm:$0xff]
    %v3248 = vld [vmem:[#allocation6 + $0x88] sm:$0xff]
    %v3249 = vld [vmem:[#allocation6 + $0x90] sm:$0xff]
    %v3250 = vld [vmem:[#allocation6 + $0x98] sm:$0xff]
    %v3251 = vld [vmem:[#allocation6 + $0xa0] sm:$0xff]
    %v3252 = vld [vmem:[#allocation6 + $0xa8] sm:$0xff]
    %v3253 = vld [vmem:[#allocation6 + $0xb0] sm:$0xff]
    %v3254 = vld [vmem:[#allocation6 + $0xb8] sm:$0xff]
    %v3255 = vld [vmem:[#allocation6 + $0xc0] sm:$0xff]
    %v3256 = vld [vmem:[#allocation6 + $0xc8] sm:$0xff]
    %v3257 = vld [vmem:[#allocation6 + $0xd0] sm:$0xff]
    %v3258 = vld [vmem:[#allocation6 + $0xd8] sm:$0xff]
    %v3259 = vld [vmem:[#allocation6 + $0xe0] sm:$0xff]
    %v3260 = vld [vmem:[#allocation6 + $0xe8] sm:$0xff]
    %v3261 = vld [vmem:[#allocation6 + $0xf0] sm:$0xff]
    %v3262 = vld [vmem:[#allocation6 + $0xf8] sm:$0xff]
    %v3263 = vld [vmem:[#allocation6 + $0x100] sm:$0xff]
    %v3264 = vld [vmem:[#allocation6 + $0x108] sm:$0xff]
    %v3265 = vld [vmem:[#allocation6 + $0x110] sm:$0xff]
    %v3266 = vld [vmem:[#allocation6 + $0x118] sm:$0xff]
    %v3267 = vld [vmem:[#allocation6 + $0x120] sm:$0xff]
    %v3268 = vld [vmem:[#allocation6 + $0x128] sm:$0xff]
    %v3269 = vld [vmem:[#allocation6 + $0x130] sm:$0xff]
    %v3270 = vld [vmem:[#allocation6 + $0x138] sm:$0xff]
    %v3271 = vld [vmem:[#allocation6 + $0x140] sm:$0xff]
    %v3272 = vld [vmem:[#allocation6 + $0x148] sm:$0xff]
    %v3273 = vld [vmem:[#allocation6 + $0x150] sm:$0xff]
    %v3274 = vld [vmem:[#allocation6 + $0x158] sm:$0xff]
    %v3275 = vld [vmem:[#allocation6 + $0x160] sm:$0xff]
    %v3276 = vld [vmem:[#allocation6 + $0x168] sm:$0xff]
    %v3277 = vld [vmem:[#allocation6 + $0x170] sm:$0xff]
    %v3278 = vld [vmem:[#allocation6 + $0x178] sm:$0xff]
    %v3279 = vld [vmem:[#allocation6 + $0x180] sm:$0xff]
    %v3280 = vld [vmem:[#allocation6 + $0x188] sm:$0xff]
    %v3281 = vld [vmem:[#allocation6 + $0x190] sm:$0xff]
    %v3282 = vld [vmem:[#allocation6 + $0x198] sm:$0xff]
    %v3283 = vld [vmem:[#allocation6 + $0x1a0] sm:$0xff]
    %v3284 = vld [vmem:[#allocation6 + $0x1a8] sm:$0xff]
    %v3285 = vld [vmem:[#allocation6 + $0x1b0] sm:$0xff]
    %v3286 = vld [vmem:[#allocation6 + $0x1b8] sm:$0xff]
    %v3287 = vld [vmem:[#allocation6 + $0x1c0] sm:$0xff]
    %v3288 = vld [vmem:[#allocation6 + $0x1c8] sm:$0xff]
    %v3289 = vld [vmem:[#allocation6 + $0x1d0] sm:$0xff]
    %v3290 = vld [vmem:[#allocation6 + $0x1d8] sm:$0xff]
    %v3291 = vld [vmem:[#allocation6 + $0x1e0] sm:$0xff]
    %v3292 = vld [vmem:[#allocation6 + $0x1e8] sm:$0xff]
    %v3293 = vld [vmem:[#allocation6 + $0x1f0] sm:$0xff]
    %v3294 = vld [vmem:[#allocation6 + $0x1f8] sm:$0xff]
    %v3295 = vld [vmem:[#allocation6 + $0x200] sm:$0xff]
    %v3296 = vld [vmem:[#allocation6 + $0x208] sm:$0xff]
    %v3297 = vld [vmem:[#allocation6 + $0x210] sm:$0xff]
    %v3298 = vld [vmem:[#allocation6 + $0x218] sm:$0xff]
    %v3299 = vld [vmem:[#allocation6 + $0x220] sm:$0xff]
    %v3300 = vld [vmem:[#allocation6 + $0x228] sm:$0xff]
    %v3301 = vld [vmem:[#allocation6 + $0x230] sm:$0xff]
    %v3302 = vld [vmem:[#allocation6 + $0x238] sm:$0xff]
    %v3303 = vld [vmem:[#allocation6 + $0x240] sm:$0xff]
    %v3304 = vld [vmem:[#allocation6 + $0x248] sm:$0xff]
    %v3305 = vld [vmem:[#allocation6 + $0x250] sm:$0xff]
    %v3306 = vld [vmem:[#allocation6 + $0x258] sm:$0xff]
    %v3307 = vld [vmem:[#allocation6 + $0x260] sm:$0xff]
    %v3308 = vld [vmem:[#allocation6 + $0x268] sm:$0xff]
    %v3309 = vld [vmem:[#allocation6 + $0x270] sm:$0xff]
    %v3310 = vld [vmem:[#allocation6 + $0x278] sm:$0xff]
    %v3311 = vld [vmem:[#allocation6 + $0x280] sm:$0xff]
    %v3312 = vld [vmem:[#allocation6 + $0x288] sm:$0xff]
    %v3313 = vld [vmem:[#allocation6 + $0x290] sm:$0xff]
    %v3314 = vld [vmem:[#allocation6 + $0x298] sm:$0xff]
    %v3315 = vld [vmem:[#allocation6 + $0x2a0] sm:$0xff]
    %v3316 = vld [vmem:[#allocation6 + $0x2a8] sm:$0xff]
    %v3317 = vld [vmem:[#allocation6 + $0x2b0] sm:$0xff]
    %v3318 = vld [vmem:[#allocation6 + $0x2b8] sm:$0xff]
    %v3319 = vld [vmem:[#allocation6 + $0x2c0] sm:$0xff]
    %v3320 = vld [vmem:[#allocation6 + $0x2c8] sm:$0xff]
    %v3321 = vld [vmem:[#allocation6 + $0x2d0] sm:$0xff]
    %v3322 = vld [vmem:[#allocation6 + $0x2d8] sm:$0xff]
    %v3323 = vld [vmem:[#allocation6 + $0x2e0] sm:$0xff]
    %v3324 = vld [vmem:[#allocation6 + $0x2e8] sm:$0xff]
    %v3325 = vld [vmem:[#allocation6 + $0x2f0] sm:$0xff]
    %v3326 = vld [vmem:[#allocation6 + $0x2f8] sm:$0xff]
    %v3327 = vld [vmem:[%s6] sm:$0x1]
    %v3329 = vlaneseq
    %v3330 = vshrl.u32 %v3329, 7
    %v3331 = vsub.s32 0, %v3330
    %v3332 = vrot.slane %v3327, %v3331
    %3334 = vmatprep.subr.mxu0 0.0
    %3335 = vmatpush1.msra.mxu0 %v3231
    %3336 = vmatprep.subr.mxu0 0.0
    %3337 = vmatpush1.msra.mxu0 %v3232
    %3338 = vmatprep.subr.mxu0 0.0
    %3339 = vmatpush1.msra.mxu0 %v3233
    %3340 = vmatprep.subr.mxu0 0.0
    %3341 = vmatpush1.msra.mxu0 %v3234
    %3342 = vmatprep.subr.mxu0 0.0
    %3343 = vmatpush1.msra.mxu0 %v3235
    %3344 = vmatprep.subr.mxu0 0.0
    %3345 = vmatpush1.msra.mxu0 %v3236
    %3346 = vmatprep.subr.mxu0 0.0
    %3347 = vmatpush1.msra.mxu0 %v3237
    %3348 = vmatprep.subr.mxu0 0.0
    %3349 = vmatpush1.msra.mxu0 %v3238
    %3350 = vmatprep.subr.mxu0 0.0
    %3351 = vmatpush1.msra.mxu0 %v3239
    %3352 = vmatprep.subr.mxu0 0.0
    %3353 = vmatpush1.msra.mxu0 %v3240
    %3354 = vmatprep.subr.mxu0 0.0
    %3355 = vmatpush1.msra.mxu0 %v3241
    %3356 = vmatprep.subr.mxu0 0.0
    %3357 = vmatpush1.msra.mxu0 %v3242
    %3358 = vmatprep.subr.mxu0 0.0
    %3359 = vmatpush1.msra.mxu0 %v3243
    %3360 = vmatprep.subr.mxu0 0.0
    %3361 = vmatpush1.msra.mxu0 %v3244
    %3362 = vmatprep.subr.mxu0 0.0
    %3363 = vmatpush1.msra.mxu0 %v3245
    %3364 = vmatprep.subr.mxu0 0.0
    %3365 = vmatpush1.msra.mxu0 %v3246
    %3366 = vmatprep.subr.mxu0 0.0
    %3367 = vmatpush1.msra.mxu0 %v3247
    %3368 = vmatprep.subr.mxu0 0.0
    %3369 = vmatpush1.msra.mxu0 %v3248
    %3370 = vmatprep.subr.mxu0 0.0
    %3371 = vmatpush1.msra.mxu0 %v3249
    %3372 = vmatprep.subr.mxu0 0.0
    %3373 = vmatpush1.msra.mxu0 %v3250
    %3374 = vmatprep.subr.mxu0 0.0
    %3375 = vmatpush1.msra.mxu0 %v3251
    %3376 = vmatprep.subr.mxu0 0.0
    %3377 = vmatpush1.msra.mxu0 %v3252
    %3378 = vmatprep.subr.mxu0 0.0
    %3379 = vmatpush1.msra.mxu0 %v3253
    %3380 = vmatprep.subr.mxu0 0.0
    %3381 = vmatpush1.msra.mxu0 %v3254
    %3382 = vmatprep.subr.mxu0 0.0
    %3383 = vmatpush1.msra.mxu0 %v3255
    %3384 = vmatprep.subr.mxu0 0.0
    %3385 = vmatpush1.msra.mxu0 %v3256
    %3386 = vmatprep.subr.mxu0 0.0
    %3387 = vmatpush1.msra.mxu0 %v3257
    %3388 = vmatprep.subr.mxu0 0.0
    %3389 = vmatpush1.msra.mxu0 %v3258
    %3390 = vmatprep.subr.mxu0 0.0
    %3391 = vmatpush1.msra.mxu0 %v3259
    %3392 = vmatprep.subr.mxu0 0.0
    %3393 = vmatpush1.msra.mxu0 %v3260
    %3394 = vmatprep.subr.mxu0 0.0
    %3395 = vmatpush1.msra.mxu0 %v3261
    %3396 = vmatprep.subr.mxu0 0.0
    %3397 = vmatpush1.msra.mxu0 %v3262
    %3398 = vmatprep.mubr.f32.mxu0 %v3176
    %3399 = vmatmul.mubr.f32.gmra.mrb[0].mxu0 %v3161
    %v3400 = vpop.f32.mrb[0].mxu0
    %v3401 = vadd.f32 %v3332, %v3400
    %v3402 = vpop.f32.mrb[0].mxu0
    %3403 = vdwg.mxu0
    %3404 = vmatprep.subr.mxu0 0.0
    %3405 = vmatpush1.msra.mxu0 %v3263
    %3406 = vmatprep.subr.mxu0 0.0
    %3407 = vmatpush1.msra.mxu0 %v3264
    %3408 = vmatprep.subr.mxu0 0.0
    %3409 = vmatpush1.msra.mxu0 %v3265
    %3410 = vmatprep.subr.mxu0 0.0
    %3411 = vmatpush1.msra.mxu0 %v3266
    %3412 = vmatprep.subr.mxu0 0.0
    %3413 = vmatpush1.msra.mxu0 %v3267
    %3414 = vmatprep.subr.mxu0 0.0
    %3415 = vmatpush1.msra.mxu0 %v3268
    %3416 = vmatprep.subr.mxu0 0.0
    %3417 = vmatpush1.msra.mxu0 %v3269
    %3418 = vmatprep.subr.mxu0 0.0
    %3419 = vmatpush1.msra.mxu0 %v3270
    %3420 = vmatprep.subr.mxu0 0.0
    %3421 = vmatpush1.msra.mxu0 %v3271
    %3422 = vmatprep.subr.mxu0 0.0
    %3423 = vmatpush1.msra.mxu0 %v3272
    %3424 = vmatprep.subr.mxu0 0.0
    %3425 = vmatpush1.msra.mxu0 %v3273
    %3426 = vmatprep.subr.mxu0 0.0
    %3427 = vmatpush1.msra.mxu0 %v3274
    %3428 = vmatprep.subr.mxu0 0.0
    %3429 = vmatpush1.msra.mxu0 %v3275
    %3430 = vmatprep.subr.mxu0 0.0
    %3431 = vmatpush1.msra.mxu0 %v3276
    %3432 = vmatprep.subr.mxu0 0.0
    %3433 = vmatpush1.msra.mxu0 %v3277
    %3434 = vmatprep.subr.mxu0 0.0
    %3435 = vmatpush1.msra.mxu0 %v3278
    %3436 = vmatprep.subr.mxu0 0.0
    %3437 = vmatpush1.msra.mxu0 %v3279
    %3438 = vmatprep.subr.mxu0 0.0
    %3439 = vmatpush1.msra.mxu0 %v3280
    %3440 = vmatprep.subr.mxu0 0.0
    %3441 = vmatpush1.msra.mxu0 %v3281
    %3442 = vmatprep.subr.mxu0 0.0
    %3443 = vmatpush1.msra.mxu0 %v3282
    %3444 = vmatprep.subr.mxu0 0.0
    %3445 = vmatpush1.msra.mxu0 %v3283
    %3446 = vmatprep.subr.mxu0 0.0
    %3447 = vmatpush1.msra.mxu0 %v3284
    %3448 = vmatprep.subr.mxu0 0.0
    %3449 = vmatpush1.msra.mxu0 %v3285
    %3450 = vmatprep.subr.mxu0 0.0
    %3451 = vmatpush1.msra.mxu0 %v3286
    %3452 = vmatprep.subr.mxu0 0.0
    %3453 = vmatpush1.msra.mxu0 %v3287
    %3454 = vmatprep.subr.mxu0 0.0
    %3455 = vmatpush1.msra.mxu0 %v3288
    %3456 = vmatprep.subr.mxu0 0.0
    %3457 = vmatpush1.msra.mxu0 %v3289
    %3458 = vmatprep.subr.mxu0 0.0
    %3459 = vmatpush1.msra.mxu0 %v3290
    %3460 = vmatprep.subr.mxu0 0.0
    %3461 = vmatpush1.msra.mxu0 %v3291
    %3462 = vmatprep.subr.mxu0 0.0
    %3463 = vmatpush1.msra.mxu0 %v3292
    %3464 = vmatprep.subr.mxu0 0.0
    %3465 = vmatpush1.msra.mxu0 %v3293
    %3466 = vmatprep.subr.mxu0 0.0
    %3467 = vmatpush1.msra.mxu0 %v3294
    %3468 = vmatprep.mubr.f32.mxu0 %v3206
    %3469 = vmatmul.mubr.f32.gmra.mrb[0].mxu0 %v3191
    %v3470 = vpop.f32.mrb[0].mxu0
    %v3471 = vadd.f32 %v3401, %v3470
    %v3472 = vpop.f32.mrb[0].mxu0
    %3473 = vdwg.mxu0
    %3474 = vmatprep.subr.mxu0 0.0
    %3475 = vmatpush1.msra.mxu0 %v3295
    %3476 = vmatprep.subr.mxu0 0.0
    %3477 = vmatpush1.msra.mxu0 %v3296
    %3478 = vmatprep.subr.mxu0 0.0
    %3479 = vmatpush1.msra.mxu0 %v3297
    %3480 = vmatprep.subr.mxu0 0.0
    %3481 = vmatpush1.msra.mxu0 %v3298
    %3482 = vmatprep.subr.mxu0 0.0
    %3483 = vmatpush1.msra.mxu0 %v3299
    %3484 = vmatprep.subr.mxu0 0.0
    %3485 = vmatpush1.msra.mxu0 %v3300
    %3486 = vmatprep.subr.mxu0 0.0
    %3487 = vmatpush1.msra.mxu0 %v3301
    %3488 = vmatprep.subr.mxu0 0.0
    %3489 = vmatpush1.msra.mxu0 %v3302
    %3490 = vmatprep.subr.mxu0 0.0
    %3491 = vmatpush1.msra.mxu0 %v3303
    %3492 = vmatprep.subr.mxu0 0.0
    %3493 = vmatpush1.msra.mxu0 %v3304
    %3494 = vmatprep.subr.mxu0 0.0
    %3495 = vmatpush1.msra.mxu0 %v3305
    %3496 = vmatprep.subr.mxu0 0.0
    %3497 = vmatpush1.msra.mxu0 %v3306
    %3498 = vmatprep.subr.mxu0 0.0
    %3499 = vmatpush1.msra.mxu0 %v3307
    %3500 = vmatprep.subr.mxu0 0.0
    %3501 = vmatpush1.msra.mxu0 %v3308
    %3502 = vmatprep.subr.mxu0 0.0
    %3503 = vmatpush1.msra.mxu0 %v3309
    %3504 = vmatprep.subr.mxu0 0.0
    %3505 = vmatpush1.msra.mxu0 %v3310
    %3506 = vmatprep.subr.mxu0 0.0
    %3507 = vmatpush1.msra.mxu0 %v3311
    %3508 = vmatprep.subr.mxu0 0.0
    %3509 = vmatpush1.msra.mxu0 %v3312
    %3510 = vmatprep.subr.mxu0 0.0
    %3511 = vmatpush1.msra.mxu0 %v3313
    %3512 = vmatprep.subr.mxu0 0.0
    %3513 = vmatpush1.msra.mxu0 %v3314
    %3514 = vmatprep.subr.mxu0 0.0
    %3515 = vmatpush1.msra.mxu0 %v3315
    %3516 = vmatprep.subr.mxu0 0.0
    %3517 = vmatpush1.msra.mxu0 %v3316
    %3518 = vmatprep.subr.mxu0 0.0
    %3519 = vmatpush1.msra.mxu0 %v3317
    %3520 = vmatprep.subr.mxu0 0.0
    %3521 = vmatpush1.msra.mxu0 %v3318
    %3522 = vmatprep.subr.mxu0 0.0
    %3523 = vmatpush1.msra.mxu0 %v3319
    %3524 = vmatprep.subr.mxu0 0.0
    %3525 = vmatpush1.msra.mxu0 %v3320
    %3526 = vmatprep.subr.mxu0 0.0
    %3527 = vmatpush1.msra.mxu0 %v3321
    %3528 = vmatprep.subr.mxu0 0.0
    %3529 = vmatpush1.msra.mxu0 %v3322
    %3530 = vmatprep.subr.mxu0 0.0
    %3531 = vmatpush1.msra.mxu0 %v3323
    %3532 = vmatprep.subr.mxu0 0.0
    %3533 = vmatpush1.msra.mxu0 %v3324
    %3534 = vmatprep.subr.mxu0 0.0
    %3535 = vmatpush1.msra.mxu0 %v3325
    %3536 = vmatprep.subr.mxu0 0.0
    %3537 = vmatpush1.msra.mxu0 %v3326
    %3538 = vmatprep.mubr.f32.mxu0 %v3230
    %3539 = vmatmul.mubr.f32.gmra.mrb[0].mxu0 %v3221
    %v3540 = vpop.f32.mrb[0].mxu0
    %v3541 = vadd.f32 %v3471, %v3540
    %v3542 = vpop.f32.mrb[0].mxu0
    %3543 = vdwg.mxu0
    %v3544 = vld [vmem:[%s7] sm:$0xff]
    %v3545 = vld [vmem:[%s7 + $0x8] sm:$0xff]
    %v3546 = vld [vmem:[%s7 + $0x10] sm:$0xff]
    %v3547 = vld [vmem:[%s7 + $0x18] sm:$0xff]
    %v3548 = vld [vmem:[%s7 + $0x20] sm:$0xff]
    %v3549 = vld [vmem:[%s7 + $0x28] sm:$0xff]
    %v3550 = vld [vmem:[%s7 + $0x30] sm:$0xff]
    %v3551 = vld [vmem:[%s7 + $0x38] sm:$0xff]
    %v3552 = vld [vmem:[%s7 + $0x40] sm:$0xff]
    %v3553 = vld [vmem:[%s7 + $0x48] sm:$0xff]
    %v3554 = vld [vmem:[%s7 + $0x50] sm:$0xff]
    %v3555 = vld [vmem:[%s7 + $0x58] sm:$0xff]
    %v3556 = vld [vmem:[%s7 + $0x60] sm:$0xff]
    %v3557 = vld [vmem:[%s7 + $0x68] sm:$0xff]
    %v3558 = vld [vmem:[%s7 + $0x70] sm:$0xff]
    %v3559 = vld [vmem:[%s7 + $0x78] sm:$0xff]
    %v3560 = vld [vmem:[%s8] sm:$0x1]
    %v3562 = vlaneseq
    %v3563 = vshrl.u32 %v3562, 7
    %v3564 = vsub.s32 0, %v3563
    %v3565 = vrot.slane %v3560, %v3564
    %3567 = vmatprep.subr.mxu0 0.0
    %3568 = vmatpush1.msra.mxu0 %v3544
    %3569 = vmatprep.subr.mxu0 0.0
    %3570 = vmatpush1.msra.mxu0 %v3545
    %3571 = vmatprep.subr.mxu0 0.0
    %3572 = vmatpush1.msra.mxu0 %v3546
    %3573 = vmatprep.subr.mxu0 0.0
    %3574 = vmatpush1.msra.mxu0 %v3547
    %3575 = vmatprep.subr.mxu0 0.0
    %3576 = vmatpush1.msra.mxu0 %v3548
    %3577 = vmatprep.subr.mxu0 0.0
    %3578 = vmatpush1.msra.mxu0 %v3549
    %3579 = vmatprep.subr.mxu0 0.0
    %3580 = vmatpush1.msra.mxu0 %v3550
    %3581 = vmatprep.subr.mxu0 0.0
    %3582 = vmatpush1.msra.mxu0 %v3551
    %3583 = vmatprep.subr.mxu0 0.0
    %3584 = vmatpush1.msra.mxu0 %v3552
    %3585 = vmatprep.subr.mxu0 0.0
    %3586 = vmatpush1.msra.mxu0 %v3553
    %3587 = vmatprep.subr.mxu0 0.0
    %3588 = vmatpush1.msra.mxu0 %v3554
    %3589 = vmatprep.subr.mxu0 0.0
    %3590 = vmatpush1.msra.mxu0 %v3555
    %3591 = vmatprep.subr.mxu0 0.0
    %3592 = vmatpush1.msra.mxu0 %v3556
    %3593 = vmatprep.subr.mxu0 0.0
    %3594 = vmatpush1.msra.mxu0 %v3557
    %3595 = vmatprep.subr.mxu0 0.0
    %3596 = vmatpush1.msra.mxu0 %v3558
    %3597 = vmatprep.subr.mxu0 0.0
    %3598 = vmatpush1.msra.mxu0 %v3559
    %3599 = vmatprep.subr.mxu0 0.0
    %3600 = vmatpush1.msra.mxu0 0.0
    %3601 = vmatprep.subr.mxu0 0.0
    %3602 = vmatpush1.msra.mxu0 0.0
    %3603 = vmatprep.subr.mxu0 0.0
    %3604 = vmatpush1.msra.mxu0 0.0
    %3605 = vmatprep.subr.mxu0 0.0
    %3606 = vmatpush1.msra.mxu0 0.0
    %3607 = vmatprep.subr.mxu0 0.0
    %3608 = vmatpush1.msra.mxu0 0.0
    %3609 = vmatprep.subr.mxu0 0.0
    %3610 = vmatpush1.msra.mxu0 0.0
    %3611 = vmatprep.subr.mxu0 0.0
    %3612 = vmatpush1.msra.mxu0 0.0
    %3613 = vmatprep.subr.mxu0 0.0
    %3614 = vmatpush1.msra.mxu0 0.0
    %3615 = vmatprep.subr.mxu0 0.0
    %3616 = vmatpush1.msra.mxu0 0.0
    %3617 = vmatprep.subr.mxu0 0.0
    %3618 = vmatpush1.msra.mxu0 0.0
    %3619 = vmatprep.subr.mxu0 0.0
    %3620 = vmatpush1.msra.mxu0 0.0
    %3621 = vmatprep.subr.mxu0 0.0
    %3622 = vmatpush1.msra.mxu0 0.0
    %3623 = vmatprep.subr.mxu0 0.0
    %3624 = vmatpush1.msra.mxu0 0.0
    %3625 = vmatprep.subr.mxu0 0.0
    %3626 = vmatpush1.msra.mxu0 0.0
    %3627 = vmatprep.subr.mxu0 0.0
    %3628 = vmatpush1.msra.mxu0 0.0
    %3629 = vmatprep.subr.mxu0 0.0
    %3630 = vmatpush1.msra.mxu0 0.0
    %3631 = vmatprep.mubr.f32.mxu0 0.0
    %3632 = vmatmul.mubr.f32.gmra.mrb[0].mxu0 %v3541
    %v3633 = vpop.f32.mrb[0].mxu0
    %v3634 = vadd.f32 %v3565, %v3633
    %v3635 = vpop.f32.mrb[0].mxu0
    %3636 = vdwg.mxu0
    %3637 = vst [vmem:[%s12] sm:$0xff] %v3634
    %v3638 = vld [vmem:[%s9] sm:$0xff]
    %v3639 = vld [vmem:[%s9 + $0x8] sm:$0xff]
    %v3640 = vld [vmem:[%s9 + $0x10] sm:$0xff]
    %v3641 = vld [vmem:[%s9 + $0x18] sm:$0xff]
    %v3642 = vld [vmem:[%s9 + $0x20] sm:$0xff]
    %v3643 = vld [vmem:[%s9 + $0x28] sm:$0xff]
    %v3644 = vld [vmem:[%s9 + $0x30] sm:$0xff]
    %v3645 = vld [vmem:[%s9 + $0x38] sm:$0xff]
    %v3646 = vld [vmem:[%s9 + $0x40] sm:$0xff]
    %v3647 = vld [vmem:[%s9 + $0x48] sm:$0xff]
    %v3648 = vld [vmem:[%s9 + $0x50] sm:$0xff]
    %v3649 = vld [vmem:[%s9 + $0x58] sm:$0xff]
    %v3650 = vld [vmem:[%s9 + $0x60] sm:$0xff]
    %v3651 = vld [vmem:[%s9 + $0x68] sm:$0xff]
    %v3652 = vld [vmem:[%s9 + $0x70] sm:$0xff]
    %v3653 = vld [vmem:[%s9 + $0x78] sm:$0xff]
    %v3654 = vld [vmem:[%s10] sm:$0x1]
    %v3656 = vlaneseq
    %v3657 = vshrl.u32 %v3656, 7
    %v3658 = vsub.s32 0, %v3657
    %v3659 = vrot.slane %v3654, %v3658
    %3661 = vmatprep.subr.mxu0 0.0
    %3662 = vmatpush1.msra.mxu0 %v3638
    %3663 = vmatprep.subr.mxu0 0.0
    %3664 = vmatpush1.msra.mxu0 %v3639
    %3665 = vmatprep.subr.mxu0 0.0
    %3666 = vmatpush1.msra.mxu0 %v3640
    %3667 = vmatprep.subr.mxu0 0.0
    %3668 = vmatpush1.msra.mxu0 %v3641
    %3669 = vmatprep.subr.mxu0 0.0
    %3670 = vmatpush1.msra.mxu0 %v3642
    %3671 = vmatprep.subr.mxu0 0.0
    %3672 = vmatpush1.msra.mxu0 %v3643
    %3673 = vmatprep.subr.mxu0 0.0
    %3674 = vmatpush1.msra.mxu0 %v3644
    %3675 = vmatprep.subr.mxu0 0.0
    %3676 = vmatpush1.msra.mxu0 %v3645
    %3677 = vmatprep.subr.mxu0 0.0
    %3678 = vmatpush1.msra.mxu0 %v3646
    %3679 = vmatprep.subr.mxu0 0.0
    %3680 = vmatpush1.msra.mxu0 %v3647
    %3681 = vmatprep.subr.mxu0 0.0
    %3682 = vmatpush1.msra.mxu0 %v3648
    %3683 = vmatprep.subr.mxu0 0.0
    %3684 = vmatpush1.msra.mxu0 %v3649
    %3685 = vmatprep.subr.mxu0 0.0
    %3686 = vmatpush1.msra.mxu0 %v3650
    %3687 = vmatprep.subr.mxu0 0.0
    %3688 = vmatpush1.msra.mxu0 %v3651
    %3689 = vmatprep.subr.mxu0 0.0
    %3690 = vmatpush1.msra.mxu0 %v3652
    %3691 = vmatprep.subr.mxu0 0.0
    %3692 = vmatpush1.msra.mxu0 %v3653
    %3693 = vmatprep.subr.mxu0 0.0
    %3694 = vmatpush1.msra.mxu0 0.0
    %3695 = vmatprep.subr.mxu0 0.0
    %3696 = vmatpush1.msra.mxu0 0.0
    %3697 = vmatprep.subr.mxu0 0.0
    %3698 = vmatpush1.msra.mxu0 0.0
    %3699 = vmatprep.subr.mxu0 0.0
    %3700 = vmatpush1.msra.mxu0 0.0
    %3701 = vmatprep.subr.mxu0 0.0
    %3702 = vmatpush1.msra.mxu0 0.0
    %3703 = vmatprep.subr.mxu0 0.0
    %3704 = vmatpush1.msra.mxu0 0.0
    %3705 = vmatprep.subr.mxu0 0.0
    %3706 = vmatpush1.msra.mxu0 0.0
    %3707 = vmatprep.subr.mxu0 0.0
    %3708 = vmatpush1.msra.mxu0 0.0
    %3709 = vmatprep.subr.mxu0 0.0
    %3710 = vmatpush1.msra.mxu0 0.0
    %3711 = vmatprep.subr.mxu0 0.0
    %3712 = vmatpush1.msra.mxu0 0.0
    %3713 = vmatprep.subr.mxu0 0.0
    %3714 = vmatpush1.msra.mxu0 0.0
    %3715 = vmatprep.subr.mxu0 0.0
    %3716 = vmatpush1.msra.mxu0 0.0
    %3717 = vmatprep.subr.mxu0 0.0
    %3718 = vmatpush1.msra.mxu0 0.0
    %3719 = vmatprep.subr.mxu0 0.0
    %3720 = vmatpush1.msra.mxu0 0.0
    %3721 = vmatprep.subr.mxu0 0.0
    %3722 = vmatpush1.msra.mxu0 0.0
    %3723 = vmatprep.subr.mxu0 0.0
    %3724 = vmatpush1.msra.mxu0 0.0
    %3725 = vmatprep.mubr.f32.mxu0 0.0
    %3726 = vmatmul.mubr.f32.gmra.mrb[0].mxu0 %v3634
    %v3727 = vpop.f32.mrb[0].mxu0
    %v3728 = vadd.f32 %v3659, %v3727
    %v3729 = vpop.f32.mrb[0].mxu0
    %3730 = vdwg.mxu0
    %3731 = vst [vmem:[%s11] sm:$0xff] %v3728
    // Predicated region
    $region58: #{lenet_forward.1} parent=1 // pred_check
      _
    $region59: #{lenet_forward.1} parent=1 // pred_check_branch
      %3733 = sbr.rel (0) target = $region61
    $region60: #{lenet_forward.1} parent=1 // pred_region
      _
    $region61: #{lenet_forward.1} parent=1 // pred_fallthru
      _
    // Predicated region
    $region62: #{lenet_forward.1} parent=1 // pred_check
      _
    $region63: #{lenet_forward.1} parent=1 // pred_check_branch
      %3735 = sbr.rel (0) target = $region65
    $region64: #{lenet_forward.1} parent=1 // pred_region
      _
    $region65: #{lenet_forward.1} parent=1 // pred_fallthru
      _
    // Predicated region
    $region66: #{lenet_forward.1} parent=1 // pred_check
      _
    $region67: #{lenet_forward.1} parent=1 // pred_check_branch
      %3737 = sbr.rel (0) target = $region69
    $region68: #{lenet_forward.1} parent=1 // pred_region
      _
    $region69: #{lenet_forward.1} parent=1 // pred_fallthru
      _
    // Predicated region
    $region70: #{lenet_forward.1} parent=1 // pred_check
      _
    $region71: #{lenet_forward.1} parent=1 // pred_check_branch
      %3739 = sbr.rel (0) target = $region73
    $region72: #{lenet_forward.1} parent=1 // pred_region
      _
    $region73: #{lenet_forward.1} parent=1 // pred_fallthru
      _
    %3740 = vsyncpa [#allocation3], 1
    %3741 = vsyncpa [#allocation5], 1

</llo_original>
